<compile_context>
chip_gen: v7x
topology: tpu7x:2x2x1
jax: 0.10.0
libtpu: 0.0.40
codegen_flags: <defaults>
</compile_context>

<pallas_src>
import jax
import jax.numpy as jnp
from jax.experimental import pallas as pl

# ----------------------------- small synthetic config -----------------------------
VOCAB = 256          # roberta_config["vocab_size"] (synthetic, small)
HIDDEN = 128         # hidden_size
N_LAYERS = 2         # num_hidden_layers
N_HEADS = 4          # num_attention_heads
HEAD_DIM = HIDDEN // N_HEADS
INTERMEDIATE = 256   # intermediate_size
MAX_POS = 32         # max_position_embeddings
PAD_IDX = 1          # RoBERTa padding_idx
LN_EPS = 1e-5        # layer_norm_eps
B = 2                # batch
S = 8                # sequence length


# ----------------------------- in-kernel helpers -----------------------------
def _layernorm(h, g, b):
    mu = jnp.mean(h, axis=-1, keepdims=True)
    var = jnp.mean(jnp.square(h - mu), axis=-1, keepdims=True)
    return (h - mu) * jax.lax.rsqrt(var + LN_EPS) * g + b


def _mm(x, w_bf16, bias=None):
    # bf16 MXU operands, f32 accumulation; bias add in f32.
    y = jnp.dot(x.astype(jnp.bfloat16), w_bf16, preferred_element_type=jnp.float32)
    if bias is not None:
        y = y + bias
    return y


# ----------------------------- fused forward kernel -----------------------------
def _fused_encoder_kernel(
    one_hot_ref, extra_ref, mask_row_ref, mask_col_ref,
    emb_w_ref, emb_g_ref, emb_b_ref,
    wqkv_ref, bqkv_ref, wo_ref, bo_ref, ln1_g_ref, ln1_b_ref,
    wi_ref, bi_ref, wf_ref, bf_ref, ln2_g_ref, ln2_b_ref,
    hid_ref, pool_ref,
):
    scale = 1.0 / (HEAD_DIM ** 0.5)

    # ---- embeddings: one_hot @ embedding_projection (+pos+type), LayerNorm ----
    word = _mm(one_hot_ref[...], emb_w_ref[...])                 # (B*S, H) f32
    x = _layernorm(word + extra_ref[...], emb_g_ref[...], emb_b_ref[...])

    # ---- encoder layers (static Python loop; weights indexed by layer) ----
    for l in range(N_LAYERS):
        qkv = _mm(x, wqkv_ref[l], bqkv_ref[l])                   # (B*S, 3H) f32

        ctx_rows = []
        for bi_ in range(B):
            r0 = bi_ * S
            # additive attention bias from (1, S) mask row, broadcast over queries
            bias = (1.0 - mask_row_ref[bi_]) * (-1e9)            # (1, S) f32
            heads = []
            for h in range(N_HEADS):
                c0 = h * HEAD_DIM
                q = qkv[r0:r0 + S, c0:c0 + HEAD_DIM]
                k = qkv[r0:r0 + S, HIDDEN + c0:HIDDEN + c0 + HEAD_DIM]
                v = qkv[r0:r0 + S, 2 * HIDDEN + c0:2 * HIDDEN + c0 + HEAD_DIM]
                sc = jax.lax.dot_general(
                    q, k, (((1,), (1,)), ((), ())),
                    preferred_element_type=jnp.float32) * scale + bias
                sc = sc - jnp.max(sc, axis=-1, keepdims=True)
                p = jnp.exp(sc)
                p = p * pl.reciprocal(jnp.sum(p, axis=-1, keepdims=True), approx=True)
                heads.append(jnp.dot(p, v, preferred_element_type=jnp.float32))
            ctx_rows.append(jnp.concatenate(heads, axis=-1))     # (S, H)
        ctx = jnp.concatenate(ctx_rows, axis=0)                  # (B*S, H)

        attn_out = _mm(ctx, wo_ref[l], bo_ref[l])
        x = _layernorm(attn_out + x, ln1_g_ref[l], ln1_b_ref[l])

        # TODO(synk): PyTorch RoBERTa uses exact erf-GELU; tanh approximation used for Mosaic portability.
        inter = jax.nn.gelu(_mm(x, wi_ref[l], bi_ref[l]), approximate=True)
        ffn = _mm(inter, wf_ref[l], bf_ref[l])
        x = _layernorm(ffn + x, ln2_g_ref[l], ln2_b_ref[l])

    # ---- outputs: last_hidden_state + sentence-transformers mean pooling ----
    hid_ref[...] = x.astype(hid_ref.dtype)

    m = mask_col_ref[...]                                        # (B*S, 1) f32
    xm = x * m
    pooled = []
    for bi_ in range(B):
        r0 = bi_ * S
        ssum = jnp.sum(xm[r0:r0 + S], axis=0, keepdims=True)     # (1, H)
        denom = jnp.maximum(jnp.sum(m[r0:r0 + S], axis=0, keepdims=True), 1e-9)
        pooled.append(ssum * pl.reciprocal(denom, approx=True))
    pool_ref[...] = jnp.concatenate(pooled, axis=0).astype(pool_ref.dtype)


# ----------------------------- parameters (deterministic) -----------------------------
def init_params(key):
    def normal(k, shape):
        return jax.random.normal(k, shape, dtype=jnp.float32) * 0.02

    keys = iter(jax.random.split(key, 3 + N_LAYERS * 4))
    params = {
        # embedding_projection.weight is word_embeddings.weight transposed -> (V, H) operand
        "emb_proj_w": normal(next(keys), (VOCAB, HIDDEN)).astype(jnp.bfloat16),
        "pos_emb": normal(next(keys), (MAX_POS, HIDDEN)),
        "type_emb": normal(next(keys), (1, HIDDEN)),
        "emb_ln_g": jnp.ones((1, HIDDEN), jnp.float32),
        "emb_ln_b": jnp.zeros((1, HIDDEN), jnp.float32),
    }
    wqkv, wo, wi, wf = [], [], [], []
    for _ in range(N_LAYERS):
        wq = normal(next(keys), (HIDDEN, HIDDEN))
        wqkv_l = jnp.concatenate(
            [wq, normal(next(keys), (HIDDEN, HIDDEN)), normal(next(keys), (HIDDEN, HIDDEN))],
            axis=1)
        wqkv.append(wqkv_l)
        wo.append(normal(next(keys), (HIDDEN, HIDDEN)))
        # reuse fresh keys for FFN weights
        kwi, kwf = jax.random.split(jax.random.fold_in(next(keys) if False else jax.random.PRNGKey(0), 0), 2)  # placeholder, replaced below
        wi.append(None)
        wf.append(None)
    # regenerate FFN weights deterministically from a separate key stream
    ffn_keys = iter(jax.random.split(jax.random.fold_in(key, 123), N_LAYERS * 2))
    for l in range(N_LAYERS):
        wi[l] = normal(next(ffn_keys), (HIDDEN, INTERMEDIATE))
        wf[l] = normal(next(ffn_keys), (INTERMEDIATE, HIDDEN))

    params.update({
        "wqkv": jnp.stack(wqkv).astype(jnp.bfloat16),
        "bqkv": jnp.zeros((N_LAYERS, 1, 3 * HIDDEN), jnp.float32),
        "wo": jnp.stack(wo).astype(jnp.bfloat16),
        "bo": jnp.zeros((N_LAYERS, 1, HIDDEN), jnp.float32),
        "ln1_g": jnp.ones((N_LAYERS, 1, HIDDEN), jnp.float32),
        "ln1_b": jnp.zeros((N_LAYERS, 1, HIDDEN), jnp.float32),
        "wi": jnp.stack(wi).astype(jnp.bfloat16),
        "bi": jnp.zeros((N_LAYERS, 1, INTERMEDIATE), jnp.float32),
        "wf": jnp.stack(wf).astype(jnp.bfloat16),
        "bf": jnp.zeros((N_LAYERS, 1, HIDDEN), jnp.float32),
        "ln2_g": jnp.ones((N_LAYERS, 1, HIDDEN), jnp.float32),
        "ln2_b": jnp.zeros((N_LAYERS, 1, HIDDEN), jnp.float32),
    })
    return params


# ----------------------------- model forward (glue + fused kernel) -----------------------------
def roberta_forward(params, input_ids, attention_mask, one_hot_input_ids):
    Bx, Sx, V = one_hot_input_ids.shape
    one_hot = one_hot_input_ids.astype(jnp.bfloat16).reshape(Bx * Sx, V)
    mask_f = attention_mask.astype(jnp.float32)

    # HF RoBERTa create_position_ids_from_input_ids: driven by input_ids != padding_idx
    ne = (input_ids != PAD_IDX).astype(jnp.int32)
    position_ids = jnp.cumsum(ne, axis=1) * ne + PAD_IDX
    pos = params["pos_emb"][position_ids]                        # (B, S, H) gather (glue)
    typ = params["type_emb"][0][None, None, :]                   # token_type_id = 0
    extra = (pos + typ).reshape(Bx * Sx, HIDDEN).astype(jnp.float32)

    mask_row = mask_f[:, None, :]                                # (B, 1, S) for attention bias
    mask_col = mask_f.reshape(Bx * Sx, 1)                        # (B*S, 1) for mean pooling

    hid_flat, pooled = pl.pallas_call(
        _fused_encoder_kernel,
        out_shape=(jax.ShapeDtypeStruct((Bx * Sx, HIDDEN), jnp.float32),
                   jax.ShapeDtypeStruct((Bx, HIDDEN), jnp.float32)),
    )(one_hot, extra, mask_row, mask_col,
      params["emb_proj_w"], params["emb_ln_g"], params["emb_ln_b"],
      params["wqkv"], params["bqkv"], params["wo"], params["bo"],
      params["ln1_g"], params["ln1_b"],
      params["wi"], params["bi"], params["wf"], params["bf"],
      params["ln2_g"], params["ln2_b"])

    return hid_flat.reshape(Bx, Sx, HIDDEN), pooled


def gradient_sentence_transformer_forward(params, inputs, one_hot_input_ids, pooling=True):
    last_hidden, pooled = roberta_forward(
        params, inputs["input_ids"], inputs["attention_mask"], one_hot_input_ids)
    if pooling:
        # Pooling(features={"token_embeddings", "attention_mask"}) -> mean pooling
        return pooled
    return last_hidden


# ----------------------------- main -----------------------------
if __name__ == "__main__":
    key = jax.random.PRNGKey(0)
    pkey, ikey = jax.random.split(key)
    params = init_params(pkey)

    input_ids = jax.random.randint(ikey, (B, S), 0, VOCAB, dtype=jnp.int32)
    attention_mask = jnp.array([[1, 1, 1, 1, 1, 1, 1, 1],
                                [1, 1, 1, 1, 1, 1, 0, 0]], dtype=jnp.int32)
    one_hot_input_ids = jax.nn.one_hot(input_ids, VOCAB, dtype=jnp.float32)
    inputs = {"input_ids": input_ids, "attention_mask": attention_mask}

    sentence_embedding = gradient_sentence_transformer_forward(
        params, inputs, one_hot_input_ids, pooling=True)
    sentence_embedding = jax.block_until_ready(sentence_embedding)
    assert sentence_embedding.shape == (B, HIDDEN)
    assert bool(jnp.all(jnp.isfinite(sentence_embedding)))
    print("KERNEL_OK")
</pallas_src>

<mosaic_0001>
module attributes {stable_mosaic.version = 11 : i64} {
  func.func @_fused_encoder_kernel(%arg0: memref<16x256xbf16, #tpu.memory_space<vmem>>, %arg1: memref<16x128xf32, #tpu.memory_space<vmem>>, %arg2: memref<2x1x8xf32, #tpu.memory_space<vmem>>, %arg3: memref<16x1xf32, #tpu.memory_space<vmem>>, %arg4: memref<256x128xbf16, #tpu.memory_space<vmem>>, %arg5: memref<1x128xf32, #tpu.memory_space<vmem>>, %arg6: memref<1x128xf32, #tpu.memory_space<vmem>>, %arg7: memref<2x128x384xbf16, #tpu.memory_space<vmem>>, %arg8: memref<2x1x384xf32, #tpu.memory_space<vmem>>, %arg9: memref<2x128x128xbf16, #tpu.memory_space<vmem>>, %arg10: memref<2x1x128xf32, #tpu.memory_space<vmem>>, %arg11: memref<2x1x128xf32, #tpu.memory_space<vmem>>, %arg12: memref<2x1x128xf32, #tpu.memory_space<vmem>>, %arg13: memref<2x128x256xbf16, #tpu.memory_space<vmem>>, %arg14: memref<2x1x256xf32, #tpu.memory_space<vmem>>, %arg15: memref<2x256x128xbf16, #tpu.memory_space<vmem>>, %arg16: memref<2x1x128xf32, #tpu.memory_space<vmem>>, %arg17: memref<2x1x128xf32, #tpu.memory_space<vmem>>, %arg18: memref<2x1x128xf32, #tpu.memory_space<vmem>>, %arg19: memref<16x128xf32, #tpu.memory_space<vmem>>, %arg20: memref<2x128xf32, #tpu.memory_space<vmem>>) attributes {dimension_semantics = [], scalar_prefetch = 0 : i64, scratch_operands = 0 : i64, tpu.core_type = #tpu.core_type<tc>} {
    %c0 = arith.constant 0 : index
    %c0_0 = arith.constant 0 : index
    %0 = vector.load %arg0[%c0, %c0_0] : memref<16x256xbf16, #tpu.memory_space<vmem>>, vector<16x256xbf16>
    %c0_1 = arith.constant 0 : index
    %c0_2 = arith.constant 0 : index
    %1 = vector.load %arg4[%c0_1, %c0_2] : memref<256x128xbf16, #tpu.memory_space<vmem>>, vector<256x128xbf16>
    %cst = arith.constant dense<0.000000e+00> : vector<16x128xf32>
    %2 = tpu.matmul %0, %1, %cst {dimension_numbers = #tpu.dot_dimension_numbers<[1], [0], [0], [1], [0, 0, 1, 1], [], []>} : vector<16x256xbf16>, vector<256x128xbf16>, vector<16x128xf32> -> vector<16x128xf32>
    %c0_3 = arith.constant 0 : index
    %c0_4 = arith.constant 0 : index
    %3 = vector.load %arg1[%c0_3, %c0_4] : memref<16x128xf32, #tpu.memory_space<vmem>>, vector<16x128xf32>
    %4 = arith.addf %2, %3 : vector<16x128xf32>
    %c0_5 = arith.constant 0 : index
    %c0_6 = arith.constant 0 : index
    %5 = vector.load %arg5[%c0_5, %c0_6] : memref<1x128xf32, #tpu.memory_space<vmem>>, vector<1x128xf32>
    %c0_7 = arith.constant 0 : index
    %c0_8 = arith.constant 0 : index
    %6 = vector.load %arg6[%c0_7, %c0_8] : memref<1x128xf32, #tpu.memory_space<vmem>>, vector<1x128xf32>
    %cst_9 = arith.constant dense<0.000000e+00> : vector<16xf32>
    %7 = vector.multi_reduction <add>, %4, %cst_9 [1] : vector<16x128xf32> to vector<16xf32>
    %8 = vector.shape_cast %7 : vector<16xf32> to vector<16x1xf32>
    %cst_10 = arith.constant 1.280000e+02 : f32
    %9 = vector.broadcast %cst_10 : f32 to vector<16x1xf32>
    %10 = arith.divf %8, %9 : vector<16x1xf32>
    %11 = vector.broadcast %10 : vector<16x1xf32> to vector<16x128xf32>
    %12 = arith.subf %4, %11 : vector<16x128xf32>
    %13 = arith.mulf %12, %12 : vector<16x128xf32>
    %cst_11 = arith.constant dense<0.000000e+00> : vector<16xf32>
    %14 = vector.multi_reduction <add>, %13, %cst_11 [1] : vector<16x128xf32> to vector<16xf32>
    %15 = vector.shape_cast %14 : vector<16xf32> to vector<16x1xf32>
    %cst_12 = arith.constant 1.280000e+02 : f32
    %16 = vector.broadcast %cst_12 : f32 to vector<16x1xf32>
    %17 = arith.divf %15, %16 : vector<16x1xf32>
    %18 = vector.broadcast %10 : vector<16x1xf32> to vector<16x128xf32>
    %19 = arith.subf %4, %18 : vector<16x128xf32>
    %cst_13 = arith.constant 9.99999974E-6 : f32
    %20 = vector.broadcast %cst_13 : f32 to vector<16x1xf32>
    %21 = arith.addf %17, %20 : vector<16x1xf32>
    %22 = math.rsqrt %21 : vector<16x1xf32>
    %23 = vector.broadcast %22 : vector<16x1xf32> to vector<16x128xf32>
    %24 = arith.mulf %19, %23 : vector<16x128xf32>
    %25 = vector.broadcast %5 : vector<1x128xf32> to vector<16x128xf32>
    %26 = arith.mulf %24, %25 : vector<16x128xf32>
    %27 = vector.broadcast %6 : vector<1x128xf32> to vector<16x128xf32>
    %28 = arith.addf %26, %27 : vector<16x128xf32>
    %c0_14 = arith.constant 0 : index
    %c0_15 = arith.constant 0 : index
    %c0_16 = arith.constant 0 : index
    %29 = vector.load %arg7[%c0_14, %c0_15, %c0_16] : memref<2x128x384xbf16, #tpu.memory_space<vmem>>, vector<1x128x384xbf16>
    %30 = vector.shape_cast %29 : vector<1x128x384xbf16> to vector<128x384xbf16>
    %c0_17 = arith.constant 0 : index
    %c0_18 = arith.constant 0 : index
    %c0_19 = arith.constant 0 : index
    %31 = vector.load %arg8[%c0_17, %c0_18, %c0_19] : memref<2x1x384xf32, #tpu.memory_space<vmem>>, vector<1x1x384xf32>
    %32 = vector.shape_cast %31 : vector<1x1x384xf32> to vector<1x384xf32>
    %33 = arith.truncf %28 : vector<16x128xf32> to vector<16x128xbf16>
    %cst_20 = arith.constant dense<0.000000e+00> : vector<16x384xf32>
    %34 = tpu.matmul %33, %30, %cst_20 {dimension_numbers = #tpu.dot_dimension_numbers<[1], [0], [0], [1], [0, 0, 1, 1], [], []>} : vector<16x128xbf16>, vector<128x384xbf16>, vector<16x384xf32> -> vector<16x384xf32>
    %35 = vector.broadcast %32 : vector<1x384xf32> to vector<16x384xf32>
    %36 = arith.addf %34, %35 : vector<16x384xf32>
    %c0_21 = arith.constant 0 : index
    %c0_22 = arith.constant 0 : index
    %c0_23 = arith.constant 0 : index
    %37 = vector.load %arg2[%c0_21, %c0_22, %c0_23] : memref<2x1x8xf32, #tpu.memory_space<vmem>>, vector<1x1x8xf32>
    %38 = vector.shape_cast %37 : vector<1x1x8xf32> to vector<1x8xf32>
    %cst_24 = arith.constant 1.000000e+00 : f32
    %39 = vector.broadcast %cst_24 : f32 to vector<1x8xf32>
    %40 = arith.subf %39, %38 : vector<1x8xf32>
    %cst_25 = arith.constant -1.000000e+09 : f32
    %41 = vector.broadcast %cst_25 : f32 to vector<1x8xf32>
    %42 = arith.mulf %40, %41 : vector<1x8xf32>
    %43 = vector.extract_strided_slice %36 {offsets = [0, 0], sizes = [8, 32], strides = [1, 1]} : vector<16x384xf32> to vector<8x32xf32>
    %44 = vector.extract_strided_slice %36 {offsets = [0, 128], sizes = [8, 32], strides = [1, 1]} : vector<16x384xf32> to vector<8x32xf32>
    %45 = vector.extract_strided_slice %36 {offsets = [0, 256], sizes = [8, 32], strides = [1, 1]} : vector<16x384xf32> to vector<8x32xf32>
    %cst_26 = arith.constant dense<0.000000e+00> : vector<8x8xf32>
    %46 = tpu.matmul %43, %44, %cst_26 {dimension_numbers = #tpu.dot_dimension_numbers<[1], [1], [0], [0], [0, 0, 1, 0], [], []>} : vector<8x32xf32>, vector<8x32xf32>, vector<8x8xf32> -> vector<8x8xf32>
    %cst_27 = arith.constant 0.176776692 : f32
    %47 = vector.broadcast %cst_27 : f32 to vector<8x8xf32>
    %48 = arith.mulf %46, %47 : vector<8x8xf32>
    %49 = vector.broadcast %42 : vector<1x8xf32> to vector<8x8xf32>
    %50 = arith.addf %48, %49 : vector<8x8xf32>
    %cst_28 = arith.constant dense<0xFF800000> : vector<8xf32>
    %51 = vector.multi_reduction <maximumf>, %50, %cst_28 [1] : vector<8x8xf32> to vector<8xf32>
    %52 = vector.shape_cast %51 : vector<8xf32> to vector<8x1xf32>
    %53 = vector.broadcast %52 : vector<8x1xf32> to vector<8x8xf32>
    %54 = arith.subf %50, %53 : vector<8x8xf32>
    %55 = math.exp %54 : vector<8x8xf32>
    %cst_29 = arith.constant dense<0.000000e+00> : vector<8xf32>
    %56 = vector.multi_reduction <add>, %55, %cst_29 [1] : vector<8x8xf32> to vector<8xf32>
    %57 = vector.shape_cast %56 : vector<8xf32> to vector<8x1xf32>
    %58 = tpu.reciprocal %57 {approx = true} : vector<8x1xf32> -> vector<8x1xf32>
    %59 = vector.broadcast %58 : vector<8x1xf32> to vector<8x8xf32>
    %60 = arith.mulf %55, %59 : vector<8x8xf32>
    %cst_30 = arith.constant dense<0.000000e+00> : vector<8x32xf32>
    %61 = tpu.matmul %60, %45, %cst_30 {dimension_numbers = #tpu.dot_dimension_numbers<[1], [0], [0], [1], [0, 0, 1, 1], [], []>} : vector<8x8xf32>, vector<8x32xf32>, vector<8x32xf32> -> vector<8x32xf32>
    %62 = vector.extract_strided_slice %36 {offsets = [0, 32], sizes = [8, 32], strides = [1, 1]} : vector<16x384xf32> to vector<8x32xf32>
    %63 = vector.extract_strided_slice %36 {offsets = [0, 160], sizes = [8, 32], strides = [1, 1]} : vector<16x384xf32> to vector<8x32xf32>
    %64 = vector.extract_strided_slice %36 {offsets = [0, 288], sizes = [8, 32], strides = [1, 1]} : vector<16x384xf32> to vector<8x32xf32>
    %cst_31 = arith.constant dense<0.000000e+00> : vector<8x8xf32>
    %65 = tpu.matmul %62, %63, %cst_31 {dimension_numbers = #tpu.dot_dimension_numbers<[1], [1], [0], [0], [0, 0, 1, 0], [], []>} : vector<8x32xf32>, vector<8x32xf32>, vector<8x8xf32> -> vector<8x8xf32>
    %cst_32 = arith.constant 0.176776692 : f32
    %66 = vector.broadcast %cst_32 : f32 to vector<8x8xf32>
    %67 = arith.mulf %65, %66 : vector<8x8xf32>
    %68 = vector.broadcast %42 : vector<1x8xf32> to vector<8x8xf32>
    %69 = arith.addf %67, %68 : vector<8x8xf32>
    %cst_33 = arith.constant dense<0xFF800000> : vector<8xf32>
    %70 = vector.multi_reduction <maximumf>, %69, %cst_33 [1] : vector<8x8xf32> to vector<8xf32>
    %71 = vector.shape_cast %70 : vector<8xf32> to vector<8x1xf32>
    %72 = vector.broadcast %71 : vector<8x1xf32> to vector<8x8xf32>
    %73 = arith.subf %69, %72 : vector<8x8xf32>
    %74 = math.exp %73 : vector<8x8xf32>
    %cst_34 = arith.constant dense<0.000000e+00> : vector<8xf32>
    %75 = vector.multi_reduction <add>, %74, %cst_34 [1] : vector<8x8xf32> to vector<8xf32>
    %76 = vector.shape_cast %75 : vector<8xf32> to vector<8x1xf32>
    %77 = tpu.reciprocal %76 {approx = true} : vector<8x1xf32> -> vector<8x1xf32>
    %78 = vector.broadcast %77 : vector<8x1xf32> to vector<8x8xf32>
    %79 = arith.mulf %74, %78 : vector<8x8xf32>
    %cst_35 = arith.constant dense<0.000000e+00> : vector<8x32xf32>
    %80 = tpu.matmul %79, %64, %cst_35 {dimension_numbers = #tpu.dot_dimension_numbers<[1], [0], [0], [1], [0, 0, 1, 1], [], []>} : vector<8x8xf32>, vector<8x32xf32>, vector<8x32xf32> -> vector<8x32xf32>
    %81 = vector.extract_strided_slice %36 {offsets = [0, 64], sizes = [8, 32], strides = [1, 1]} : vector<16x384xf32> to vector<8x32xf32>
    %82 = vector.extract_strided_slice %36 {offsets = [0, 192], sizes = [8, 32], strides = [1, 1]} : vector<16x384xf32> to vector<8x32xf32>
    %83 = vector.extract_strided_slice %36 {offsets = [0, 320], sizes = [8, 32], strides = [1, 1]} : vector<16x384xf32> to vector<8x32xf32>
    %cst_36 = arith.constant dense<0.000000e+00> : vector<8x8xf32>
    %84 = tpu.matmul %81, %82, %cst_36 {dimension_numbers = #tpu.dot_dimension_numbers<[1], [1], [0], [0], [0, 0, 1, 0], [], []>} : vector<8x32xf32>, vector<8x32xf32>, vector<8x8xf32> -> vector<8x8xf32>
    %cst_37 = arith.constant 0.176776692 : f32
    %85 = vector.broadcast %cst_37 : f32 to vector<8x8xf32>
    %86 = arith.mulf %84, %85 : vector<8x8xf32>
    %87 = vector.broadcast %42 : vector<1x8xf32> to vector<8x8xf32>
    %88 = arith.addf %86, %87 : vector<8x8xf32>
    %cst_38 = arith.constant dense<0xFF800000> : vector<8xf32>
    %89 = vector.multi_reduction <maximumf>, %88, %cst_38 [1] : vector<8x8xf32> to vector<8xf32>
    %90 = vector.shape_cast %89 : vector<8xf32> to vector<8x1xf32>
    %91 = vector.broadcast %90 : vector<8x1xf32> to vector<8x8xf32>
    %92 = arith.subf %88, %91 : vector<8x8xf32>
    %93 = math.exp %92 : vector<8x8xf32>
    %cst_39 = arith.constant dense<0.000000e+00> : vector<8xf32>
    %94 = vector.multi_reduction <add>, %93, %cst_39 [1] : vector<8x8xf32> to vector<8xf32>
    %95 = vector.shape_cast %94 : vector<8xf32> to vector<8x1xf32>
    %96 = tpu.reciprocal %95 {approx = true} : vector<8x1xf32> -> vector<8x1xf32>
    %97 = vector.broadcast %96 : vector<8x1xf32> to vector<8x8xf32>
    %98 = arith.mulf %93, %97 : vector<8x8xf32>
    %cst_40 = arith.constant dense<0.000000e+00> : vector<8x32xf32>
    %99 = tpu.matmul %98, %83, %cst_40 {dimension_numbers = #tpu.dot_dimension_numbers<[1], [0], [0], [1], [0, 0, 1, 1], [], []>} : vector<8x8xf32>, vector<8x32xf32>, vector<8x32xf32> -> vector<8x32xf32>
    %100 = vector.extract_strided_slice %36 {offsets = [0, 96], sizes = [8, 32], strides = [1, 1]} : vector<16x384xf32> to vector<8x32xf32>
    %101 = vector.extract_strided_slice %36 {offsets = [0, 224], sizes = [8, 32], strides = [1, 1]} : vector<16x384xf32> to vector<8x32xf32>
    %102 = vector.extract_strided_slice %36 {offsets = [0, 352], sizes = [8, 32], strides = [1, 1]} : vector<16x384xf32> to vector<8x32xf32>
    %cst_41 = arith.constant dense<0.000000e+00> : vector<8x8xf32>
    %103 = tpu.matmul %100, %101, %cst_41 {dimension_numbers = #tpu.dot_dimension_numbers<[1], [1], [0], [0], [0, 0, 1, 0], [], []>} : vector<8x32xf32>, vector<8x32xf32>, vector<8x8xf32> -> vector<8x8xf32>
    %cst_42 = arith.constant 0.176776692 : f32
    %104 = vector.broadcast %cst_42 : f32 to vector<8x8xf32>
    %105 = arith.mulf %103, %104 : vector<8x8xf32>
    %106 = vector.broadcast %42 : vector<1x8xf32> to vector<8x8xf32>
    %107 = arith.addf %105, %106 : vector<8x8xf32>
    %cst_43 = arith.constant dense<0xFF800000> : vector<8xf32>
    %108 = vector.multi_reduction <maximumf>, %107, %cst_43 [1] : vector<8x8xf32> to vector<8xf32>
    %109 = vector.shape_cast %108 : vector<8xf32> to vector<8x1xf32>
    %110 = vector.broadcast %109 : vector<8x1xf32> to vector<8x8xf32>
    %111 = arith.subf %107, %110 : vector<8x8xf32>
    %112 = math.exp %111 : vector<8x8xf32>
    %cst_44 = arith.constant dense<0.000000e+00> : vector<8xf32>
    %113 = vector.multi_reduction <add>, %112, %cst_44 [1] : vector<8x8xf32> to vector<8xf32>
    %114 = vector.shape_cast %113 : vector<8xf32> to vector<8x1xf32>
    %115 = tpu.reciprocal %114 {approx = true} : vector<8x1xf32> -> vector<8x1xf32>
    %116 = vector.broadcast %115 : vector<8x1xf32> to vector<8x8xf32>
    %117 = arith.mulf %112, %116 : vector<8x8xf32>
    %cst_45 = arith.constant dense<0.000000e+00> : vector<8x32xf32>
    %118 = tpu.matmul %117, %102, %cst_45 {dimension_numbers = #tpu.dot_dimension_numbers<[1], [0], [0], [1], [0, 0, 1, 1], [], []>} : vector<8x8xf32>, vector<8x32xf32>, vector<8x32xf32> -> vector<8x32xf32>
    %119 = tpu.concatenate %61, %80, %99, %118 in 1 : vector<8x32xf32>, vector<8x32xf32>, vector<8x32xf32>, vector<8x32xf32> -> vector<8x128xf32>
    %c1 = arith.constant 1 : index
    %c0_46 = arith.constant 0 : index
    %c0_47 = arith.constant 0 : index
    %120 = vector.load %arg2[%c1, %c0_46, %c0_47] : memref<2x1x8xf32, #tpu.memory_space<vmem>>, vector<1x1x8xf32>
    %121 = vector.shape_cast %120 : vector<1x1x8xf32> to vector<1x8xf32>
    %cst_48 = arith.constant 1.000000e+00 : f32
    %122 = vector.broadcast %cst_48 : f32 to vector<1x8xf32>
    %123 = arith.subf %122, %121 : vector<1x8xf32>
    %cst_49 = arith.constant -1.000000e+09 : f32
    %124 = vector.broadcast %cst_49 : f32 to vector<1x8xf32>
    %125 = arith.mulf %123, %124 : vector<1x8xf32>
    %126 = vector.extract_strided_slice %36 {offsets = [8, 0], sizes = [8, 32], strides = [1, 1]} : vector<16x384xf32> to vector<8x32xf32>
    %127 = vector.extract_strided_slice %36 {offsets = [8, 128], sizes = [8, 32], strides = [1, 1]} : vector<16x384xf32> to vector<8x32xf32>
    %128 = vector.extract_strided_slice %36 {offsets = [8, 256], sizes = [8, 32], strides = [1, 1]} : vector<16x384xf32> to vector<8x32xf32>
    %cst_50 = arith.constant dense<0.000000e+00> : vector<8x8xf32>
    %129 = tpu.matmul %126, %127, %cst_50 {dimension_numbers = #tpu.dot_dimension_numbers<[1], [1], [0], [0], [0, 0, 1, 0], [], []>} : vector<8x32xf32>, vector<8x32xf32>, vector<8x8xf32> -> vector<8x8xf32>
    %cst_51 = arith.constant 0.176776692 : f32
    %130 = vector.broadcast %cst_51 : f32 to vector<8x8xf32>
    %131 = arith.mulf %129, %130 : vector<8x8xf32>
    %132 = vector.broadcast %125 : vector<1x8xf32> to vector<8x8xf32>
    %133 = arith.addf %131, %132 : vector<8x8xf32>
    %cst_52 = arith.constant dense<0xFF800000> : vector<8xf32>
    %134 = vector.multi_reduction <maximumf>, %133, %cst_52 [1] : vector<8x8xf32> to vector<8xf32>
    %135 = vector.shape_cast %134 : vector<8xf32> to vector<8x1xf32>
    %136 = vector.broadcast %135 : vector<8x1xf32> to vector<8x8xf32>
    %137 = arith.subf %133, %136 : vector<8x8xf32>
    %138 = math.exp %137 : vector<8x8xf32>
    %cst_53 = arith.constant dense<0.000000e+00> : vector<8xf32>
    %139 = vector.multi_reduction <add>, %138, %cst_53 [1] : vector<8x8xf32> to vector<8xf32>
    %140 = vector.shape_cast %139 : vector<8xf32> to vector<8x1xf32>
    %141 = tpu.reciprocal %140 {approx = true} : vector<8x1xf32> -> vector<8x1xf32>
    %142 = vector.broadcast %141 : vector<8x1xf32> to vector<8x8xf32>
    %143 = arith.mulf %138, %142 : vector<8x8xf32>
    %cst_54 = arith.constant dense<0.000000e+00> : vector<8x32xf32>
    %144 = tpu.matmul %143, %128, %cst_54 {dimension_numbers = #tpu.dot_dimension_numbers<[1], [0], [0], [1], [0, 0, 1, 1], [], []>} : vector<8x8xf32>, vector<8x32xf32>, vector<8x32xf32> -> vector<8x32xf32>
    %145 = vector.extract_strided_slice %36 {offsets = [8, 32], sizes = [8, 32], strides = [1, 1]} : vector<16x384xf32> to vector<8x32xf32>
    %146 = vector.extract_strided_slice %36 {offsets = [8, 160], sizes = [8, 32], strides = [1, 1]} : vector<16x384xf32> to vector<8x32xf32>
    %147 = vector.extract_strided_slice %36 {offsets = [8, 288], sizes = [8, 32], strides = [1, 1]} : vector<16x384xf32> to vector<8x32xf32>
    %cst_55 = arith.constant dense<0.000000e+00> : vector<8x8xf32>
    %148 = tpu.matmul %145, %146, %cst_55 {dimension_numbers = #tpu.dot_dimension_numbers<[1], [1], [0], [0], [0, 0, 1, 0], [], []>} : vector<8x32xf32>, vector<8x32xf32>, vector<8x8xf32> -> vector<8x8xf32>
    %cst_56 = arith.constant 0.176776692 : f32
    %149 = vector.broadcast %cst_56 : f32 to vector<8x8xf32>
    %150 = arith.mulf %148, %149 : vector<8x8xf32>
    %151 = vector.broadcast %125 : vector<1x8xf32> to vector<8x8xf32>
    %152 = arith.addf %150, %151 : vector<8x8xf32>
    %cst_57 = arith.constant dense<0xFF800000> : vector<8xf32>
    %153 = vector.multi_reduction <maximumf>, %152, %cst_57 [1] : vector<8x8xf32> to vector<8xf32>
    %154 = vector.shape_cast %153 : vector<8xf32> to vector<8x1xf32>
    %155 = vector.broadcast %154 : vector<8x1xf32> to vector<8x8xf32>
    %156 = arith.subf %152, %155 : vector<8x8xf32>
    %157 = math.exp %156 : vector<8x8xf32>
    %cst_58 = arith.constant dense<0.000000e+00> : vector<8xf32>
    %158 = vector.multi_reduction <add>, %157, %cst_58 [1] : vector<8x8xf32> to vector<8xf32>
    %159 = vector.shape_cast %158 : vector<8xf32> to vector<8x1xf32>
    %160 = tpu.reciprocal %159 {approx = true} : vector<8x1xf32> -> vector<8x1xf32>
    %161 = vector.broadcast %160 : vector<8x1xf32> to vector<8x8xf32>
    %162 = arith.mulf %157, %161 : vector<8x8xf32>
    %cst_59 = arith.constant dense<0.000000e+00> : vector<8x32xf32>
    %163 = tpu.matmul %162, %147, %cst_59 {dimension_numbers = #tpu.dot_dimension_numbers<[1], [0], [0], [1], [0, 0, 1, 1], [], []>} : vector<8x8xf32>, vector<8x32xf32>, vector<8x32xf32> -> vector<8x32xf32>
    %164 = vector.extract_strided_slice %36 {offsets = [8, 64], sizes = [8, 32], strides = [1, 1]} : vector<16x384xf32> to vector<8x32xf32>
    %165 = vector.extract_strided_slice %36 {offsets = [8, 192], sizes = [8, 32], strides = [1, 1]} : vector<16x384xf32> to vector<8x32xf32>
    %166 = vector.extract_strided_slice %36 {offsets = [8, 320], sizes = [8, 32], strides = [1, 1]} : vector<16x384xf32> to vector<8x32xf32>
    %cst_60 = arith.constant dense<0.000000e+00> : vector<8x8xf32>
    %167 = tpu.matmul %164, %165, %cst_60 {dimension_numbers = #tpu.dot_dimension_numbers<[1], [1], [0], [0], [0, 0, 1, 0], [], []>} : vector<8x32xf32>, vector<8x32xf32>, vector<8x8xf32> -> vector<8x8xf32>
    %cst_61 = arith.constant 0.176776692 : f32
    %168 = vector.broadcast %cst_61 : f32 to vector<8x8xf32>
    %169 = arith.mulf %167, %168 : vector<8x8xf32>
    %170 = vector.broadcast %125 : vector<1x8xf32> to vector<8x8xf32>
    %171 = arith.addf %169, %170 : vector<8x8xf32>
    %cst_62 = arith.constant dense<0xFF800000> : vector<8xf32>
    %172 = vector.multi_reduction <maximumf>, %171, %cst_62 [1] : vector<8x8xf32> to vector<8xf32>
    %173 = vector.shape_cast %172 : vector<8xf32> to vector<8x1xf32>
    %174 = vector.broadcast %173 : vector<8x1xf32> to vector<8x8xf32>
    %175 = arith.subf %171, %174 : vector<8x8xf32>
    %176 = math.exp %175 : vector<8x8xf32>
    %cst_63 = arith.constant dense<0.000000e+00> : vector<8xf32>
    %177 = vector.multi_reduction <add>, %176, %cst_63 [1] : vector<8x8xf32> to vector<8xf32>
    %178 = vector.shape_cast %177 : vector<8xf32> to vector<8x1xf32>
    %179 = tpu.reciprocal %178 {approx = true} : vector<8x1xf32> -> vector<8x1xf32>
    %180 = vector.broadcast %179 : vector<8x1xf32> to vector<8x8xf32>
    %181 = arith.mulf %176, %180 : vector<8x8xf32>
    %cst_64 = arith.constant dense<0.000000e+00> : vector<8x32xf32>
    %182 = tpu.matmul %181, %166, %cst_64 {dimension_numbers = #tpu.dot_dimension_numbers<[1], [0], [0], [1], [0, 0, 1, 1], [], []>} : vector<8x8xf32>, vector<8x32xf32>, vector<8x32xf32> -> vector<8x32xf32>
    %183 = vector.extract_strided_slice %36 {offsets = [8, 96], sizes = [8, 32], strides = [1, 1]} : vector<16x384xf32> to vector<8x32xf32>
    %184 = vector.extract_strided_slice %36 {offsets = [8, 224], sizes = [8, 32], strides = [1, 1]} : vector<16x384xf32> to vector<8x32xf32>
    %185 = vector.extract_strided_slice %36 {offsets = [8, 352], sizes = [8, 32], strides = [1, 1]} : vector<16x384xf32> to vector<8x32xf32>
    %cst_65 = arith.constant dense<0.000000e+00> : vector<8x8xf32>
    %186 = tpu.matmul %183, %184, %cst_65 {dimension_numbers = #tpu.dot_dimension_numbers<[1], [1], [0], [0], [0, 0, 1, 0], [], []>} : vector<8x32xf32>, vector<8x32xf32>, vector<8x8xf32> -> vector<8x8xf32>
    %cst_66 = arith.constant 0.176776692 : f32
    %187 = vector.broadcast %cst_66 : f32 to vector<8x8xf32>
    %188 = arith.mulf %186, %187 : vector<8x8xf32>
    %189 = vector.broadcast %125 : vector<1x8xf32> to vector<8x8xf32>
    %190 = arith.addf %188, %189 : vector<8x8xf32>
    %cst_67 = arith.constant dense<0xFF800000> : vector<8xf32>
    %191 = vector.multi_reduction <maximumf>, %190, %cst_67 [1] : vector<8x8xf32> to vector<8xf32>
    %192 = vector.shape_cast %191 : vector<8xf32> to vector<8x1xf32>
    %193 = vector.broadcast %192 : vector<8x1xf32> to vector<8x8xf32>
    %194 = arith.subf %190, %193 : vector<8x8xf32>
    %195 = math.exp %194 : vector<8x8xf32>
    %cst_68 = arith.constant dense<0.000000e+00> : vector<8xf32>
    %196 = vector.multi_reduction <add>, %195, %cst_68 [1] : vector<8x8xf32> to vector<8xf32>
    %197 = vector.shape_cast %196 : vector<8xf32> to vector<8x1xf32>
    %198 = tpu.reciprocal %197 {approx = true} : vector<8x1xf32> -> vector<8x1xf32>
    %199 = vector.broadcast %198 : vector<8x1xf32> to vector<8x8xf32>
    %200 = arith.mulf %195, %199 : vector<8x8xf32>
    %cst_69 = arith.constant dense<0.000000e+00> : vector<8x32xf32>
    %201 = tpu.matmul %200, %185, %cst_69 {dimension_numbers = #tpu.dot_dimension_numbers<[1], [0], [0], [1], [0, 0, 1, 1], [], []>} : vector<8x8xf32>, vector<8x32xf32>, vector<8x32xf32> -> vector<8x32xf32>
    %202 = tpu.concatenate %144, %163, %182, %201 in 1 : vector<8x32xf32>, vector<8x32xf32>, vector<8x32xf32>, vector<8x32xf32> -> vector<8x128xf32>
    %203 = tpu.concatenate %119, %202 in 0 : vector<8x128xf32>, vector<8x128xf32> -> vector<16x128xf32>
    %c0_70 = arith.constant 0 : index
    %c0_71 = arith.constant 0 : index
    %c0_72 = arith.constant 0 : index
    %204 = vector.load %arg9[%c0_70, %c0_71, %c0_72] : memref<2x128x128xbf16, #tpu.memory_space<vmem>>, vector<1x128x128xbf16>
    %205 = vector.shape_cast %204 : vector<1x128x128xbf16> to vector<128x128xbf16>
    %c0_73 = arith.constant 0 : index
    %c0_74 = arith.constant 0 : index
    %c0_75 = arith.constant 0 : index
    %206 = vector.load %arg10[%c0_73, %c0_74, %c0_75] : memref<2x1x128xf32, #tpu.memory_space<vmem>>, vector<1x1x128xf32>
    %207 = vector.shape_cast %206 : vector<1x1x128xf32> to vector<1x128xf32>
    %208 = arith.truncf %203 : vector<16x128xf32> to vector<16x128xbf16>
    %cst_76 = arith.constant dense<0.000000e+00> : vector<16x128xf32>
    %209 = tpu.matmul %208, %205, %cst_76 {dimension_numbers = #tpu.dot_dimension_numbers<[1], [0], [0], [1], [0, 0, 1, 1], [], []>} : vector<16x128xbf16>, vector<128x128xbf16>, vector<16x128xf32> -> vector<16x128xf32>
    %210 = vector.broadcast %207 : vector<1x128xf32> to vector<16x128xf32>
    %211 = arith.addf %209, %210 : vector<16x128xf32>
    %212 = arith.addf %211, %28 : vector<16x128xf32>
    %c0_77 = arith.constant 0 : index
    %c0_78 = arith.constant 0 : index
    %c0_79 = arith.constant 0 : index
    %213 = vector.load %arg11[%c0_77, %c0_78, %c0_79] : memref<2x1x128xf32, #tpu.memory_space<vmem>>, vector<1x1x128xf32>
    %214 = vector.shape_cast %213 : vector<1x1x128xf32> to vector<1x128xf32>
    %c0_80 = arith.constant 0 : index
    %c0_81 = arith.constant 0 : index
    %c0_82 = arith.constant 0 : index
    %215 = vector.load %arg12[%c0_80, %c0_81, %c0_82] : memref<2x1x128xf32, #tpu.memory_space<vmem>>, vector<1x1x128xf32>
    %216 = vector.shape_cast %215 : vector<1x1x128xf32> to vector<1x128xf32>
    %cst_83 = arith.constant dense<0.000000e+00> : vector<16xf32>
    %217 = vector.multi_reduction <add>, %212, %cst_83 [1] : vector<16x128xf32> to vector<16xf32>
    %218 = vector.shape_cast %217 : vector<16xf32> to vector<16x1xf32>
    %cst_84 = arith.constant 1.280000e+02 : f32
    %219 = vector.broadcast %cst_84 : f32 to vector<16x1xf32>
    %220 = arith.divf %218, %219 : vector<16x1xf32>
    %221 = vector.broadcast %220 : vector<16x1xf32> to vector<16x128xf32>
    %222 = arith.subf %212, %221 : vector<16x128xf32>
    %223 = arith.mulf %222, %222 : vector<16x128xf32>
    %cst_85 = arith.constant dense<0.000000e+00> : vector<16xf32>
    %224 = vector.multi_reduction <add>, %223, %cst_85 [1] : vector<16x128xf32> to vector<16xf32>
    %225 = vector.shape_cast %224 : vector<16xf32> to vector<16x1xf32>
    %cst_86 = arith.constant 1.280000e+02 : f32
    %226 = vector.broadcast %cst_86 : f32 to vector<16x1xf32>
    %227 = arith.divf %225, %226 : vector<16x1xf32>
    %228 = vector.broadcast %220 : vector<16x1xf32> to vector<16x128xf32>
    %229 = arith.subf %212, %228 : vector<16x128xf32>
    %cst_87 = arith.constant 9.99999974E-6 : f32
    %230 = vector.broadcast %cst_87 : f32 to vector<16x1xf32>
    %231 = arith.addf %227, %230 : vector<16x1xf32>
    %232 = math.rsqrt %231 : vector<16x1xf32>
    %233 = vector.broadcast %232 : vector<16x1xf32> to vector<16x128xf32>
    %234 = arith.mulf %229, %233 : vector<16x128xf32>
    %235 = vector.broadcast %214 : vector<1x128xf32> to vector<16x128xf32>
    %236 = arith.mulf %234, %235 : vector<16x128xf32>
    %237 = vector.broadcast %216 : vector<1x128xf32> to vector<16x128xf32>
    %238 = arith.addf %236, %237 : vector<16x128xf32>
    %c0_88 = arith.constant 0 : index
    %c0_89 = arith.constant 0 : index
    %c0_90 = arith.constant 0 : index
    %239 = vector.load %arg13[%c0_88, %c0_89, %c0_90] : memref<2x128x256xbf16, #tpu.memory_space<vmem>>, vector<1x128x256xbf16>
    %240 = vector.shape_cast %239 : vector<1x128x256xbf16> to vector<128x256xbf16>
    %c0_91 = arith.constant 0 : index
    %c0_92 = arith.constant 0 : index
    %c0_93 = arith.constant 0 : index
    %241 = vector.load %arg14[%c0_91, %c0_92, %c0_93] : memref<2x1x256xf32, #tpu.memory_space<vmem>>, vector<1x1x256xf32>
    %242 = vector.shape_cast %241 : vector<1x1x256xf32> to vector<1x256xf32>
    %243 = arith.truncf %238 : vector<16x128xf32> to vector<16x128xbf16>
    %cst_94 = arith.constant dense<0.000000e+00> : vector<16x256xf32>
    %244 = tpu.matmul %243, %240, %cst_94 {dimension_numbers = #tpu.dot_dimension_numbers<[1], [0], [0], [1], [0, 0, 1, 1], [], []>} : vector<16x128xbf16>, vector<128x256xbf16>, vector<16x256xf32> -> vector<16x256xf32>
    %245 = vector.broadcast %242 : vector<1x256xf32> to vector<16x256xf32>
    %246 = arith.addf %244, %245 : vector<16x256xf32>
    %247 = arith.mulf %246, %246 : vector<16x256xf32>
    %248 = arith.mulf %246, %247 : vector<16x256xf32>
    %cst_95 = arith.constant 4.471500e-02 : f32
    %249 = vector.broadcast %cst_95 : f32 to vector<16x256xf32>
    %250 = arith.mulf %249, %248 : vector<16x256xf32>
    %251 = arith.addf %246, %250 : vector<16x256xf32>
    %cst_96 = arith.constant 0.797884583 : f32
    %252 = vector.broadcast %cst_96 : f32 to vector<16x256xf32>
    %253 = arith.mulf %252, %251 : vector<16x256xf32>
    %254 = math.tanh %253 : vector<16x256xf32>
    %cst_97 = arith.constant 1.000000e+00 : f32
    %255 = vector.broadcast %cst_97 : f32 to vector<16x256xf32>
    %256 = arith.addf %255, %254 : vector<16x256xf32>
    %cst_98 = arith.constant 5.000000e-01 : f32
    %257 = vector.broadcast %cst_98 : f32 to vector<16x256xf32>
    %258 = arith.mulf %257, %256 : vector<16x256xf32>
    %259 = arith.mulf %246, %258 : vector<16x256xf32>
    %c0_99 = arith.constant 0 : index
    %c0_100 = arith.constant 0 : index
    %c0_101 = arith.constant 0 : index
    %260 = vector.load %arg15[%c0_99, %c0_100, %c0_101] : memref<2x256x128xbf16, #tpu.memory_space<vmem>>, vector<1x256x128xbf16>
    %261 = vector.shape_cast %260 : vector<1x256x128xbf16> to vector<256x128xbf16>
    %c0_102 = arith.constant 0 : index
    %c0_103 = arith.constant 0 : index
    %c0_104 = arith.constant 0 : index
    %262 = vector.load %arg16[%c0_102, %c0_103, %c0_104] : memref<2x1x128xf32, #tpu.memory_space<vmem>>, vector<1x1x128xf32>
    %263 = vector.shape_cast %262 : vector<1x1x128xf32> to vector<1x128xf32>
    %264 = arith.truncf %259 : vector<16x256xf32> to vector<16x256xbf16>
    %cst_105 = arith.constant dense<0.000000e+00> : vector<16x128xf32>
    %265 = tpu.matmul %264, %261, %cst_105 {dimension_numbers = #tpu.dot_dimension_numbers<[1], [0], [0], [1], [0, 0, 1, 1], [], []>} : vector<16x256xbf16>, vector<256x128xbf16>, vector<16x128xf32> -> vector<16x128xf32>
    %266 = vector.broadcast %263 : vector<1x128xf32> to vector<16x128xf32>
    %267 = arith.addf %265, %266 : vector<16x128xf32>
    %268 = arith.addf %267, %238 : vector<16x128xf32>
    %c0_106 = arith.constant 0 : index
    %c0_107 = arith.constant 0 : index
    %c0_108 = arith.constant 0 : index
    %269 = vector.load %arg17[%c0_106, %c0_107, %c0_108] : memref<2x1x128xf32, #tpu.memory_space<vmem>>, vector<1x1x128xf32>
    %270 = vector.shape_cast %269 : vector<1x1x128xf32> to vector<1x128xf32>
    %c0_109 = arith.constant 0 : index
    %c0_110 = arith.constant 0 : index
    %c0_111 = arith.constant 0 : index
    %271 = vector.load %arg18[%c0_109, %c0_110, %c0_111] : memref<2x1x128xf32, #tpu.memory_space<vmem>>, vector<1x1x128xf32>
    %272 = vector.shape_cast %271 : vector<1x1x128xf32> to vector<1x128xf32>
    %cst_112 = arith.constant dense<0.000000e+00> : vector<16xf32>
    %273 = vector.multi_reduction <add>, %268, %cst_112 [1] : vector<16x128xf32> to vector<16xf32>
    %274 = vector.shape_cast %273 : vector<16xf32> to vector<16x1xf32>
    %cst_113 = arith.constant 1.280000e+02 : f32
    %275 = vector.broadcast %cst_113 : f32 to vector<16x1xf32>
    %276 = arith.divf %274, %275 : vector<16x1xf32>
    %277 = vector.broadcast %276 : vector<16x1xf32> to vector<16x128xf32>
    %278 = arith.subf %268, %277 : vector<16x128xf32>
    %279 = arith.mulf %278, %278 : vector<16x128xf32>
    %cst_114 = arith.constant dense<0.000000e+00> : vector<16xf32>
    %280 = vector.multi_reduction <add>, %279, %cst_114 [1] : vector<16x128xf32> to vector<16xf32>
    %281 = vector.shape_cast %280 : vector<16xf32> to vector<16x1xf32>
    %cst_115 = arith.constant 1.280000e+02 : f32
    %282 = vector.broadcast %cst_115 : f32 to vector<16x1xf32>
    %283 = arith.divf %281, %282 : vector<16x1xf32>
    %284 = vector.broadcast %276 : vector<16x1xf32> to vector<16x128xf32>
    %285 = arith.subf %268, %284 : vector<16x128xf32>
    %cst_116 = arith.constant 9.99999974E-6 : f32
    %286 = vector.broadcast %cst_116 : f32 to vector<16x1xf32>
    %287 = arith.addf %283, %286 : vector<16x1xf32>
    %288 = math.rsqrt %287 : vector<16x1xf32>
    %289 = vector.broadcast %288 : vector<16x1xf32> to vector<16x128xf32>
    %290 = arith.mulf %285, %289 : vector<16x128xf32>
    %291 = vector.broadcast %270 : vector<1x128xf32> to vector<16x128xf32>
    %292 = arith.mulf %290, %291 : vector<16x128xf32>
    %293 = vector.broadcast %272 : vector<1x128xf32> to vector<16x128xf32>
    %294 = arith.addf %292, %293 : vector<16x128xf32>
    %c1_117 = arith.constant 1 : index
    %c0_118 = arith.constant 0 : index
    %c0_119 = arith.constant 0 : index
    %295 = vector.load %arg7[%c1_117, %c0_118, %c0_119] : memref<2x128x384xbf16, #tpu.memory_space<vmem>>, vector<1x128x384xbf16>
    %296 = vector.shape_cast %295 : vector<1x128x384xbf16> to vector<128x384xbf16>
    %c1_120 = arith.constant 1 : index
    %c0_121 = arith.constant 0 : index
    %c0_122 = arith.constant 0 : index
    %297 = vector.load %arg8[%c1_120, %c0_121, %c0_122] : memref<2x1x384xf32, #tpu.memory_space<vmem>>, vector<1x1x384xf32>
    %298 = vector.shape_cast %297 : vector<1x1x384xf32> to vector<1x384xf32>
    %299 = arith.truncf %294 : vector<16x128xf32> to vector<16x128xbf16>
    %cst_123 = arith.constant dense<0.000000e+00> : vector<16x384xf32>
    %300 = tpu.matmul %299, %296, %cst_123 {dimension_numbers = #tpu.dot_dimension_numbers<[1], [0], [0], [1], [0, 0, 1, 1], [], []>} : vector<16x128xbf16>, vector<128x384xbf16>, vector<16x384xf32> -> vector<16x384xf32>
    %301 = vector.broadcast %298 : vector<1x384xf32> to vector<16x384xf32>
    %302 = arith.addf %300, %301 : vector<16x384xf32>
    %c0_124 = arith.constant 0 : index
    %c0_125 = arith.constant 0 : index
    %c0_126 = arith.constant 0 : index
    %303 = vector.load %arg2[%c0_124, %c0_125, %c0_126] : memref<2x1x8xf32, #tpu.memory_space<vmem>>, vector<1x1x8xf32>
    %304 = vector.shape_cast %303 : vector<1x1x8xf32> to vector<1x8xf32>
    %cst_127 = arith.constant 1.000000e+00 : f32
    %305 = vector.broadcast %cst_127 : f32 to vector<1x8xf32>
    %306 = arith.subf %305, %304 : vector<1x8xf32>
    %cst_128 = arith.constant -1.000000e+09 : f32
    %307 = vector.broadcast %cst_128 : f32 to vector<1x8xf32>
    %308 = arith.mulf %306, %307 : vector<1x8xf32>
    %309 = vector.extract_strided_slice %302 {offsets = [0, 0], sizes = [8, 32], strides = [1, 1]} : vector<16x384xf32> to vector<8x32xf32>
    %310 = vector.extract_strided_slice %302 {offsets = [0, 128], sizes = [8, 32], strides = [1, 1]} : vector<16x384xf32> to vector<8x32xf32>
    %311 = vector.extract_strided_slice %302 {offsets = [0, 256], sizes = [8, 32], strides = [1, 1]} : vector<16x384xf32> to vector<8x32xf32>
    %cst_129 = arith.constant dense<0.000000e+00> : vector<8x8xf32>
    %312 = tpu.matmul %309, %310, %cst_129 {dimension_numbers = #tpu.dot_dimension_numbers<[1], [1], [0], [0], [0, 0, 1, 0], [], []>} : vector<8x32xf32>, vector<8x32xf32>, vector<8x8xf32> -> vector<8x8xf32>
    %cst_130 = arith.constant 0.176776692 : f32
    %313 = vector.broadcast %cst_130 : f32 to vector<8x8xf32>
    %314 = arith.mulf %312, %313 : vector<8x8xf32>
    %315 = vector.broadcast %308 : vector<1x8xf32> to vector<8x8xf32>
    %316 = arith.addf %314, %315 : vector<8x8xf32>
    %cst_131 = arith.constant dense<0xFF800000> : vector<8xf32>
    %317 = vector.multi_reduction <maximumf>, %316, %cst_131 [1] : vector<8x8xf32> to vector<8xf32>
    %318 = vector.shape_cast %317 : vector<8xf32> to vector<8x1xf32>
    %319 = vector.broadcast %318 : vector<8x1xf32> to vector<8x8xf32>
    %320 = arith.subf %316, %319 : vector<8x8xf32>
    %321 = math.exp %320 : vector<8x8xf32>
    %cst_132 = arith.constant dense<0.000000e+00> : vector<8xf32>
    %322 = vector.multi_reduction <add>, %321, %cst_132 [1] : vector<8x8xf32> to vector<8xf32>
    %323 = vector.shape_cast %322 : vector<8xf32> to vector<8x1xf32>
    %324 = tpu.reciprocal %323 {approx = true} : vector<8x1xf32> -> vector<8x1xf32>
    %325 = vector.broadcast %324 : vector<8x1xf32> to vector<8x8xf32>
    %326 = arith.mulf %321, %325 : vector<8x8xf32>
    %cst_133 = arith.constant dense<0.000000e+00> : vector<8x32xf32>
    %327 = tpu.matmul %326, %311, %cst_133 {dimension_numbers = #tpu.dot_dimension_numbers<[1], [0], [0], [1], [0, 0, 1, 1], [], []>} : vector<8x8xf32>, vector<8x32xf32>, vector<8x32xf32> -> vector<8x32xf32>
    %328 = vector.extract_strided_slice %302 {offsets = [0, 32], sizes = [8, 32], strides = [1, 1]} : vector<16x384xf32> to vector<8x32xf32>
    %329 = vector.extract_strided_slice %302 {offsets = [0, 160], sizes = [8, 32], strides = [1, 1]} : vector<16x384xf32> to vector<8x32xf32>
    %330 = vector.extract_strided_slice %302 {offsets = [0, 288], sizes = [8, 32], strides = [1, 1]} : vector<16x384xf32> to vector<8x32xf32>
    %cst_134 = arith.constant dense<0.000000e+00> : vector<8x8xf32>
    %331 = tpu.matmul %328, %329, %cst_134 {dimension_numbers = #tpu.dot_dimension_numbers<[1], [1], [0], [0], [0, 0, 1, 0], [], []>} : vector<8x32xf32>, vector<8x32xf32>, vector<8x8xf32> -> vector<8x8xf32>
    %cst_135 = arith.constant 0.176776692 : f32
    %332 = vector.broadcast %cst_135 : f32 to vector<8x8xf32>
    %333 = arith.mulf %331, %332 : vector<8x8xf32>
    %334 = vector.broadcast %308 : vector<1x8xf32> to vector<8x8xf32>
    %335 = arith.addf %333, %334 : vector<8x8xf32>
    %cst_136 = arith.constant dense<0xFF800000> : vector<8xf32>
    %336 = vector.multi_reduction <maximumf>, %335, %cst_136 [1] : vector<8x8xf32> to vector<8xf32>
    %337 = vector.shape_cast %336 : vector<8xf32> to vector<8x1xf32>
    %338 = vector.broadcast %337 : vector<8x1xf32> to vector<8x8xf32>
    %339 = arith.subf %335, %338 : vector<8x8xf32>
    %340 = math.exp %339 : vector<8x8xf32>
    %cst_137 = arith.constant dense<0.000000e+00> : vector<8xf32>
    %341 = vector.multi_reduction <add>, %340, %cst_137 [1] : vector<8x8xf32> to vector<8xf32>
    %342 = vector.shape_cast %341 : vector<8xf32> to vector<8x1xf32>
    %343 = tpu.reciprocal %342 {approx = true} : vector<8x1xf32> -> vector<8x1xf32>
    %344 = vector.broadcast %343 : vector<8x1xf32> to vector<8x8xf32>
    %345 = arith.mulf %340, %344 : vector<8x8xf32>
    %cst_138 = arith.constant dense<0.000000e+00> : vector<8x32xf32>
    %346 = tpu.matmul %345, %330, %cst_138 {dimension_numbers = #tpu.dot_dimension_numbers<[1], [0], [0], [1], [0, 0, 1, 1], [], []>} : vector<8x8xf32>, vector<8x32xf32>, vector<8x32xf32> -> vector<8x32xf32>
    %347 = vector.extract_strided_slice %302 {offsets = [0, 64], sizes = [8, 32], strides = [1, 1]} : vector<16x384xf32> to vector<8x32xf32>
    %348 = vector.extract_strided_slice %302 {offsets = [0, 192], sizes = [8, 32], strides = [1, 1]} : vector<16x384xf32> to vector<8x32xf32>
    %349 = vector.extract_strided_slice %302 {offsets = [0, 320], sizes = [8, 32], strides = [1, 1]} : vector<16x384xf32> to vector<8x32xf32>
    %cst_139 = arith.constant dense<0.000000e+00> : vector<8x8xf32>
    %350 = tpu.matmul %347, %348, %cst_139 {dimension_numbers = #tpu.dot_dimension_numbers<[1], [1], [0], [0], [0, 0, 1, 0], [], []>} : vector<8x32xf32>, vector<8x32xf32>, vector<8x8xf32> -> vector<8x8xf32>
    %cst_140 = arith.constant 0.176776692 : f32
    %351 = vector.broadcast %cst_140 : f32 to vector<8x8xf32>
    %352 = arith.mulf %350, %351 : vector<8x8xf32>
    %353 = vector.broadcast %308 : vector<1x8xf32> to vector<8x8xf32>
    %354 = arith.addf %352, %353 : vector<8x8xf32>
    %cst_141 = arith.constant dense<0xFF800000> : vector<8xf32>
    %355 = vector.multi_reduction <maximumf>, %354, %cst_141 [1] : vector<8x8xf32> to vector<8xf32>
    %356 = vector.shape_cast %355 : vector<8xf32> to vector<8x1xf32>
    %357 = vector.broadcast %356 : vector<8x1xf32> to vector<8x8xf32>
    %358 = arith.subf %354, %357 : vector<8x8xf32>
    %359 = math.exp %358 : vector<8x8xf32>
    %cst_142 = arith.constant dense<0.000000e+00> : vector<8xf32>
    %360 = vector.multi_reduction <add>, %359, %cst_142 [1] : vector<8x8xf32> to vector<8xf32>
    %361 = vector.shape_cast %360 : vector<8xf32> to vector<8x1xf32>
    %362 = tpu.reciprocal %361 {approx = true} : vector<8x1xf32> -> vector<8x1xf32>
    %363 = vector.broadcast %362 : vector<8x1xf32> to vector<8x8xf32>
    %364 = arith.mulf %359, %363 : vector<8x8xf32>
    %cst_143 = arith.constant dense<0.000000e+00> : vector<8x32xf32>
    %365 = tpu.matmul %364, %349, %cst_143 {dimension_numbers = #tpu.dot_dimension_numbers<[1], [0], [0], [1], [0, 0, 1, 1], [], []>} : vector<8x8xf32>, vector<8x32xf32>, vector<8x32xf32> -> vector<8x32xf32>
    %366 = vector.extract_strided_slice %302 {offsets = [0, 96], sizes = [8, 32], strides = [1, 1]} : vector<16x384xf32> to vector<8x32xf32>
    %367 = vector.extract_strided_slice %302 {offsets = [0, 224], sizes = [8, 32], strides = [1, 1]} : vector<16x384xf32> to vector<8x32xf32>
    %368 = vector.extract_strided_slice %302 {offsets = [0, 352], sizes = [8, 32], strides = [1, 1]} : vector<16x384xf32> to vector<8x32xf32>
    %cst_144 = arith.constant dense<0.000000e+00> : vector<8x8xf32>
    %369 = tpu.matmul %366, %367, %cst_144 {dimension_numbers = #tpu.dot_dimension_numbers<[1], [1], [0], [0], [0, 0, 1, 0], [], []>} : vector<8x32xf32>, vector<8x32xf32>, vector<8x8xf32> -> vector<8x8xf32>
    %cst_145 = arith.constant 0.176776692 : f32
    %370 = vector.broadcast %cst_145 : f32 to vector<8x8xf32>
    %371 = arith.mulf %369, %370 : vector<8x8xf32>
    %372 = vector.broadcast %308 : vector<1x8xf32> to vector<8x8xf32>
    %373 = arith.addf %371, %372 : vector<8x8xf32>
    %cst_146 = arith.constant dense<0xFF800000> : vector<8xf32>
    %374 = vector.multi_reduction <maximumf>, %373, %cst_146 [1] : vector<8x8xf32> to vector<8xf32>
    %375 = vector.shape_cast %374 : vector<8xf32> to vector<8x1xf32>
    %376 = vector.broadcast %375 : vector<8x1xf32> to vector<8x8xf32>
    %377 = arith.subf %373, %376 : vector<8x8xf32>
    %378 = math.exp %377 : vector<8x8xf32>
    %cst_147 = arith.constant dense<0.000000e+00> : vector<8xf32>
    %379 = vector.multi_reduction <add>, %378, %cst_147 [1] : vector<8x8xf32> to vector<8xf32>
    %380 = vector.shape_cast %379 : vector<8xf32> to vector<8x1xf32>
    %381 = tpu.reciprocal %380 {approx = true} : vector<8x1xf32> -> vector<8x1xf32>
    %382 = vector.broadcast %381 : vector<8x1xf32> to vector<8x8xf32>
    %383 = arith.mulf %378, %382 : vector<8x8xf32>
    %cst_148 = arith.constant dense<0.000000e+00> : vector<8x32xf32>
    %384 = tpu.matmul %383, %368, %cst_148 {dimension_numbers = #tpu.dot_dimension_numbers<[1], [0], [0], [1], [0, 0, 1, 1], [], []>} : vector<8x8xf32>, vector<8x32xf32>, vector<8x32xf32> -> vector<8x32xf32>
    %385 = tpu.concatenate %327, %346, %365, %384 in 1 : vector<8x32xf32>, vector<8x32xf32>, vector<8x32xf32>, vector<8x32xf32> -> vector<8x128xf32>
    %c1_149 = arith.constant 1 : index
    %c0_150 = arith.constant 0 : index
    %c0_151 = arith.constant 0 : index
    %386 = vector.load %arg2[%c1_149, %c0_150, %c0_151] : memref<2x1x8xf32, #tpu.memory_space<vmem>>, vector<1x1x8xf32>
    %387 = vector.shape_cast %386 : vector<1x1x8xf32> to vector<1x8xf32>
    %cst_152 = arith.constant 1.000000e+00 : f32
    %388 = vector.broadcast %cst_152 : f32 to vector<1x8xf32>
    %389 = arith.subf %388, %387 : vector<1x8xf32>
    %cst_153 = arith.constant -1.000000e+09 : f32
    %390 = vector.broadcast %cst_153 : f32 to vector<1x8xf32>
    %391 = arith.mulf %389, %390 : vector<1x8xf32>
    %392 = vector.extract_strided_slice %302 {offsets = [8, 0], sizes = [8, 32], strides = [1, 1]} : vector<16x384xf32> to vector<8x32xf32>
    %393 = vector.extract_strided_slice %302 {offsets = [8, 128], sizes = [8, 32], strides = [1, 1]} : vector<16x384xf32> to vector<8x32xf32>
    %394 = vector.extract_strided_slice %302 {offsets = [8, 256], sizes = [8, 32], strides = [1, 1]} : vector<16x384xf32> to vector<8x32xf32>
    %cst_154 = arith.constant dense<0.000000e+00> : vector<8x8xf32>
    %395 = tpu.matmul %392, %393, %cst_154 {dimension_numbers = #tpu.dot_dimension_numbers<[1], [1], [0], [0], [0, 0, 1, 0], [], []>} : vector<8x32xf32>, vector<8x32xf32>, vector<8x8xf32> -> vector<8x8xf32>
    %cst_155 = arith.constant 0.176776692 : f32
    %396 = vector.broadcast %cst_155 : f32 to vector<8x8xf32>
    %397 = arith.mulf %395, %396 : vector<8x8xf32>
    %398 = vector.broadcast %391 : vector<1x8xf32> to vector<8x8xf32>
    %399 = arith.addf %397, %398 : vector<8x8xf32>
    %cst_156 = arith.constant dense<0xFF800000> : vector<8xf32>
    %400 = vector.multi_reduction <maximumf>, %399, %cst_156 [1] : vector<8x8xf32> to vector<8xf32>
    %401 = vector.shape_cast %400 : vector<8xf32> to vector<8x1xf32>
    %402 = vector.broadcast %401 : vector<8x1xf32> to vector<8x8xf32>
    %403 = arith.subf %399, %402 : vector<8x8xf32>
    %404 = math.exp %403 : vector<8x8xf32>
    %cst_157 = arith.constant dense<0.000000e+00> : vector<8xf32>
    %405 = vector.multi_reduction <add>, %404, %cst_157 [1] : vector<8x8xf32> to vector<8xf32>
    %406 = vector.shape_cast %405 : vector<8xf32> to vector<8x1xf32>
    %407 = tpu.reciprocal %406 {approx = true} : vector<8x1xf32> -> vector<8x1xf32>
    %408 = vector.broadcast %407 : vector<8x1xf32> to vector<8x8xf32>
    %409 = arith.mulf %404, %408 : vector<8x8xf32>
    %cst_158 = arith.constant dense<0.000000e+00> : vector<8x32xf32>
    %410 = tpu.matmul %409, %394, %cst_158 {dimension_numbers = #tpu.dot_dimension_numbers<[1], [0], [0], [1], [0, 0, 1, 1], [], []>} : vector<8x8xf32>, vector<8x32xf32>, vector<8x32xf32> -> vector<8x32xf32>
    %411 = vector.extract_strided_slice %302 {offsets = [8, 32], sizes = [8, 32], strides = [1, 1]} : vector<16x384xf32> to vector<8x32xf32>
    %412 = vector.extract_strided_slice %302 {offsets = [8, 160], sizes = [8, 32], strides = [1, 1]} : vector<16x384xf32> to vector<8x32xf32>
    %413 = vector.extract_strided_slice %302 {offsets = [8, 288], sizes = [8, 32], strides = [1, 1]} : vector<16x384xf32> to vector<8x32xf32>
    %cst_159 = arith.constant dense<0.000000e+00> : vector<8x8xf32>
    %414 = tpu.matmul %411, %412, %cst_159 {dimension_numbers = #tpu.dot_dimension_numbers<[1], [1], [0], [0], [0, 0, 1, 0], [], []>} : vector<8x32xf32>, vector<8x32xf32>, vector<8x8xf32> -> vector<8x8xf32>
    %cst_160 = arith.constant 0.176776692 : f32
    %415 = vector.broadcast %cst_160 : f32 to vector<8x8xf32>
    %416 = arith.mulf %414, %415 : vector<8x8xf32>
    %417 = vector.broadcast %391 : vector<1x8xf32> to vector<8x8xf32>
    %418 = arith.addf %416, %417 : vector<8x8xf32>
    %cst_161 = arith.constant dense<0xFF800000> : vector<8xf32>
    %419 = vector.multi_reduction <maximumf>, %418, %cst_161 [1] : vector<8x8xf32> to vector<8xf32>
    %420 = vector.shape_cast %419 : vector<8xf32> to vector<8x1xf32>
    %421 = vector.broadcast %420 : vector<8x1xf32> to vector<8x8xf32>
    %422 = arith.subf %418, %421 : vector<8x8xf32>
    %423 = math.exp %422 : vector<8x8xf32>
    %cst_162 = arith.constant dense<0.000000e+00> : vector<8xf32>
    %424 = vector.multi_reduction <add>, %423, %cst_162 [1] : vector<8x8xf32> to vector<8xf32>
    %425 = vector.shape_cast %424 : vector<8xf32> to vector<8x1xf32>
    %426 = tpu.reciprocal %425 {approx = true} : vector<8x1xf32> -> vector<8x1xf32>
    %427 = vector.broadcast %426 : vector<8x1xf32> to vector<8x8xf32>
    %428 = arith.mulf %423, %427 : vector<8x8xf32>
    %cst_163 = arith.constant dense<0.000000e+00> : vector<8x32xf32>
    %429 = tpu.matmul %428, %413, %cst_163 {dimension_numbers = #tpu.dot_dimension_numbers<[1], [0], [0], [1], [0, 0, 1, 1], [], []>} : vector<8x8xf32>, vector<8x32xf32>, vector<8x32xf32> -> vector<8x32xf32>
    %430 = vector.extract_strided_slice %302 {offsets = [8, 64], sizes = [8, 32], strides = [1, 1]} : vector<16x384xf32> to vector<8x32xf32>
    %431 = vector.extract_strided_slice %302 {offsets = [8, 192], sizes = [8, 32], strides = [1, 1]} : vector<16x384xf32> to vector<8x32xf32>
    %432 = vector.extract_strided_slice %302 {offsets = [8, 320], sizes = [8, 32], strides = [1, 1]} : vector<16x384xf32> to vector<8x32xf32>
    %cst_164 = arith.constant dense<0.000000e+00> : vector<8x8xf32>
    %433 = tpu.matmul %430, %431, %cst_164 {dimension_numbers = #tpu.dot_dimension_numbers<[1], [1], [0], [0], [0, 0, 1, 0], [], []>} : vector<8x32xf32>, vector<8x32xf32>, vector<8x8xf32> -> vector<8x8xf32>
    %cst_165 = arith.constant 0.176776692 : f32
    %434 = vector.broadcast %cst_165 : f32 to vector<8x8xf32>
    %435 = arith.mulf %433, %434 : vector<8x8xf32>
    %436 = vector.broadcast %391 : vector<1x8xf32> to vector<8x8xf32>
    %437 = arith.addf %435, %436 : vector<8x8xf32>
    %cst_166 = arith.constant dense<0xFF800000> : vector<8xf32>
    %438 = vector.multi_reduction <maximumf>, %437, %cst_166 [1] : vector<8x8xf32> to vector<8xf32>
    %439 = vector.shape_cast %438 : vector<8xf32> to vector<8x1xf32>
    %440 = vector.broadcast %439 : vector<8x1xf32> to vector<8x8xf32>
    %441 = arith.subf %437, %440 : vector<8x8xf32>
    %442 = math.exp %441 : vector<8x8xf32>
    %cst_167 = arith.constant dense<0.000000e+00> : vector<8xf32>
    %443 = vector.multi_reduction <add>, %442, %cst_167 [1] : vector<8x8xf32> to vector<8xf32>
    %444 = vector.shape_cast %443 : vector<8xf32> to vector<8x1xf32>
    %445 = tpu.reciprocal %444 {approx = true} : vector<8x1xf32> -> vector<8x1xf32>
    %446 = vector.broadcast %445 : vector<8x1xf32> to vector<8x8xf32>
    %447 = arith.mulf %442, %446 : vector<8x8xf32>
    %cst_168 = arith.constant dense<0.000000e+00> : vector<8x32xf32>
    %448 = tpu.matmul %447, %432, %cst_168 {dimension_numbers = #tpu.dot_dimension_numbers<[1], [0], [0], [1], [0, 0, 1, 1], [], []>} : vector<8x8xf32>, vector<8x32xf32>, vector<8x32xf32> -> vector<8x32xf32>
    %449 = vector.extract_strided_slice %302 {offsets = [8, 96], sizes = [8, 32], strides = [1, 1]} : vector<16x384xf32> to vector<8x32xf32>
    %450 = vector.extract_strided_slice %302 {offsets = [8, 224], sizes = [8, 32], strides = [1, 1]} : vector<16x384xf32> to vector<8x32xf32>
    %451 = vector.extract_strided_slice %302 {offsets = [8, 352], sizes = [8, 32], strides = [1, 1]} : vector<16x384xf32> to vector<8x32xf32>
    %cst_169 = arith.constant dense<0.000000e+00> : vector<8x8xf32>
    %452 = tpu.matmul %449, %450, %cst_169 {dimension_numbers = #tpu.dot_dimension_numbers<[1], [1], [0], [0], [0, 0, 1, 0], [], []>} : vector<8x32xf32>, vector<8x32xf32>, vector<8x8xf32> -> vector<8x8xf32>
    %cst_170 = arith.constant 0.176776692 : f32
    %453 = vector.broadcast %cst_170 : f32 to vector<8x8xf32>
    %454 = arith.mulf %452, %453 : vector<8x8xf32>
    %455 = vector.broadcast %391 : vector<1x8xf32> to vector<8x8xf32>
    %456 = arith.addf %454, %455 : vector<8x8xf32>
    %cst_171 = arith.constant dense<0xFF800000> : vector<8xf32>
    %457 = vector.multi_reduction <maximumf>, %456, %cst_171 [1] : vector<8x8xf32> to vector<8xf32>
    %458 = vector.shape_cast %457 : vector<8xf32> to vector<8x1xf32>
    %459 = vector.broadcast %458 : vector<8x1xf32> to vector<8x8xf32>
    %460 = arith.subf %456, %459 : vector<8x8xf32>
    %461 = math.exp %460 : vector<8x8xf32>
    %cst_172 = arith.constant dense<0.000000e+00> : vector<8xf32>
    %462 = vector.multi_reduction <add>, %461, %cst_172 [1] : vector<8x8xf32> to vector<8xf32>
    %463 = vector.shape_cast %462 : vector<8xf32> to vector<8x1xf32>
    %464 = tpu.reciprocal %463 {approx = true} : vector<8x1xf32> -> vector<8x1xf32>
    %465 = vector.broadcast %464 : vector<8x1xf32> to vector<8x8xf32>
    %466 = arith.mulf %461, %465 : vector<8x8xf32>
    %cst_173 = arith.constant dense<0.000000e+00> : vector<8x32xf32>
    %467 = tpu.matmul %466, %451, %cst_173 {dimension_numbers = #tpu.dot_dimension_numbers<[1], [0], [0], [1], [0, 0, 1, 1], [], []>} : vector<8x8xf32>, vector<8x32xf32>, vector<8x32xf32> -> vector<8x32xf32>
    %468 = tpu.concatenate %410, %429, %448, %467 in 1 : vector<8x32xf32>, vector<8x32xf32>, vector<8x32xf32>, vector<8x32xf32> -> vector<8x128xf32>
    %469 = tpu.concatenate %385, %468 in 0 : vector<8x128xf32>, vector<8x128xf32> -> vector<16x128xf32>
    %c1_174 = arith.constant 1 : index
    %c0_175 = arith.constant 0 : index
    %c0_176 = arith.constant 0 : index
    %470 = vector.load %arg9[%c1_174, %c0_175, %c0_176] : memref<2x128x128xbf16, #tpu.memory_space<vmem>>, vector<1x128x128xbf16>
    %471 = vector.shape_cast %470 : vector<1x128x128xbf16> to vector<128x128xbf16>
    %c1_177 = arith.constant 1 : index
    %c0_178 = arith.constant 0 : index
    %c0_179 = arith.constant 0 : index
    %472 = vector.load %arg10[%c1_177, %c0_178, %c0_179] : memref<2x1x128xf32, #tpu.memory_space<vmem>>, vector<1x1x128xf32>
    %473 = vector.shape_cast %472 : vector<1x1x128xf32> to vector<1x128xf32>
    %474 = arith.truncf %469 : vector<16x128xf32> to vector<16x128xbf16>
    %cst_180 = arith.constant dense<0.000000e+00> : vector<16x128xf32>
    %475 = tpu.matmul %474, %471, %cst_180 {dimension_numbers = #tpu.dot_dimension_numbers<[1], [0], [0], [1], [0, 0, 1, 1], [], []>} : vector<16x128xbf16>, vector<128x128xbf16>, vector<16x128xf32> -> vector<16x128xf32>
    %476 = vector.broadcast %473 : vector<1x128xf32> to vector<16x128xf32>
    %477 = arith.addf %475, %476 : vector<16x128xf32>
    %478 = arith.addf %477, %294 : vector<16x128xf32>
    %c1_181 = arith.constant 1 : index
    %c0_182 = arith.constant 0 : index
    %c0_183 = arith.constant 0 : index
    %479 = vector.load %arg11[%c1_181, %c0_182, %c0_183] : memref<2x1x128xf32, #tpu.memory_space<vmem>>, vector<1x1x128xf32>
    %480 = vector.shape_cast %479 : vector<1x1x128xf32> to vector<1x128xf32>
    %c1_184 = arith.constant 1 : index
    %c0_185 = arith.constant 0 : index
    %c0_186 = arith.constant 0 : index
    %481 = vector.load %arg12[%c1_184, %c0_185, %c0_186] : memref<2x1x128xf32, #tpu.memory_space<vmem>>, vector<1x1x128xf32>
    %482 = vector.shape_cast %481 : vector<1x1x128xf32> to vector<1x128xf32>
    %cst_187 = arith.constant dense<0.000000e+00> : vector<16xf32>
    %483 = vector.multi_reduction <add>, %478, %cst_187 [1] : vector<16x128xf32> to vector<16xf32>
    %484 = vector.shape_cast %483 : vector<16xf32> to vector<16x1xf32>
    %cst_188 = arith.constant 1.280000e+02 : f32
    %485 = vector.broadcast %cst_188 : f32 to vector<16x1xf32>
    %486 = arith.divf %484, %485 : vector<16x1xf32>
    %487 = vector.broadcast %486 : vector<16x1xf32> to vector<16x128xf32>
    %488 = arith.subf %478, %487 : vector<16x128xf32>
    %489 = arith.mulf %488, %488 : vector<16x128xf32>
    %cst_189 = arith.constant dense<0.000000e+00> : vector<16xf32>
    %490 = vector.multi_reduction <add>, %489, %cst_189 [1] : vector<16x128xf32> to vector<16xf32>
    %491 = vector.shape_cast %490 : vector<16xf32> to vector<16x1xf32>
    %cst_190 = arith.constant 1.280000e+02 : f32
    %492 = vector.broadcast %cst_190 : f32 to vector<16x1xf32>
    %493 = arith.divf %491, %492 : vector<16x1xf32>
    %494 = vector.broadcast %486 : vector<16x1xf32> to vector<16x128xf32>
    %495 = arith.subf %478, %494 : vector<16x128xf32>
    %cst_191 = arith.constant 9.99999974E-6 : f32
    %496 = vector.broadcast %cst_191 : f32 to vector<16x1xf32>
    %497 = arith.addf %493, %496 : vector<16x1xf32>
    %498 = math.rsqrt %497 : vector<16x1xf32>
    %499 = vector.broadcast %498 : vector<16x1xf32> to vector<16x128xf32>
    %500 = arith.mulf %495, %499 : vector<16x128xf32>
    %501 = vector.broadcast %480 : vector<1x128xf32> to vector<16x128xf32>
    %502 = arith.mulf %500, %501 : vector<16x128xf32>
    %503 = vector.broadcast %482 : vector<1x128xf32> to vector<16x128xf32>
    %504 = arith.addf %502, %503 : vector<16x128xf32>
    %c1_192 = arith.constant 1 : index
    %c0_193 = arith.constant 0 : index
    %c0_194 = arith.constant 0 : index
    %505 = vector.load %arg13[%c1_192, %c0_193, %c0_194] : memref<2x128x256xbf16, #tpu.memory_space<vmem>>, vector<1x128x256xbf16>
    %506 = vector.shape_cast %505 : vector<1x128x256xbf16> to vector<128x256xbf16>
    %c1_195 = arith.constant 1 : index
    %c0_196 = arith.constant 0 : index
    %c0_197 = arith.constant 0 : index
    %507 = vector.load %arg14[%c1_195, %c0_196, %c0_197] : memref<2x1x256xf32, #tpu.memory_space<vmem>>, vector<1x1x256xf32>
    %508 = vector.shape_cast %507 : vector<1x1x256xf32> to vector<1x256xf32>
    %509 = arith.truncf %504 : vector<16x128xf32> to vector<16x128xbf16>
    %cst_198 = arith.constant dense<0.000000e+00> : vector<16x256xf32>
    %510 = tpu.matmul %509, %506, %cst_198 {dimension_numbers = #tpu.dot_dimension_numbers<[1], [0], [0], [1], [0, 0, 1, 1], [], []>} : vector<16x128xbf16>, vector<128x256xbf16>, vector<16x256xf32> -> vector<16x256xf32>
    %511 = vector.broadcast %508 : vector<1x256xf32> to vector<16x256xf32>
    %512 = arith.addf %510, %511 : vector<16x256xf32>
    %513 = arith.mulf %512, %512 : vector<16x256xf32>
    %514 = arith.mulf %512, %513 : vector<16x256xf32>
    %cst_199 = arith.constant 4.471500e-02 : f32
    %515 = vector.broadcast %cst_199 : f32 to vector<16x256xf32>
    %516 = arith.mulf %515, %514 : vector<16x256xf32>
    %517 = arith.addf %512, %516 : vector<16x256xf32>
    %cst_200 = arith.constant 0.797884583 : f32
    %518 = vector.broadcast %cst_200 : f32 to vector<16x256xf32>
    %519 = arith.mulf %518, %517 : vector<16x256xf32>
    %520 = math.tanh %519 : vector<16x256xf32>
    %cst_201 = arith.constant 1.000000e+00 : f32
    %521 = vector.broadcast %cst_201 : f32 to vector<16x256xf32>
    %522 = arith.addf %521, %520 : vector<16x256xf32>
    %cst_202 = arith.constant 5.000000e-01 : f32
    %523 = vector.broadcast %cst_202 : f32 to vector<16x256xf32>
    %524 = arith.mulf %523, %522 : vector<16x256xf32>
    %525 = arith.mulf %512, %524 : vector<16x256xf32>
    %c1_203 = arith.constant 1 : index
    %c0_204 = arith.constant 0 : index
    %c0_205 = arith.constant 0 : index
    %526 = vector.load %arg15[%c1_203, %c0_204, %c0_205] : memref<2x256x128xbf16, #tpu.memory_space<vmem>>, vector<1x256x128xbf16>
    %527 = vector.shape_cast %526 : vector<1x256x128xbf16> to vector<256x128xbf16>
    %c1_206 = arith.constant 1 : index
    %c0_207 = arith.constant 0 : index
    %c0_208 = arith.constant 0 : index
    %528 = vector.load %arg16[%c1_206, %c0_207, %c0_208] : memref<2x1x128xf32, #tpu.memory_space<vmem>>, vector<1x1x128xf32>
    %529 = vector.shape_cast %528 : vector<1x1x128xf32> to vector<1x128xf32>
    %530 = arith.truncf %525 : vector<16x256xf32> to vector<16x256xbf16>
    %cst_209 = arith.constant dense<0.000000e+00> : vector<16x128xf32>
    %531 = tpu.matmul %530, %527, %cst_209 {dimension_numbers = #tpu.dot_dimension_numbers<[1], [0], [0], [1], [0, 0, 1, 1], [], []>} : vector<16x256xbf16>, vector<256x128xbf16>, vector<16x128xf32> -> vector<16x128xf32>
    %532 = vector.broadcast %529 : vector<1x128xf32> to vector<16x128xf32>
    %533 = arith.addf %531, %532 : vector<16x128xf32>
    %534 = arith.addf %533, %504 : vector<16x128xf32>
    %c1_210 = arith.constant 1 : index
    %c0_211 = arith.constant 0 : index
    %c0_212 = arith.constant 0 : index
    %535 = vector.load %arg17[%c1_210, %c0_211, %c0_212] : memref<2x1x128xf32, #tpu.memory_space<vmem>>, vector<1x1x128xf32>
    %536 = vector.shape_cast %535 : vector<1x1x128xf32> to vector<1x128xf32>
    %c1_213 = arith.constant 1 : index
    %c0_214 = arith.constant 0 : index
    %c0_215 = arith.constant 0 : index
    %537 = vector.load %arg18[%c1_213, %c0_214, %c0_215] : memref<2x1x128xf32, #tpu.memory_space<vmem>>, vector<1x1x128xf32>
    %538 = vector.shape_cast %537 : vector<1x1x128xf32> to vector<1x128xf32>
    %cst_216 = arith.constant dense<0.000000e+00> : vector<16xf32>
    %539 = vector.multi_reduction <add>, %534, %cst_216 [1] : vector<16x128xf32> to vector<16xf32>
    %540 = vector.shape_cast %539 : vector<16xf32> to vector<16x1xf32>
    %cst_217 = arith.constant 1.280000e+02 : f32
    %541 = vector.broadcast %cst_217 : f32 to vector<16x1xf32>
    %542 = arith.divf %540, %541 : vector<16x1xf32>
    %543 = vector.broadcast %542 : vector<16x1xf32> to vector<16x128xf32>
    %544 = arith.subf %534, %543 : vector<16x128xf32>
    %545 = arith.mulf %544, %544 : vector<16x128xf32>
    %cst_218 = arith.constant dense<0.000000e+00> : vector<16xf32>
    %546 = vector.multi_reduction <add>, %545, %cst_218 [1] : vector<16x128xf32> to vector<16xf32>
    %547 = vector.shape_cast %546 : vector<16xf32> to vector<16x1xf32>
    %cst_219 = arith.constant 1.280000e+02 : f32
    %548 = vector.broadcast %cst_219 : f32 to vector<16x1xf32>
    %549 = arith.divf %547, %548 : vector<16x1xf32>
    %550 = vector.broadcast %542 : vector<16x1xf32> to vector<16x128xf32>
    %551 = arith.subf %534, %550 : vector<16x128xf32>
    %cst_220 = arith.constant 9.99999974E-6 : f32
    %552 = vector.broadcast %cst_220 : f32 to vector<16x1xf32>
    %553 = arith.addf %549, %552 : vector<16x1xf32>
    %554 = math.rsqrt %553 : vector<16x1xf32>
    %555 = vector.broadcast %554 : vector<16x1xf32> to vector<16x128xf32>
    %556 = arith.mulf %551, %555 : vector<16x128xf32>
    %557 = vector.broadcast %536 : vector<1x128xf32> to vector<16x128xf32>
    %558 = arith.mulf %556, %557 : vector<16x128xf32>
    %559 = vector.broadcast %538 : vector<1x128xf32> to vector<16x128xf32>
    %560 = arith.addf %558, %559 : vector<16x128xf32>
    %c0_221 = arith.constant 0 : index
    %c0_222 = arith.constant 0 : index
    %561 = vector.load %arg19[%c0_221, %c0_222] : memref<16x128xf32, #tpu.memory_space<vmem>>, vector<16x128xf32>
    tpu.vector_store %arg19[%c0_221, %c0_222], %560 {strides = array<i32>} : memref<16x128xf32, #tpu.memory_space<vmem>>, vector<16x128xf32>,
    %c0_223 = arith.constant 0 : index
    %c0_224 = arith.constant 0 : index
    %562 = vector.load %arg3[%c0_223, %c0_224] : memref<16x1xf32, #tpu.memory_space<vmem>>, vector<16x1xf32>
    %563 = vector.broadcast %562 : vector<16x1xf32> to vector<16x128xf32>
    %564 = arith.mulf %560, %563 : vector<16x128xf32>
    %565 = vector.extract_strided_slice %564 {offsets = [0, 0], sizes = [8, 128], strides = [1, 1]} : vector<16x128xf32> to vector<8x128xf32>
    %cst_225 = arith.constant dense<0.000000e+00> : vector<128xf32>
    %566 = vector.multi_reduction <add>, %565, %cst_225 [0] : vector<8x128xf32> to vector<128xf32>
    %567 = vector.shape_cast %566 : vector<128xf32> to vector<1x128xf32>
    %568 = vector.extract_strided_slice %562 {offsets = [0, 0], sizes = [8, 1], strides = [1, 1]} : vector<16x1xf32> to vector<8x1xf32>
    %cst_226 = arith.constant dense<0.000000e+00> : vector<1xf32>
    %569 = vector.multi_reduction <add>, %568, %cst_226 [0] : vector<8x1xf32> to vector<1xf32>
    %570 = vector.shape_cast %569 : vector<1xf32> to vector<1x1xf32>
    %cst_227 = arith.constant 9.99999971E-10 : f32
    %571 = vector.broadcast %cst_227 : f32 to vector<1x1xf32>
    %572 = arith.maximumf %570, %571 : vector<1x1xf32>
    %573 = tpu.reciprocal %572 {approx = true} : vector<1x1xf32> -> vector<1x1xf32>
    %574 = vector.broadcast %573 : vector<1x1xf32> to vector<1x128xf32>
    %575 = arith.mulf %567, %574 : vector<1x128xf32>
    %576 = vector.extract_strided_slice %564 {offsets = [8, 0], sizes = [8, 128], strides = [1, 1]} : vector<16x128xf32> to vector<8x128xf32>
    %cst_228 = arith.constant dense<0.000000e+00> : vector<128xf32>
    %577 = vector.multi_reduction <add>, %576, %cst_228 [0] : vector<8x128xf32> to vector<128xf32>
    %578 = vector.shape_cast %577 : vector<128xf32> to vector<1x128xf32>
    %579 = vector.extract_strided_slice %562 {offsets = [8, 0], sizes = [8, 1], strides = [1, 1]} : vector<16x1xf32> to vector<8x1xf32>
    %cst_229 = arith.constant dense<0.000000e+00> : vector<1xf32>
    %580 = vector.multi_reduction <add>, %579, %cst_229 [0] : vector<8x1xf32> to vector<1xf32>
    %581 = vector.shape_cast %580 : vector<1xf32> to vector<1x1xf32>
    %cst_230 = arith.constant 9.99999971E-10 : f32
    %582 = vector.broadcast %cst_230 : f32 to vector<1x1xf32>
    %583 = arith.maximumf %581, %582 : vector<1x1xf32>
    %584 = tpu.reciprocal %583 {approx = true} : vector<1x1xf32> -> vector<1x1xf32>
    %585 = vector.broadcast %584 : vector<1x1xf32> to vector<1x128xf32>
    %586 = arith.mulf %578, %585 : vector<1x128xf32>
    %587 = tpu.concatenate %575, %586 in 0 : vector<1x128xf32>, vector<1x128xf32> -> vector<2x128xf32>
    %c0_231 = arith.constant 0 : index
    %c0_232 = arith.constant 0 : index
    %588 = vector.load %arg20[%c0_231, %c0_232] : memref<2x128xf32, #tpu.memory_space<vmem>>, vector<2x128xf32>
    tpu.vector_store %arg20[%c0_231, %c0_232], %587 {strides = array<i32>} : memref<2x128xf32, #tpu.memory_space<vmem>>, vector<2x128xf32>,
    return
  }
}

</mosaic_0001>

<llo_original>
// kernel: tpu_custom_call.1
$region0: #{tpu_custom_call.1}
  #allocation0 [shape = 'u32[]', space=smem, size = 0x4, offset = 0x4, fixed_abs, tag = 'smem constant byte address 0x4 - core index']
  #allocation1 [shape = 'u32[144,128]{1,0:T(1,128)}', space=vmem, size = 0x12000, scoped, tag = 'internal scratch']
  %s0 = inlined_call_operand.vmem [shape: bf16[16,256], index: 0, kind: input, shape index: {}]
  %s1 = inlined_call_operand.hbm [shape: f32[16,128], index: 1, kind: input, shape index: {}]
  %s2 = inlined_call_operand.vmem [shape: f32[2,1,8], index: 2, kind: input, shape index: {}]
  %s3 = inlined_call_operand.vmem [shape: f32[16,1], index: 3, kind: input, shape index: {}]
  %s4 = inlined_call_operand.hbm [shape: bf16[256,128], index: 4, kind: input, shape index: {}]
  %s5 = inlined_call_operand.vmem [shape: f32[1,128], index: 5, kind: input, shape index: {}]
  %s6 = inlined_call_operand.hbm [shape: f32[1,128], index: 6, kind: input, shape index: {}]
  %s7 = inlined_call_operand.hbm [shape: bf16[2,128,384], index: 7, kind: input, shape index: {}]
  %s8 = inlined_call_operand.vmem [shape: f32[2,1,384], index: 8, kind: input, shape index: {}]
  %s9 = inlined_call_operand.hbm [shape: bf16[2,128,128], index: 9, kind: input, shape index: {}]
  %s10 = inlined_call_operand.vmem [shape: f32[2,1,128], index: 10, kind: input, shape index: {}]
  %s11 = inlined_call_operand.vmem [shape: f32[2,1,128], index: 11, kind: input, shape index: {}]
  %s12 = inlined_call_operand.vmem [shape: f32[2,1,128], index: 12, kind: input, shape index: {}]
  %s13 = inlined_call_operand.hbm [shape: bf16[2,128,256], index: 13, kind: input, shape index: {}]
  %s14 = inlined_call_operand.vmem [shape: f32[2,1,256], index: 14, kind: input, shape index: {}]
  %s15 = inlined_call_operand.hbm [shape: bf16[2,256,128], index: 15, kind: input, shape index: {}]
  %s16 = inlined_call_operand.vmem [shape: f32[2,1,128], index: 16, kind: input, shape index: {}]
  %s17 = inlined_call_operand.vmem [shape: f32[2,1,128], index: 17, kind: input, shape index: {}]
  %s18 = inlined_call_operand.vmem [shape: f32[2,1,128], index: 18, kind: input, shape index: {}]
  %s19 = inlined_call_operand.hbm [shape: f32[16,128], index: 19, kind: output, shape index: {0}]
  %s20 = inlined_call_operand.hbm [shape: f32[2,128], index: 20, kind: output, shape index: {1}]
  %21 = xla_tuple %s19, %s20
  %s22 = sld [smem:[#allocation0]]
  $region122: #{tpu_custom_call.1} parent=0
    _
  %s24 = ssub.s32 1, %s22
  %s25 = scalar_select 0, %s24, %s22
  $region1: #{tpu_custom_call.1} parent=0
    #allocation2 [shape = 'u8[8192]{0}', space=vmem, size = 0x2000, scoped, tag = 'input window, operand 1, single buffered']
    #allocation3 [shape = 's32[1]{0}', space=sflag, size = 0x4, scoped, tag = 'scoped memory for tpu_custom_call.1']
    #allocation4 [shape = 's32[1]{0}', space=sflag, size = 0x4, scoped, tag = 'scoped memory for tpu_custom_call.1']
    #allocation5 [shape = 'u8[65536]{0}', space=vmem, size = 0x10000, scoped, tag = 'input window, operand 4, single buffered']
    #allocation6 [shape = 's32[1]{0}', space=sflag, size = 0x4, scoped, tag = 'scoped memory for tpu_custom_call.1']
    #allocation7 [shape = 'u8[512]{0}', space=vmem, size = 0x400, scoped, tag = 'input window, operand 6, single buffered']
    #allocation8 [shape = 'u8[196608]{0}', space=vmem, size = 0x30000, scoped, tag = 'input window, operand 7, single buffered']
    #allocation9 [shape = 's32[1]{0}', space=sflag, size = 0x4, scoped, tag = 'scoped memory for tpu_custom_call.1']
    #allocation10 [shape = 'u8[65536]{0}', space=vmem, size = 0x10000, scoped, tag = 'input window, operand 9, single buffered']
    #allocation11 [shape = 'u8[131072]{0}', space=vmem, size = 0x20000, scoped, tag = 'input window, operand 13, single buffered']
    #allocation12 [shape = 's32[1]{0}', space=sflag, size = 0x4, scoped, tag = 'scoped memory for tpu_custom_call.1']
    #allocation13 [shape = 'u8[131072]{0}', space=vmem, size = 0x20000, scoped, tag = 'input window, operand 15, single buffered']
    #allocation14 [shape = 'u8[8192]{0}', space=vmem, size = 0x2000, scoped, tag = 'output window, operand 0, single buffered']
    #allocation15 [shape = 'u8[1024]{0}', space=vmem, size = 0x400, scoped, tag = 'output window, operand 1, single buffered']
    #allocation16 [shape = 's32[1]{0}', space=sflag, size = 0x4, scoped, tag = 'scoped memory for tpu_custom_call.1']
    %26 = vsyncpa [#allocation3], 0
    %27 = vsyncpa [#allocation6], 0
    %28 = vsyncpa [#allocation9], 0
    %29 = vsyncpa [#allocation12], 0
    %30 = vsyncpa [#allocation4], 0
    %31 = vsyncpa [#allocation16], 0
    // Predicated region
    $region2: #{tpu_custom_call.1} parent=1 // pred_check
      _
    $region3: #{tpu_custom_call.1} parent=1 // pred_check_branch
      %33 = sbr.rel (0) target = $region5
    $region4: #{tpu_custom_call.1} parent=1 // pred_region
      _
    $region5: #{tpu_custom_call.1} parent=1 // pred_fallthru
      _
    // Predicated region
    $region6: #{tpu_custom_call.1} parent=1 // pred_check
      _
    $region7: #{tpu_custom_call.1} parent=1 // pred_check_branch
      %35 = sbr.rel (0) target = $region9
    $region8: #{tpu_custom_call.1} parent=1 // pred_region
      %s37 = ssub.s32 256, 256
      %38 = vsyncadd [#allocation3], %s37
      %s39 = sshll.u32 [#allocation2], 4
      %s40 = int_to_ptr.vmem [resolvable:$true] %s39
      %45 = dma.hbm_to_vmem [thread:$0]  %s1, 256, %s40, [#allocation3], 128, 128, 8
    $region9: #{tpu_custom_call.1} parent=1 // pred_fallthru
      _
    // Predicated region
    $region10: #{tpu_custom_call.1} parent=1 // pred_check
      _
    $region11: #{tpu_custom_call.1} parent=1 // pred_check_branch
      %47 = sbr.rel (0) target = $region13
    $region12: #{tpu_custom_call.1} parent=1 // pred_region
      _
    $region13: #{tpu_custom_call.1} parent=1 // pred_fallthru
      _
    // Predicated region
    $region14: #{tpu_custom_call.1} parent=1 // pred_check
      _
    $region15: #{tpu_custom_call.1} parent=1 // pred_check_branch
      %49 = sbr.rel (0) target = $region17
    $region16: #{tpu_custom_call.1} parent=1 // pred_region
      _
    $region17: #{tpu_custom_call.1} parent=1 // pred_fallthru
      _
    // Predicated region
    $region18: #{tpu_custom_call.1} parent=1 // pred_check
      _
    $region19: #{tpu_custom_call.1} parent=1 // pred_check_branch
      %51 = sbr.rel (0) target = $region21
    $region20: #{tpu_custom_call.1} parent=1 // pred_region
      %s53 = ssub.s32 2048, 2048
      %54 = vsyncadd [#allocation6], %s53
      %s55 = sshll.u32 [#allocation5], 4
      %s56 = int_to_ptr.vmem [resolvable:$true] %s55
      %61 = dma.hbm_to_vmem [thread:$0]  %s4, 2048, %s56, [#allocation6], 64, 64, 4
    $region21: #{tpu_custom_call.1} parent=1 // pred_fallthru
      _
    // Predicated region
    $region22: #{tpu_custom_call.1} parent=1 // pred_check
      _
    $region23: #{tpu_custom_call.1} parent=1 // pred_check_branch
      %63 = sbr.rel (0) target = $region25
    $region24: #{tpu_custom_call.1} parent=1 // pred_region
      _
    $region25: #{tpu_custom_call.1} parent=1 // pred_fallthru
      _
    // Predicated region
    $region26: #{tpu_custom_call.1} parent=1 // pred_check
      _
    $region27: #{tpu_custom_call.1} parent=1 // pred_check_branch
      %65 = sbr.rel (0) target = $region29
    $region28: #{tpu_custom_call.1} parent=1 // pred_region
      %s67 = ssub.s32 16, 16
      %68 = vsyncadd [#allocation6], %s67
      %s70 = sshll.u32 [#allocation7], 4
      %s71 = int_to_ptr.vmem [resolvable:$true] %s70
      %73 = dma.hbm_to_vmem [thread:$0]  %s6, 16, %s71, [#allocation6]
    $region29: #{tpu_custom_call.1} parent=1 // pred_fallthru
      _
    // Predicated region
    $region30: #{tpu_custom_call.1} parent=1 // pred_check
      _
    $region31: #{tpu_custom_call.1} parent=1 // pred_check_branch
      %75 = sbr.rel (0) target = $region33
    $region32: #{tpu_custom_call.1} parent=1 // pred_region
      %s77 = ssub.s32 6144, 6144
      %78 = vsyncadd [#allocation9], %s77
      %s79 = sshll.u32 [#allocation8], 4
      %s80 = int_to_ptr.vmem [resolvable:$true] %s79
      %85 = dma.hbm_to_vmem [thread:$0]  %s7, 6144, %s80, [#allocation9], 192, 192, 12
    $region33: #{tpu_custom_call.1} parent=1 // pred_fallthru
      _
    // Predicated region
    $region34: #{tpu_custom_call.1} parent=1 // pred_check
      _
    $region35: #{tpu_custom_call.1} parent=1 // pred_check_branch
      %87 = sbr.rel (0) target = $region37
    $region36: #{tpu_custom_call.1} parent=1 // pred_region
      _
    $region37: #{tpu_custom_call.1} parent=1 // pred_fallthru
      _
    // Predicated region
    $region38: #{tpu_custom_call.1} parent=1 // pred_check
      _
    $region39: #{tpu_custom_call.1} parent=1 // pred_check_branch
      %89 = sbr.rel (0) target = $region41
    $region40: #{tpu_custom_call.1} parent=1 // pred_region
      %s91 = ssub.s32 2048, 2048
      %92 = vsyncadd [#allocation9], %s91
      %s93 = sshll.u32 [#allocation10], 4
      %s94 = int_to_ptr.vmem [resolvable:$true] %s93
      %99 = dma.hbm_to_vmem [thread:$0]  %s9, 2048, %s94, [#allocation9], 64, 64, 4
    $region41: #{tpu_custom_call.1} parent=1 // pred_fallthru
      _
    // Predicated region
    $region42: #{tpu_custom_call.1} parent=1 // pred_check
      _
    $region43: #{tpu_custom_call.1} parent=1 // pred_check_branch
      %101 = sbr.rel (0) target = $region45
    $region44: #{tpu_custom_call.1} parent=1 // pred_region
      _
    $region45: #{tpu_custom_call.1} parent=1 // pred_fallthru
      _
    // Predicated region
    $region46: #{tpu_custom_call.1} parent=1 // pred_check
      _
    $region47: #{tpu_custom_call.1} parent=1 // pred_check_branch
      %103 = sbr.rel (0) target = $region49
    $region48: #{tpu_custom_call.1} parent=1 // pred_region
      _
    $region49: #{tpu_custom_call.1} parent=1 // pred_fallthru
      _
    // Predicated region
    $region50: #{tpu_custom_call.1} parent=1 // pred_check
      _
    $region51: #{tpu_custom_call.1} parent=1 // pred_check_branch
      %105 = sbr.rel (0) target = $region53
    $region52: #{tpu_custom_call.1} parent=1 // pred_region
      _
    $region53: #{tpu_custom_call.1} parent=1 // pred_fallthru
      _
    // Predicated region
    $region54: #{tpu_custom_call.1} parent=1 // pred_check
      _
    $region55: #{tpu_custom_call.1} parent=1 // pred_check_branch
      %107 = sbr.rel (0) target = $region57
    $region56: #{tpu_custom_call.1} parent=1 // pred_region
      %s109 = ssub.s32 4096, 4096
      %110 = vsyncadd [#allocation12], %s109
      %s111 = sshll.u32 [#allocation11], 4
      %s112 = int_to_ptr.vmem [resolvable:$true] %s111
      %117 = dma.hbm_to_vmem [thread:$0]  %s13, 4096, %s112, [#allocation12], 128, 128, 8
    $region57: #{tpu_custom_call.1} parent=1 // pred_fallthru
      _
    // Predicated region
    $region58: #{tpu_custom_call.1} parent=1 // pred_check
      _
    $region59: #{tpu_custom_call.1} parent=1 // pred_check_branch
      %119 = sbr.rel (0) target = $region61
    $region60: #{tpu_custom_call.1} parent=1 // pred_region
      _
    $region61: #{tpu_custom_call.1} parent=1 // pred_fallthru
      _
    // Predicated region
    $region62: #{tpu_custom_call.1} parent=1 // pred_check
      _
    $region63: #{tpu_custom_call.1} parent=1 // pred_check_branch
      %121 = sbr.rel (0) target = $region65
    $region64: #{tpu_custom_call.1} parent=1 // pred_region
      %s123 = ssub.s32 4096, 4096
      %124 = vsyncadd [#allocation12], %s123
      %s125 = sshll.u32 [#allocation13], 4
      %s126 = int_to_ptr.vmem [resolvable:$true] %s125
      %131 = dma.hbm_to_vmem [thread:$0]  %s15, 4096, %s126, [#allocation12], 64, 64, 4
    $region65: #{tpu_custom_call.1} parent=1 // pred_fallthru
      _
    // Predicated region
    $region66: #{tpu_custom_call.1} parent=1 // pred_check
      _
    $region67: #{tpu_custom_call.1} parent=1 // pred_check_branch
      %133 = sbr.rel (0) target = $region69
    $region68: #{tpu_custom_call.1} parent=1 // pred_region
      _
    $region69: #{tpu_custom_call.1} parent=1 // pred_fallthru
      _
    // Predicated region
    $region70: #{tpu_custom_call.1} parent=1 // pred_check
      _
    $region71: #{tpu_custom_call.1} parent=1 // pred_check_branch
      %135 = sbr.rel (0) target = $region73
    $region72: #{tpu_custom_call.1} parent=1 // pred_region
      _
    $region73: #{tpu_custom_call.1} parent=1 // pred_fallthru
      _
    // Predicated region
    $region74: #{tpu_custom_call.1} parent=1 // pred_check
      _
    $region75: #{tpu_custom_call.1} parent=1 // pred_check_branch
      %137 = sbr.rel (0) target = $region77
    $region76: #{tpu_custom_call.1} parent=1 // pred_region
      _
    $region77: #{tpu_custom_call.1} parent=1 // pred_fallthru
      _
    // Predicated region
    $region78: #{tpu_custom_call.1} parent=1 // pred_check
      _
    $region79: #{tpu_custom_call.1} parent=1 // pred_check_branch
      %139 = sbr.rel (0) target = $region81
    $region80: #{tpu_custom_call.1} parent=1 // pred_region
      %140 = dma.done [#allocation3], 256
    $region81: #{tpu_custom_call.1} parent=1 // pred_fallthru
      _
    // Predicated region
    $region82: #{tpu_custom_call.1} parent=1 // pred_check
      _
    $region83: #{tpu_custom_call.1} parent=1 // pred_check_branch
      %142 = sbr.rel (0) target = $region85
    $region84: #{tpu_custom_call.1} parent=1 // pred_region
      %143 = dma.done [#allocation6], 2048
    $region85: #{tpu_custom_call.1} parent=1 // pred_fallthru
      _
    // Predicated region
    $region86: #{tpu_custom_call.1} parent=1 // pred_check
      _
    $region87: #{tpu_custom_call.1} parent=1 // pred_check_branch
      %145 = sbr.rel (0) target = $region89
    $region88: #{tpu_custom_call.1} parent=1 // pred_region
      %146 = dma.done [#allocation6], 16
    $region89: #{tpu_custom_call.1} parent=1 // pred_fallthru
      _
    // Predicated region
    $region90: #{tpu_custom_call.1} parent=1 // pred_check
      _
    $region91: #{tpu_custom_call.1} parent=1 // pred_check_branch
      %148 = sbr.rel (0) target = $region93
    $region92: #{tpu_custom_call.1} parent=1 // pred_region
      %149 = dma.done [#allocation9], 6144
    $region93: #{tpu_custom_call.1} parent=1 // pred_fallthru
      _
    // Predicated region
    $region94: #{tpu_custom_call.1} parent=1 // pred_check
      _
    $region95: #{tpu_custom_call.1} parent=1 // pred_check_branch
      %151 = sbr.rel (0) target = $region97
    $region96: #{tpu_custom_call.1} parent=1 // pred_region
      %152 = dma.done [#allocation9], 2048
    $region97: #{tpu_custom_call.1} parent=1 // pred_fallthru
      _
    // Predicated region
    $region98: #{tpu_custom_call.1} parent=1 // pred_check
      _
    $region99: #{tpu_custom_call.1} parent=1 // pred_check_branch
      %154 = sbr.rel (0) target = $region101
    $region100: #{tpu_custom_call.1} parent=1 // pred_region
      %155 = dma.done [#allocation12], 4096
    $region101: #{tpu_custom_call.1} parent=1 // pred_fallthru
      _
    // Predicated region
    $region102: #{tpu_custom_call.1} parent=1 // pred_check
      _
    $region103: #{tpu_custom_call.1} parent=1 // pred_check_branch
      %157 = sbr.rel (0) target = $region105
    $region104: #{tpu_custom_call.1} parent=1 // pred_region
      %158 = dma.done [#allocation12], 4096
    $region105: #{tpu_custom_call.1} parent=1 // pred_fallthru
      _
    %v160 = vld [vmem:[%s0] sm:$0xff]
    %v161 = vld [vmem:[%s0 + $0x8] sm:$0xff]
    %v162 = vld [vmem:[#allocation5] sm:$0xf]
    %v163 = vld [vmem:[#allocation5 + $0x4] sm:$0xf]
    %v164 = vld [vmem:[#allocation5 + $0x8] sm:$0xf]
    %v165 = vld [vmem:[#allocation5 + $0xc] sm:$0xf]
    %v166 = vld [vmem:[#allocation5 + $0x10] sm:$0xf]
    %v167 = vld [vmem:[#allocation5 + $0x14] sm:$0xf]
    %v168 = vld [vmem:[#allocation5 + $0x18] sm:$0xf]
    %v169 = vld [vmem:[#allocation5 + $0x1c] sm:$0xf]
    %v170 = vld [vmem:[#allocation5 + $0x20] sm:$0xf]
    %v171 = vld [vmem:[#allocation5 + $0x24] sm:$0xf]
    %v172 = vld [vmem:[#allocation5 + $0x28] sm:$0xf]
    %v173 = vld [vmem:[#allocation5 + $0x2c] sm:$0xf]
    %v174 = vld [vmem:[#allocation5 + $0x30] sm:$0xf]
    %v175 = vld [vmem:[#allocation5 + $0x34] sm:$0xf]
    %v176 = vld [vmem:[#allocation5 + $0x38] sm:$0xf]
    %v177 = vld [vmem:[#allocation5 + $0x3c] sm:$0xf]
    %v178 = vld [vmem:[#allocation5 + $0x40] sm:$0xf]
    %v179 = vld [vmem:[#allocation5 + $0x44] sm:$0xf]
    %v180 = vld [vmem:[#allocation5 + $0x48] sm:$0xf]
    %v181 = vld [vmem:[#allocation5 + $0x4c] sm:$0xf]
    %v182 = vld [vmem:[#allocation5 + $0x50] sm:$0xf]
    %v183 = vld [vmem:[#allocation5 + $0x54] sm:$0xf]
    %v184 = vld [vmem:[#allocation5 + $0x58] sm:$0xf]
    %v185 = vld [vmem:[#allocation5 + $0x5c] sm:$0xf]
    %v186 = vld [vmem:[#allocation5 + $0x60] sm:$0xf]
    %v187 = vld [vmem:[#allocation5 + $0x64] sm:$0xf]
    %v188 = vld [vmem:[#allocation5 + $0x68] sm:$0xf]
    %v189 = vld [vmem:[#allocation5 + $0x6c] sm:$0xf]
    %v190 = vld [vmem:[#allocation5 + $0x70] sm:$0xf]
    %v191 = vld [vmem:[#allocation5 + $0x74] sm:$0xf]
    %v192 = vld [vmem:[#allocation5 + $0x78] sm:$0xf]
    %v193 = vld [vmem:[#allocation5 + $0x7c] sm:$0xf]
    %v194 = vld [vmem:[#allocation2] sm:$0xff]
    %v195 = vld [vmem:[#allocation2 + $0x8] sm:$0xff]
    %v198 = vunpack.c.l.b16 %v160
    %v199 = vunpack.c.h.b16 %v160
    %v200 = vunpack.c.l.b16 %v161
    %v201 = vunpack.c.h.b16 %v161
    %v202 = vpack.c.b16 %v200, %v198
    %v203 = vpack.c.b16 %v201, %v199
    %v238 = vunpack.c.l.b16 %v162
    %v239 = vunpack.c.l.b16 %v163
    %v240 = vunpack.c.l.b16 %v164
    %v241 = vunpack.c.l.b16 %v165
    %v242 = vunpack.c.l.b16 %v166
    %v243 = vunpack.c.l.b16 %v167
    %v244 = vunpack.c.l.b16 %v168
    %v245 = vunpack.c.l.b16 %v169
    %v246 = vunpack.c.l.b16 %v170
    %v247 = vunpack.c.l.b16 %v171
    %v248 = vunpack.c.l.b16 %v172
    %v249 = vunpack.c.l.b16 %v173
    %v250 = vunpack.c.l.b16 %v174
    %v251 = vunpack.c.l.b16 %v175
    %v252 = vunpack.c.l.b16 %v176
    %v253 = vunpack.c.l.b16 %v177
    %v254 = vunpack.c.l.b16 %v178
    %v255 = vunpack.c.l.b16 %v179
    %v256 = vunpack.c.l.b16 %v180
    %v257 = vunpack.c.l.b16 %v181
    %v258 = vunpack.c.l.b16 %v182
    %v259 = vunpack.c.l.b16 %v183
    %v260 = vunpack.c.l.b16 %v184
    %v261 = vunpack.c.l.b16 %v185
    %v262 = vunpack.c.l.b16 %v186
    %v263 = vunpack.c.l.b16 %v187
    %v264 = vunpack.c.l.b16 %v188
    %v265 = vunpack.c.l.b16 %v189
    %v266 = vunpack.c.l.b16 %v190
    %v267 = vunpack.c.l.b16 %v191
    %v268 = vunpack.c.l.b16 %v192
    %v269 = vunpack.c.l.b16 %v193
    %v270 = vpack.c.b16 %v239, %v238
    %v271 = vpack.c.b16 %v241, %v240
    %v272 = vpack.c.b16 %v243, %v242
    %v273 = vpack.c.b16 %v245, %v244
    %v274 = vpack.c.b16 %v247, %v246
    %v275 = vpack.c.b16 %v249, %v248
    %v276 = vpack.c.b16 %v251, %v250
    %v277 = vpack.c.b16 %v253, %v252
    %v278 = vpack.c.b16 %v255, %v254
    %v279 = vpack.c.b16 %v257, %v256
    %v280 = vpack.c.b16 %v259, %v258
    %v281 = vpack.c.b16 %v261, %v260
    %v282 = vpack.c.b16 %v263, %v262
    %v283 = vpack.c.b16 %v265, %v264
    %v284 = vpack.c.b16 %v267, %v266
    %v285 = vpack.c.b16 %v269, %v268
    %302 = vmatprep.subr.bf16.mxu0 0
    %303 = vmatpush1.bf16.msra.mxu0 %v270
    %304 = vmatprep.subr.bf16.mxu0 0
    %305 = vmatpush1.bf16.msra.mxu0 %v271
    %306 = vmatprep.subr.bf16.mxu0 0
    %307 = vmatpush1.bf16.msra.mxu0 %v272
    %308 = vmatprep.subr.bf16.mxu0 0
    %309 = vmatpush1.bf16.msra.mxu0 %v273
    %310 = vmatprep.subr.bf16.mxu0 0
    %311 = vmatpush1.bf16.msra.mxu0 %v274
    %312 = vmatprep.subr.bf16.mxu0 0
    %313 = vmatpush1.bf16.msra.mxu0 %v275
    %314 = vmatprep.subr.bf16.mxu0 0
    %315 = vmatpush1.bf16.msra.mxu0 %v276
    %316 = vmatprep.subr.bf16.mxu0 0
    %317 = vmatpush1.bf16.msra.mxu0 %v277
    %318 = vmatprep.subr.bf16.mxu0 0
    %319 = vmatpush1.bf16.msra.mxu0 %v278
    %320 = vmatprep.subr.bf16.mxu0 0
    %321 = vmatpush1.bf16.msra.mxu0 %v279
    %322 = vmatprep.subr.bf16.mxu0 0
    %323 = vmatpush1.bf16.msra.mxu0 %v280
    %324 = vmatprep.subr.bf16.mxu0 0
    %325 = vmatpush1.bf16.msra.mxu0 %v281
    %326 = vmatprep.subr.bf16.mxu0 0
    %327 = vmatpush1.bf16.msra.mxu0 %v282
    %328 = vmatprep.subr.bf16.mxu0 0
    %329 = vmatpush1.bf16.msra.mxu0 %v283
    %330 = vmatprep.subr.bf16.mxu0 0
    %331 = vmatpush1.bf16.msra.mxu0 %v284
    %332 = vmatprep.subr.bf16.mxu0 0
    %333 = vmatpush1.bf16.msra.mxu0 %v285
    %334 = vmatprep.mubr.bf16.mxu0 %v203
    %335 = vmatmul.mubr.bf16.gmra.mrb[0].mxu0 %v202
    %v336 = vpop.f32.mrb[0].mxu0
    %v337 = vadd.f32 %v194, %v336
    %v338 = vpop.f32.mrb[0].mxu0
    %v339 = vpop.f32.mrb[0].mxu0
    %v340 = vadd.f32 %v195, %v339
    %v341 = vpop.f32.mrb[0].mxu0
    %342 = vdwg.mxu0
    %v343 = vld [vmem:[%s5] sm:$0x1]
    %v344 = vld [vmem:[#allocation7] sm:$0x1]
    %345 = vadd.xlane.f32.xlu0 %v337
    %v346 = vpop.xlane.xlu0 %345
    %347 = vadd.xlane.f32.xlu0 %v340
    %v348 = vpop.xlane.xlu0 %347
    %v349 = vrcp.pop 128.0
    %v350 = vmul.f32 %v346, %v349
    %v351 = vmul.f32 %v348, %v349
    %v352 = vsub.f32 %v337, %v350
    %v353 = vsub.f32 %v340, %v351
    %v354 = vmul.f32 %v352, %v352
    %v355 = vmul.f32 %v353, %v353
    %356 = vadd.xlane.f32.xlu0 %v354
    %v357 = vpop.xlane.xlu0 %356
    %358 = vadd.xlane.f32.xlu0 %v355
    %v359 = vpop.xlane.xlu0 %358
    %v360 = vmul.f32 %v357, %v349
    %v361 = vmul.f32 %v359, %v349
    %v362 = vadd.f32 %v360, 1e-05
    %v363 = vadd.f32 %v361, 1e-05
    %v364 = vrsqrt.pop %v362
    %v365 = vrsqrt.pop %v363
    %v366 = vmul.f32 %v352, %v364
    %v367 = vmul.f32 %v353, %v365
    %v369 = vlaneseq
    %v370 = vshrl.u32 %v369, 7
    %v371 = vsub.s32 0, %v370
    %v372 = vrot.slane %v343, %v371
    %v374 = vmul.f32 %v366, %v372
    %v375 = vmul.f32 %v367, %v372
    %v377 = vlaneseq
    %v378 = vshrl.u32 %v377, 7
    %v379 = vsub.s32 0, %v378
    %v380 = vrot.slane %v344, %v379
    %v382 = vadd.f32 %v374, %v380
    %v383 = vadd.f32 %v375, %v380
    %v384 = vld [vmem:[#allocation8] sm:$0xff]
    %v385 = vld [vmem:[#allocation8 + $0x8] sm:$0xf]
    %v386 = vld [vmem:[#allocation8 + $0xc] sm:$0xff]
    %v387 = vld [vmem:[#allocation8 + $0x14] sm:$0xf]
    %v388 = vld [vmem:[#allocation8 + $0x18] sm:$0xff]
    %v389 = vld [vmem:[#allocation8 + $0x20] sm:$0xf]
    %v390 = vld [vmem:[#allocation8 + $0x24] sm:$0xff]
    %v391 = vld [vmem:[#allocation8 + $0x2c] sm:$0xf]
    %v392 = vld [vmem:[#allocation8 + $0x30] sm:$0xff]
    %v393 = vld [vmem:[#allocation8 + $0x38] sm:$0xf]
    %v394 = vld [vmem:[#allocation8 + $0x3c] sm:$0xff]
    %v395 = vld [vmem:[#allocation8 + $0x44] sm:$0xf]
    %v396 = vld [vmem:[#allocation8 + $0x48] sm:$0xff]
    %v397 = vld [vmem:[#allocation8 + $0x50] sm:$0xf]
    %v398 = vld [vmem:[#allocation8 + $0x54] sm:$0xff]
    %v399 = vld [vmem:[#allocation8 + $0x5c] sm:$0xf]
    %v400 = vld [vmem:[#allocation8 + $0x60] sm:$0xff]
    %v401 = vld [vmem:[#allocation8 + $0x68] sm:$0xf]
    %v402 = vld [vmem:[#allocation8 + $0x6c] sm:$0xff]
    %v403 = vld [vmem:[#allocation8 + $0x74] sm:$0xf]
    %v404 = vld [vmem:[#allocation8 + $0x78] sm:$0xff]
    %v405 = vld [vmem:[#allocation8 + $0x80] sm:$0xf]
    %v406 = vld [vmem:[#allocation8 + $0x84] sm:$0xff]
    %v407 = vld [vmem:[#allocation8 + $0x8c] sm:$0xf]
    %v408 = vld [vmem:[#allocation8 + $0x90] sm:$0xff]
    %v409 = vld [vmem:[#allocation8 + $0x98] sm:$0xf]
    %v410 = vld [vmem:[#allocation8 + $0x9c] sm:$0xff]
    %v411 = vld [vmem:[#allocation8 + $0xa4] sm:$0xf]
    %v412 = vld [vmem:[#allocation8 + $0xa8] sm:$0xff]
    %v413 = vld [vmem:[#allocation8 + $0xb0] sm:$0xf]
    %v414 = vld [vmem:[#allocation8 + $0xb4] sm:$0xff]
    %v415 = vld [vmem:[#allocation8 + $0xbc] sm:$0xf]
    %v416 = vld [vmem:[%s8] sm:$0x7]
    %v417 = vpack.c.bf16 %v383, %v382
    %v419 = vlaneseq
    %v420 = vshrl.u32 %v419, 7
    %v421 = vsub.s32 0, %v420
    %v422 = vrot.slane %v416, %v421
    %v423 = vlaneseq
    %v424 = vshrl.u32 %v423, 7
    %v425 = vsub.s32 1, %v424
    %v426 = vrot.slane %v416, %v425
    %v427 = vlaneseq
    %v428 = vshrl.u32 %v427, 7
    %v429 = vsub.s32 2, %v428
    %v430 = vrot.slane %v416, %v429
    %v466 = vunpack.c.l.b16 %v384
    %v467 = vunpack.c.h.b16 %v384
    %v468 = vunpack.c.l.b16 %v385
    %v469 = vunpack.c.l.b16 %v386
    %v470 = vunpack.c.h.b16 %v386
    %v471 = vunpack.c.l.b16 %v387
    %v472 = vunpack.c.l.b16 %v388
    %v473 = vunpack.c.h.b16 %v388
    %v474 = vunpack.c.l.b16 %v389
    %v475 = vunpack.c.l.b16 %v390
    %v476 = vunpack.c.h.b16 %v390
    %v477 = vunpack.c.l.b16 %v391
    %v478 = vunpack.c.l.b16 %v392
    %v479 = vunpack.c.h.b16 %v392
    %v480 = vunpack.c.l.b16 %v393
    %v481 = vunpack.c.l.b16 %v394
    %v482 = vunpack.c.h.b16 %v394
    %v483 = vunpack.c.l.b16 %v395
    %v484 = vunpack.c.l.b16 %v396
    %v485 = vunpack.c.h.b16 %v396
    %v486 = vunpack.c.l.b16 %v397
    %v487 = vunpack.c.l.b16 %v398
    %v488 = vunpack.c.h.b16 %v398
    %v489 = vunpack.c.l.b16 %v399
    %v490 = vunpack.c.l.b16 %v400
    %v491 = vunpack.c.h.b16 %v400
    %v492 = vunpack.c.l.b16 %v401
    %v493 = vunpack.c.l.b16 %v402
    %v494 = vunpack.c.h.b16 %v402
    %v495 = vunpack.c.l.b16 %v403
    %v496 = vunpack.c.l.b16 %v404
    %v497 = vunpack.c.h.b16 %v404
    %v498 = vunpack.c.l.b16 %v405
    %v499 = vunpack.c.l.b16 %v406
    %v500 = vunpack.c.h.b16 %v406
    %v501 = vunpack.c.l.b16 %v407
    %v502 = vunpack.c.l.b16 %v408
    %v503 = vunpack.c.h.b16 %v408
    %v504 = vunpack.c.l.b16 %v409
    %v505 = vunpack.c.l.b16 %v410
    %v506 = vunpack.c.h.b16 %v410
    %v507 = vunpack.c.l.b16 %v411
    %v508 = vunpack.c.l.b16 %v412
    %v509 = vunpack.c.h.b16 %v412
    %v510 = vunpack.c.l.b16 %v413
    %v511 = vunpack.c.l.b16 %v414
    %v512 = vunpack.c.h.b16 %v414
    %v513 = vunpack.c.l.b16 %v415
    %v514 = vpack.c.b16 %v469, %v466
    %v515 = vpack.c.b16 %v470, %v467
    %v516 = vpack.c.b16 %v471, %v468
    %v517 = vpack.c.b16 %v475, %v472
    %v518 = vpack.c.b16 %v476, %v473
    %v519 = vpack.c.b16 %v477, %v474
    %v520 = vpack.c.b16 %v481, %v478
    %v521 = vpack.c.b16 %v482, %v479
    %v522 = vpack.c.b16 %v483, %v480
    %v523 = vpack.c.b16 %v487, %v484
    %v524 = vpack.c.b16 %v488, %v485
    %v525 = vpack.c.b16 %v489, %v486
    %v526 = vpack.c.b16 %v493, %v490
    %v527 = vpack.c.b16 %v494, %v491
    %v528 = vpack.c.b16 %v495, %v492
    %v529 = vpack.c.b16 %v499, %v496
    %v530 = vpack.c.b16 %v500, %v497
    %v531 = vpack.c.b16 %v501, %v498
    %v532 = vpack.c.b16 %v505, %v502
    %v533 = vpack.c.b16 %v506, %v503
    %v534 = vpack.c.b16 %v507, %v504
    %v535 = vpack.c.b16 %v511, %v508
    %v536 = vpack.c.b16 %v512, %v509
    %v537 = vpack.c.b16 %v513, %v510
    %562 = vmatprep.subr.bf16.mxu0 %v515
    %563 = vmatpush1.bf16.msra.mxu0 %v514
    %564 = vmatprep.subr.bf16.mxu0 %v518
    %565 = vmatpush1.bf16.msra.mxu0 %v517
    %566 = vmatprep.subr.bf16.mxu0 %v521
    %567 = vmatpush1.bf16.msra.mxu0 %v520
    %568 = vmatprep.subr.bf16.mxu0 %v524
    %569 = vmatpush1.bf16.msra.mxu0 %v523
    %570 = vmatprep.subr.bf16.mxu0 %v527
    %571 = vmatpush1.bf16.msra.mxu0 %v526
    %572 = vmatprep.subr.bf16.mxu0 %v530
    %573 = vmatpush1.bf16.msra.mxu0 %v529
    %574 = vmatprep.subr.bf16.mxu0 %v533
    %575 = vmatpush1.bf16.msra.mxu0 %v532
    %576 = vmatprep.subr.bf16.mxu0 %v536
    %577 = vmatpush1.bf16.msra.mxu0 %v535
    %578 = vmatprep.subr.bf16.mxu0 0
    %579 = vmatpush1.bf16.msra.mxu0 0
    %580 = vmatprep.subr.bf16.mxu0 0
    %581 = vmatpush1.bf16.msra.mxu0 0
    %582 = vmatprep.subr.bf16.mxu0 0
    %583 = vmatpush1.bf16.msra.mxu0 0
    %584 = vmatprep.subr.bf16.mxu0 0
    %585 = vmatpush1.bf16.msra.mxu0 0
    %586 = vmatprep.subr.bf16.mxu0 0
    %587 = vmatpush1.bf16.msra.mxu0 0
    %588 = vmatprep.subr.bf16.mxu0 0
    %589 = vmatpush1.bf16.msra.mxu0 0
    %590 = vmatprep.subr.bf16.mxu0 0
    %591 = vmatpush1.bf16.msra.mxu0 0
    %592 = vmatprep.subr.bf16.mxu0 0
    %593 = vmatpush1.bf16.msra.mxu0 0
    %594 = vmatprep.mubr.bf16.mxu0 0
    %595 = vmatmul.mubr.bf16.gmra.mrb[0].mxu0 %v417
    %v596 = vpop.f32.mrb[0].mxu0
    %v597 = vadd.f32 %v422, %v596
    %v598 = vpop.f32.mrb[0].mxu0
    %v599 = vadd.f32 %v426, %v598
    %v600 = vpop.f32.mrb[0].mxu0
    %v601 = vadd.f32 %v422, %v600
    %v602 = vpop.f32.mrb[0].mxu0
    %v603 = vadd.f32 %v426, %v602
    %604 = vdwg.mxu0
    %605 = vmatprep.subr.bf16.mxu0 0
    %606 = vmatpush1.bf16.msra.mxu0 %v516
    %607 = vmatprep.subr.bf16.mxu0 0
    %608 = vmatpush1.bf16.msra.mxu0 %v519
    %609 = vmatprep.subr.bf16.mxu0 0
    %610 = vmatpush1.bf16.msra.mxu0 %v522
    %611 = vmatprep.subr.bf16.mxu0 0
    %612 = vmatpush1.bf16.msra.mxu0 %v525
    %613 = vmatprep.subr.bf16.mxu0 0
    %614 = vmatpush1.bf16.msra.mxu0 %v528
    %615 = vmatprep.subr.bf16.mxu0 0
    %616 = vmatpush1.bf16.msra.mxu0 %v531
    %617 = vmatprep.subr.bf16.mxu0 0
    %618 = vmatpush1.bf16.msra.mxu0 %v534
    %619 = vmatprep.subr.bf16.mxu0 0
    %620 = vmatpush1.bf16.msra.mxu0 %v537
    %621 = vmatprep.subr.bf16.mxu0 0
    %622 = vmatpush1.bf16.msra.mxu0 0
    %623 = vmatprep.subr.bf16.mxu0 0
    %624 = vmatpush1.bf16.msra.mxu0 0
    %625 = vmatprep.subr.bf16.mxu0 0
    %626 = vmatpush1.bf16.msra.mxu0 0
    %627 = vmatprep.subr.bf16.mxu0 0
    %628 = vmatpush1.bf16.msra.mxu0 0
    %629 = vmatprep.subr.bf16.mxu0 0
    %630 = vmatpush1.bf16.msra.mxu0 0
    %631 = vmatprep.subr.bf16.mxu0 0
    %632 = vmatpush1.bf16.msra.mxu0 0
    %633 = vmatprep.subr.bf16.mxu0 0
    %634 = vmatpush1.bf16.msra.mxu0 0
    %635 = vmatprep.subr.bf16.mxu0 0
    %636 = vmatpush1.bf16.msra.mxu0 0
    %637 = vmatprep.mubr.bf16.mxu0 0
    %638 = vmatmul.mubr.bf16.gmra.mrb[0].mxu0 %v417
    %v639 = vpop.f32.mrb[0].mxu0
    %v640 = vadd.f32 %v430, %v639
    %v641 = vpop.f32.mrb[0].mxu0
    %v642 = vpop.f32.mrb[0].mxu0
    %v643 = vadd.f32 %v430, %v642
    %v644 = vpop.f32.mrb[0].mxu0
    %645 = vdwg.mxu0
    %v646 = vld [vmem:[%s2] sm:$0x1]
    %v647 = vsub.f32 1.0, %v646
    %v648 = vmul.f32 %v647, -1e+09
    %vm649 = vcmask 261120
    %v651 = vsel %vm649, %v597, 0
    %v654 = vsel %vm649, %v599, 0
    %656 = vmatprep.subr.mxu0 0.0
    %657 = vmatpush1.xpose.msra.mxu0 %v654
    %658 = vmatprep.subr.mxu0 0.0
    %659 = vmatpush1.xpose.msra.mxu0 0.0
    %660 = vmatprep.subr.mxu0 0.0
    %661 = vmatpush1.xpose.msra.mxu0 0.0
    %662 = vmatprep.subr.mxu0 0.0
    %663 = vmatpush1.xpose.msra.mxu0 0.0
    %664 = vmatprep.subr.mxu0 0.0
    %665 = vmatpush1.xpose.msra.mxu0 0.0
    %666 = vmatprep.subr.mxu0 0.0
    %667 = vmatpush1.xpose.msra.mxu0 0.0
    %668 = vmatprep.subr.mxu0 0.0
    %669 = vmatpush1.xpose.msra.mxu0 0.0
    %670 = vmatprep.subr.mxu0 0.0
    %671 = vmatpush1.xpose.msra.mxu0 0.0
    %672 = vmatprep.subr.mxu0 0.0
    %673 = vmatpush1.xpose.msra.mxu0 0.0
    %674 = vmatprep.subr.mxu0 0.0
    %675 = vmatpush1.xpose.msra.mxu0 0.0
    %676 = vmatprep.subr.mxu0 0.0
    %677 = vmatpush1.xpose.msra.mxu0 0.0
    %678 = vmatprep.subr.mxu0 0.0
    %679 = vmatpush1.xpose.msra.mxu0 0.0
    %680 = vmatprep.subr.mxu0 0.0
    %681 = vmatpush1.xpose.msra.mxu0 0.0
    %682 = vmatprep.subr.mxu0 0.0
    %683 = vmatpush1.xpose.msra.mxu0 0.0
    %684 = vmatprep.subr.mxu0 0.0
    %685 = vmatpush1.xpose.msra.mxu0 0.0
    %686 = vmatprep.subr.mxu0 0.0
    %687 = vmatpush1.xpose.msra.mxu0 0.0
    %688 = vmatprep.subr.mxu0 0.0
    %689 = vmatpush1.xpose.msra.mxu0 0.0
    %690 = vmatprep.subr.mxu0 0.0
    %691 = vmatpush1.xpose.msra.mxu0 0.0
    %692 = vmatprep.subr.mxu0 0.0
    %693 = vmatpush1.xpose.msra.mxu0 0.0
    %694 = vmatprep.subr.mxu0 0.0
    %695 = vmatpush1.xpose.msra.mxu0 0.0
    %696 = vmatprep.subr.mxu0 0.0
    %697 = vmatpush1.xpose.msra.mxu0 0.0
    %698 = vmatprep.subr.mxu0 0.0
    %699 = vmatpush1.xpose.msra.mxu0 0.0
    %700 = vmatprep.subr.mxu0 0.0
    %701 = vmatpush1.xpose.msra.mxu0 0.0
    %702 = vmatprep.subr.mxu0 0.0
    %703 = vmatpush1.xpose.msra.mxu0 0.0
    %704 = vmatprep.subr.mxu0 0.0
    %705 = vmatpush1.xpose.msra.mxu0 0.0
    %706 = vmatprep.subr.mxu0 0.0
    %707 = vmatpush1.xpose.msra.mxu0 0.0
    %708 = vmatprep.subr.mxu0 0.0
    %709 = vmatpush1.xpose.msra.mxu0 0.0
    %710 = vmatprep.subr.mxu0 0.0
    %711 = vmatpush1.xpose.msra.mxu0 0.0
    %712 = vmatprep.subr.mxu0 0.0
    %713 = vmatpush1.xpose.msra.mxu0 0.0
    %714 = vmatprep.subr.mxu0 0.0
    %715 = vmatpush1.xpose.msra.mxu0 0.0
    %716 = vmatprep.subr.mxu0 0.0
    %717 = vmatpush1.xpose.msra.mxu0 0.0
    %718 = vmatprep.subr.mxu0 0.0
    %719 = vmatpush1.xpose.msra.mxu0 0.0
    %720 = vmatprep.mubr.f32.mxu0 0.0
    %721 = vmatmul.mubr.f32.gmra.mrb[0].mxu0 %v651
    %v722 = vpop.f32.mrb[0].mxu0
    %v723 = vadd.f32 0.0, %v722
    %v724 = vpop.f32.mrb[0].mxu0
    %725 = vdwg.mxu0
    %v726 = vmul.f32 %v723, 0.17677669
    %v728 = vlaneseq
    %v729 = vshrl.u32 %v728, 7
    %v730 = vsub.s32 0, %v729
    %v731 = vrot.slane %v648, %v730
    %v733 = vadd.f32 %v726, %v731
    %vm734 = vcmask 64512
    %v735 = vsel %vm734, %v733, -inf
    %736 = vmax.xlane.f32.xlu0 %v735
    %v737 = vpop.xlane.xlu0 %736
    %v738 = vsub.f32 %v733, %v737
    %v739 = vmul.f32 %v738, 1.442695
    %v740 = vpow.pop %v739
    %v741 = vsel %vm734, %v740, 0.0
    %742 = vadd.xlane.f32.xlu0 %v741
    %v743 = vpop.xlane.xlu0 %742
    %v744 = vrcp.pop %v743
    %v745 = vmul.f32 %v740, %v744
    %v747 = vsel %vm734, %v745, 0
    %749 = vmatprep.subr.mxu0 0.0
    %750 = vmatpush1.msra.mxu0 %v640
    %751 = vmatprep.subr.mxu0 0.0
    %752 = vmatpush1.msra.mxu0 0.0
    %753 = vmatprep.subr.mxu0 0.0
    %754 = vmatpush1.msra.mxu0 0.0
    %755 = vmatprep.subr.mxu0 0.0
    %756 = vmatpush1.msra.mxu0 0.0
    %757 = vmatprep.subr.mxu0 0.0
    %758 = vmatpush1.msra.mxu0 0.0
    %759 = vmatprep.subr.mxu0 0.0
    %760 = vmatpush1.msra.mxu0 0.0
    %761 = vmatprep.subr.mxu0 0.0
    %762 = vmatpush1.msra.mxu0 0.0
    %763 = vmatprep.subr.mxu0 0.0
    %764 = vmatpush1.msra.mxu0 0.0
    %765 = vmatprep.subr.mxu0 0.0
    %766 = vmatpush1.msra.mxu0 0.0
    %767 = vmatprep.subr.mxu0 0.0
    %768 = vmatpush1.msra.mxu0 0.0
    %769 = vmatprep.subr.mxu0 0.0
    %770 = vmatpush1.msra.mxu0 0.0
    %771 = vmatprep.subr.mxu0 0.0
    %772 = vmatpush1.msra.mxu0 0.0
    %773 = vmatprep.subr.mxu0 0.0
    %774 = vmatpush1.msra.mxu0 0.0
    %775 = vmatprep.subr.mxu0 0.0
    %776 = vmatpush1.msra.mxu0 0.0
    %777 = vmatprep.subr.mxu0 0.0
    %778 = vmatpush1.msra.mxu0 0.0
    %779 = vmatprep.subr.mxu0 0.0
    %780 = vmatpush1.msra.mxu0 0.0
    %781 = vmatprep.subr.mxu0 0.0
    %782 = vmatpush1.msra.mxu0 0.0
    %783 = vmatprep.subr.mxu0 0.0
    %784 = vmatpush1.msra.mxu0 0.0
    %785 = vmatprep.subr.mxu0 0.0
    %786 = vmatpush1.msra.mxu0 0.0
    %787 = vmatprep.subr.mxu0 0.0
    %788 = vmatpush1.msra.mxu0 0.0
    %789 = vmatprep.subr.mxu0 0.0
    %790 = vmatpush1.msra.mxu0 0.0
    %791 = vmatprep.subr.mxu0 0.0
    %792 = vmatpush1.msra.mxu0 0.0
    %793 = vmatprep.subr.mxu0 0.0
    %794 = vmatpush1.msra.mxu0 0.0
    %795 = vmatprep.subr.mxu0 0.0
    %796 = vmatpush1.msra.mxu0 0.0
    %797 = vmatprep.subr.mxu0 0.0
    %798 = vmatpush1.msra.mxu0 0.0
    %799 = vmatprep.subr.mxu0 0.0
    %800 = vmatpush1.msra.mxu0 0.0
    %801 = vmatprep.subr.mxu0 0.0
    %802 = vmatpush1.msra.mxu0 0.0
    %803 = vmatprep.subr.mxu0 0.0
    %804 = vmatpush1.msra.mxu0 0.0
    %805 = vmatprep.subr.mxu0 0.0
    %806 = vmatpush1.msra.mxu0 0.0
    %807 = vmatprep.subr.mxu0 0.0
    %808 = vmatpush1.msra.mxu0 0.0
    %809 = vmatprep.subr.mxu0 0.0
    %810 = vmatpush1.msra.mxu0 0.0
    %811 = vmatprep.subr.mxu0 0.0
    %812 = vmatpush1.msra.mxu0 0.0
    %813 = vmatprep.mubr.f32.mxu0 0.0
    %814 = vmatmul.mubr.f32.gmra.mrb[0].mxu0 %v747
    %v815 = vpop.f32.mrb[0].mxu0
    %v816 = vadd.f32 0.0, %v815
    %v817 = vpop.f32.mrb[0].mxu0
    %818 = vdwg.mxu0
    %819 = vrot.lane.b32.xlu0 %v597, 96
    %v820 = vpop.permute.xlu0 %819
    %821 = vrot.lane.b32.xlu0 %v599, 96
    %v822 = vpop.permute.xlu0 %821
    %v823 = vsel %vm649, %v820, 0
    %v825 = vsel %vm649, %v822, 0
    %827 = vmatprep.subr.mxu0 0.0
    %828 = vmatpush1.xpose.msra.mxu0 %v825
    %829 = vmatprep.subr.mxu0 0.0
    %830 = vmatpush1.xpose.msra.mxu0 0.0
    %831 = vmatprep.subr.mxu0 0.0
    %832 = vmatpush1.xpose.msra.mxu0 0.0
    %833 = vmatprep.subr.mxu0 0.0
    %834 = vmatpush1.xpose.msra.mxu0 0.0
    %835 = vmatprep.subr.mxu0 0.0
    %836 = vmatpush1.xpose.msra.mxu0 0.0
    %837 = vmatprep.subr.mxu0 0.0
    %838 = vmatpush1.xpose.msra.mxu0 0.0
    %839 = vmatprep.subr.mxu0 0.0
    %840 = vmatpush1.xpose.msra.mxu0 0.0
    %841 = vmatprep.subr.mxu0 0.0
    %842 = vmatpush1.xpose.msra.mxu0 0.0
    %843 = vmatprep.subr.mxu0 0.0
    %844 = vmatpush1.xpose.msra.mxu0 0.0
    %845 = vmatprep.subr.mxu0 0.0
    %846 = vmatpush1.xpose.msra.mxu0 0.0
    %847 = vmatprep.subr.mxu0 0.0
    %848 = vmatpush1.xpose.msra.mxu0 0.0
    %849 = vmatprep.subr.mxu0 0.0
    %850 = vmatpush1.xpose.msra.mxu0 0.0
    %851 = vmatprep.subr.mxu0 0.0
    %852 = vmatpush1.xpose.msra.mxu0 0.0
    %853 = vmatprep.subr.mxu0 0.0
    %854 = vmatpush1.xpose.msra.mxu0 0.0
    %855 = vmatprep.subr.mxu0 0.0
    %856 = vmatpush1.xpose.msra.mxu0 0.0
    %857 = vmatprep.subr.mxu0 0.0
    %858 = vmatpush1.xpose.msra.mxu0 0.0
    %859 = vmatprep.subr.mxu0 0.0
    %860 = vmatpush1.xpose.msra.mxu0 0.0
    %861 = vmatprep.subr.mxu0 0.0
    %862 = vmatpush1.xpose.msra.mxu0 0.0
    %863 = vmatprep.subr.mxu0 0.0
    %864 = vmatpush1.xpose.msra.mxu0 0.0
    %865 = vmatprep.subr.mxu0 0.0
    %866 = vmatpush1.xpose.msra.mxu0 0.0
    %867 = vmatprep.subr.mxu0 0.0
    %868 = vmatpush1.xpose.msra.mxu0 0.0
    %869 = vmatprep.subr.mxu0 0.0
    %870 = vmatpush1.xpose.msra.mxu0 0.0
    %871 = vmatprep.subr.mxu0 0.0
    %872 = vmatpush1.xpose.msra.mxu0 0.0
    %873 = vmatprep.subr.mxu0 0.0
    %874 = vmatpush1.xpose.msra.mxu0 0.0
    %875 = vmatprep.subr.mxu0 0.0
    %876 = vmatpush1.xpose.msra.mxu0 0.0
    %877 = vmatprep.subr.mxu0 0.0
    %878 = vmatpush1.xpose.msra.mxu0 0.0
    %879 = vmatprep.subr.mxu0 0.0
    %880 = vmatpush1.xpose.msra.mxu0 0.0
    %881 = vmatprep.subr.mxu0 0.0
    %882 = vmatpush1.xpose.msra.mxu0 0.0
    %883 = vmatprep.subr.mxu0 0.0
    %884 = vmatpush1.xpose.msra.mxu0 0.0
    %885 = vmatprep.subr.mxu0 0.0
    %886 = vmatpush1.xpose.msra.mxu0 0.0
    %887 = vmatprep.subr.mxu0 0.0
    %888 = vmatpush1.xpose.msra.mxu0 0.0
    %889 = vmatprep.subr.mxu0 0.0
    %890 = vmatpush1.xpose.msra.mxu0 0.0
    %891 = vmatprep.mubr.f32.mxu0 0.0
    %892 = vmatmul.mubr.f32.gmra.mrb[0].mxu0 %v823
    %v893 = vpop.f32.mrb[0].mxu0
    %v894 = vadd.f32 0.0, %v893
    %v895 = vpop.f32.mrb[0].mxu0
    %896 = vdwg.mxu0
    %v897 = vmul.f32 %v894, 0.17677669
    %v898 = vadd.f32 %v897, %v731
    %v899 = vsel %vm734, %v898, -inf
    %900 = vmax.xlane.f32.xlu0 %v899
    %v901 = vpop.xlane.xlu0 %900
    %v902 = vsub.f32 %v898, %v901
    %v903 = vmul.f32 %v902, 1.442695
    %v904 = vpow.pop %v903
    %v905 = vsel %vm734, %v904, 0.0
    %906 = vadd.xlane.f32.xlu0 %v905
    %v907 = vpop.xlane.xlu0 %906
    %v908 = vrcp.pop %v907
    %v909 = vmul.f32 %v904, %v908
    %911 = vrot.lane.b32.xlu0 %v640, 96
    %v912 = vpop.permute.xlu0 %911
    %v915 = vsel %vm734, %v909, 0
    %917 = vmatprep.subr.mxu0 0.0
    %918 = vmatpush1.msra.mxu0 %v912
    %919 = vmatprep.subr.mxu0 0.0
    %920 = vmatpush1.msra.mxu0 0.0
    %921 = vmatprep.subr.mxu0 0.0
    %922 = vmatpush1.msra.mxu0 0.0
    %923 = vmatprep.subr.mxu0 0.0
    %924 = vmatpush1.msra.mxu0 0.0
    %925 = vmatprep.subr.mxu0 0.0
    %926 = vmatpush1.msra.mxu0 0.0
    %927 = vmatprep.subr.mxu0 0.0
    %928 = vmatpush1.msra.mxu0 0.0
    %929 = vmatprep.subr.mxu0 0.0
    %930 = vmatpush1.msra.mxu0 0.0
    %931 = vmatprep.subr.mxu0 0.0
    %932 = vmatpush1.msra.mxu0 0.0
    %933 = vmatprep.subr.mxu0 0.0
    %934 = vmatpush1.msra.mxu0 0.0
    %935 = vmatprep.subr.mxu0 0.0
    %936 = vmatpush1.msra.mxu0 0.0
    %937 = vmatprep.subr.mxu0 0.0
    %938 = vmatpush1.msra.mxu0 0.0
    %939 = vmatprep.subr.mxu0 0.0
    %940 = vmatpush1.msra.mxu0 0.0
    %941 = vmatprep.subr.mxu0 0.0
    %942 = vmatpush1.msra.mxu0 0.0
    %943 = vmatprep.subr.mxu0 0.0
    %944 = vmatpush1.msra.mxu0 0.0
    %945 = vmatprep.subr.mxu0 0.0
    %946 = vmatpush1.msra.mxu0 0.0
    %947 = vmatprep.subr.mxu0 0.0
    %948 = vmatpush1.msra.mxu0 0.0
    %949 = vmatprep.subr.mxu0 0.0
    %950 = vmatpush1.msra.mxu0 0.0
    %951 = vmatprep.subr.mxu0 0.0
    %952 = vmatpush1.msra.mxu0 0.0
    %953 = vmatprep.subr.mxu0 0.0
    %954 = vmatpush1.msra.mxu0 0.0
    %955 = vmatprep.subr.mxu0 0.0
    %956 = vmatpush1.msra.mxu0 0.0
    %957 = vmatprep.subr.mxu0 0.0
    %958 = vmatpush1.msra.mxu0 0.0
    %959 = vmatprep.subr.mxu0 0.0
    %960 = vmatpush1.msra.mxu0 0.0
    %961 = vmatprep.subr.mxu0 0.0
    %962 = vmatpush1.msra.mxu0 0.0
    %963 = vmatprep.subr.mxu0 0.0
    %964 = vmatpush1.msra.mxu0 0.0
    %965 = vmatprep.subr.mxu0 0.0
    %966 = vmatpush1.msra.mxu0 0.0
    %967 = vmatprep.subr.mxu0 0.0
    %968 = vmatpush1.msra.mxu0 0.0
    %969 = vmatprep.subr.mxu0 0.0
    %970 = vmatpush1.msra.mxu0 0.0
    %971 = vmatprep.subr.mxu0 0.0
    %972 = vmatpush1.msra.mxu0 0.0
    %973 = vmatprep.subr.mxu0 0.0
    %974 = vmatpush1.msra.mxu0 0.0
    %975 = vmatprep.subr.mxu0 0.0
    %976 = vmatpush1.msra.mxu0 0.0
    %977 = vmatprep.subr.mxu0 0.0
    %978 = vmatpush1.msra.mxu0 0.0
    %979 = vmatprep.subr.mxu0 0.0
    %980 = vmatpush1.msra.mxu0 0.0
    %981 = vmatprep.mubr.f32.mxu0 0.0
    %982 = vmatmul.mubr.f32.gmra.mrb[0].mxu0 %v915
    %v983 = vpop.f32.mrb[0].mxu0
    %v984 = vadd.f32 0.0, %v983
    %v985 = vpop.f32.mrb[0].mxu0
    %986 = vdwg.mxu0
    %987 = vrot.lane.b32.xlu0 %v597, 64
    %v988 = vpop.permute.xlu0 %987
    %989 = vrot.lane.b32.xlu0 %v599, 64
    %v990 = vpop.permute.xlu0 %989
    %v991 = vsel %vm649, %v988, 0
    %v993 = vsel %vm649, %v990, 0
    %995 = vmatprep.subr.mxu0 0.0
    %996 = vmatpush1.xpose.msra.mxu0 %v993
    %997 = vmatprep.subr.mxu0 0.0
    %998 = vmatpush1.xpose.msra.mxu0 0.0
    %999 = vmatprep.subr.mxu0 0.0
    %1000 = vmatpush1.xpose.msra.mxu0 0.0
    %1001 = vmatprep.subr.mxu0 0.0
    %1002 = vmatpush1.xpose.msra.mxu0 0.0
    %1003 = vmatprep.subr.mxu0 0.0
    %1004 = vmatpush1.xpose.msra.mxu0 0.0
    %1005 = vmatprep.subr.mxu0 0.0
    %1006 = vmatpush1.xpose.msra.mxu0 0.0
    %1007 = vmatprep.subr.mxu0 0.0
    %1008 = vmatpush1.xpose.msra.mxu0 0.0
    %1009 = vmatprep.subr.mxu0 0.0
    %1010 = vmatpush1.xpose.msra.mxu0 0.0
    %1011 = vmatprep.subr.mxu0 0.0
    %1012 = vmatpush1.xpose.msra.mxu0 0.0
    %1013 = vmatprep.subr.mxu0 0.0
    %1014 = vmatpush1.xpose.msra.mxu0 0.0
    %1015 = vmatprep.subr.mxu0 0.0
    %1016 = vmatpush1.xpose.msra.mxu0 0.0
    %1017 = vmatprep.subr.mxu0 0.0
    %1018 = vmatpush1.xpose.msra.mxu0 0.0
    %1019 = vmatprep.subr.mxu0 0.0
    %1020 = vmatpush1.xpose.msra.mxu0 0.0
    %1021 = vmatprep.subr.mxu0 0.0
    %1022 = vmatpush1.xpose.msra.mxu0 0.0
    %1023 = vmatprep.subr.mxu0 0.0
    %1024 = vmatpush1.xpose.msra.mxu0 0.0
    %1025 = vmatprep.subr.mxu0 0.0
    %1026 = vmatpush1.xpose.msra.mxu0 0.0
    %1027 = vmatprep.subr.mxu0 0.0
    %1028 = vmatpush1.xpose.msra.mxu0 0.0
    %1029 = vmatprep.subr.mxu0 0.0
    %1030 = vmatpush1.xpose.msra.mxu0 0.0
    %1031 = vmatprep.subr.mxu0 0.0
    %1032 = vmatpush1.xpose.msra.mxu0 0.0
    %1033 = vmatprep.subr.mxu0 0.0
    %1034 = vmatpush1.xpose.msra.mxu0 0.0
    %1035 = vmatprep.subr.mxu0 0.0
    %1036 = vmatpush1.xpose.msra.mxu0 0.0
    %1037 = vmatprep.subr.mxu0 0.0
    %1038 = vmatpush1.xpose.msra.mxu0 0.0
    %1039 = vmatprep.subr.mxu0 0.0
    %1040 = vmatpush1.xpose.msra.mxu0 0.0
    %1041 = vmatprep.subr.mxu0 0.0
    %1042 = vmatpush1.xpose.msra.mxu0 0.0
    %1043 = vmatprep.subr.mxu0 0.0
    %1044 = vmatpush1.xpose.msra.mxu0 0.0
    %1045 = vmatprep.subr.mxu0 0.0
    %1046 = vmatpush1.xpose.msra.mxu0 0.0
    %1047 = vmatprep.subr.mxu0 0.0
    %1048 = vmatpush1.xpose.msra.mxu0 0.0
    %1049 = vmatprep.subr.mxu0 0.0
    %1050 = vmatpush1.xpose.msra.mxu0 0.0
    %1051 = vmatprep.subr.mxu0 0.0
    %1052 = vmatpush1.xpose.msra.mxu0 0.0
    %1053 = vmatprep.subr.mxu0 0.0
    %1054 = vmatpush1.xpose.msra.mxu0 0.0
    %1055 = vmatprep.subr.mxu0 0.0
    %1056 = vmatpush1.xpose.msra.mxu0 0.0
    %1057 = vmatprep.subr.mxu0 0.0
    %1058 = vmatpush1.xpose.msra.mxu0 0.0
    %1059 = vmatprep.mubr.f32.mxu0 0.0
    %1060 = vmatmul.mubr.f32.gmra.mrb[0].mxu0 %v991
    %v1061 = vpop.f32.mrb[0].mxu0
    %v1062 = vadd.f32 0.0, %v1061
    %v1063 = vpop.f32.mrb[0].mxu0
    %1064 = vdwg.mxu0
    %v1065 = vmul.f32 %v1062, 0.17677669
    %v1066 = vadd.f32 %v1065, %v731
    %v1067 = vsel %vm734, %v1066, -inf
    %1068 = vmax.xlane.f32.xlu0 %v1067
    %v1069 = vpop.xlane.xlu0 %1068
    %v1070 = vsub.f32 %v1066, %v1069
    %v1071 = vmul.f32 %v1070, 1.442695
    %v1072 = vpow.pop %v1071
    %v1073 = vsel %vm734, %v1072, 0.0
    %1074 = vadd.xlane.f32.xlu0 %v1073
    %v1075 = vpop.xlane.xlu0 %1074
    %v1076 = vrcp.pop %v1075
    %v1077 = vmul.f32 %v1072, %v1076
    %1078 = vrot.lane.b32.xlu0 %v640, 64
    %v1079 = vpop.permute.xlu0 %1078
    %v1082 = vsel %vm734, %v1077, 0
    %1084 = vmatprep.subr.mxu0 0.0
    %1085 = vmatpush1.msra.mxu0 %v1079
    %1086 = vmatprep.subr.mxu0 0.0
    %1087 = vmatpush1.msra.mxu0 0.0
    %1088 = vmatprep.subr.mxu0 0.0
    %1089 = vmatpush1.msra.mxu0 0.0
    %1090 = vmatprep.subr.mxu0 0.0
    %1091 = vmatpush1.msra.mxu0 0.0
    %1092 = vmatprep.subr.mxu0 0.0
    %1093 = vmatpush1.msra.mxu0 0.0
    %1094 = vmatprep.subr.mxu0 0.0
    %1095 = vmatpush1.msra.mxu0 0.0
    %1096 = vmatprep.subr.mxu0 0.0
    %1097 = vmatpush1.msra.mxu0 0.0
    %1098 = vmatprep.subr.mxu0 0.0
    %1099 = vmatpush1.msra.mxu0 0.0
    %1100 = vmatprep.subr.mxu0 0.0
    %1101 = vmatpush1.msra.mxu0 0.0
    %1102 = vmatprep.subr.mxu0 0.0
    %1103 = vmatpush1.msra.mxu0 0.0
    %1104 = vmatprep.subr.mxu0 0.0
    %1105 = vmatpush1.msra.mxu0 0.0
    %1106 = vmatprep.subr.mxu0 0.0
    %1107 = vmatpush1.msra.mxu0 0.0
    %1108 = vmatprep.subr.mxu0 0.0
    %1109 = vmatpush1.msra.mxu0 0.0
    %1110 = vmatprep.subr.mxu0 0.0
    %1111 = vmatpush1.msra.mxu0 0.0
    %1112 = vmatprep.subr.mxu0 0.0
    %1113 = vmatpush1.msra.mxu0 0.0
    %1114 = vmatprep.subr.mxu0 0.0
    %1115 = vmatpush1.msra.mxu0 0.0
    %1116 = vmatprep.subr.mxu0 0.0
    %1117 = vmatpush1.msra.mxu0 0.0
    %1118 = vmatprep.subr.mxu0 0.0
    %1119 = vmatpush1.msra.mxu0 0.0
    %1120 = vmatprep.subr.mxu0 0.0
    %1121 = vmatpush1.msra.mxu0 0.0
    %1122 = vmatprep.subr.mxu0 0.0
    %1123 = vmatpush1.msra.mxu0 0.0
    %1124 = vmatprep.subr.mxu0 0.0
    %1125 = vmatpush1.msra.mxu0 0.0
    %1126 = vmatprep.subr.mxu0 0.0
    %1127 = vmatpush1.msra.mxu0 0.0
    %1128 = vmatprep.subr.mxu0 0.0
    %1129 = vmatpush1.msra.mxu0 0.0
    %1130 = vmatprep.subr.mxu0 0.0
    %1131 = vmatpush1.msra.mxu0 0.0
    %1132 = vmatprep.subr.mxu0 0.0
    %1133 = vmatpush1.msra.mxu0 0.0
    %1134 = vmatprep.subr.mxu0 0.0
    %1135 = vmatpush1.msra.mxu0 0.0
    %1136 = vmatprep.subr.mxu0 0.0
    %1137 = vmatpush1.msra.mxu0 0.0
    %1138 = vmatprep.subr.mxu0 0.0
    %1139 = vmatpush1.msra.mxu0 0.0
    %1140 = vmatprep.subr.mxu0 0.0
    %1141 = vmatpush1.msra.mxu0 0.0
    %1142 = vmatprep.subr.mxu0 0.0
    %1143 = vmatpush1.msra.mxu0 0.0
    %1144 = vmatprep.subr.mxu0 0.0
    %1145 = vmatpush1.msra.mxu0 0.0
    %1146 = vmatprep.subr.mxu0 0.0
    %1147 = vmatpush1.msra.mxu0 0.0
    %1148 = vmatprep.mubr.f32.mxu0 0.0
    %1149 = vmatmul.mubr.f32.gmra.mrb[0].mxu0 %v1082
    %v1150 = vpop.f32.mrb[0].mxu0
    %v1151 = vadd.f32 0.0, %v1150
    %v1152 = vpop.f32.mrb[0].mxu0
    %1153 = vdwg.mxu0
    %1154 = vrot.lane.b32.xlu0 %v597, 32
    %v1155 = vpop.permute.xlu0 %1154
    %1156 = vrot.lane.b32.xlu0 %v599, 32
    %v1157 = vpop.permute.xlu0 %1156
    %v1158 = vsel %vm649, %v1155, 0
    %v1160 = vsel %vm649, %v1157, 0
    %1162 = vmatprep.subr.mxu0 0.0
    %1163 = vmatpush1.xpose.msra.mxu0 %v1160
    %1164 = vmatprep.subr.mxu0 0.0
    %1165 = vmatpush1.xpose.msra.mxu0 0.0
    %1166 = vmatprep.subr.mxu0 0.0
    %1167 = vmatpush1.xpose.msra.mxu0 0.0
    %1168 = vmatprep.subr.mxu0 0.0
    %1169 = vmatpush1.xpose.msra.mxu0 0.0
    %1170 = vmatprep.subr.mxu0 0.0
    %1171 = vmatpush1.xpose.msra.mxu0 0.0
    %1172 = vmatprep.subr.mxu0 0.0
    %1173 = vmatpush1.xpose.msra.mxu0 0.0
    %1174 = vmatprep.subr.mxu0 0.0
    %1175 = vmatpush1.xpose.msra.mxu0 0.0
    %1176 = vmatprep.subr.mxu0 0.0
    %1177 = vmatpush1.xpose.msra.mxu0 0.0
    %1178 = vmatprep.subr.mxu0 0.0
    %1179 = vmatpush1.xpose.msra.mxu0 0.0
    %1180 = vmatprep.subr.mxu0 0.0
    %1181 = vmatpush1.xpose.msra.mxu0 0.0
    %1182 = vmatprep.subr.mxu0 0.0
    %1183 = vmatpush1.xpose.msra.mxu0 0.0
    %1184 = vmatprep.subr.mxu0 0.0
    %1185 = vmatpush1.xpose.msra.mxu0 0.0
    %1186 = vmatprep.subr.mxu0 0.0
    %1187 = vmatpush1.xpose.msra.mxu0 0.0
    %1188 = vmatprep.subr.mxu0 0.0
    %1189 = vmatpush1.xpose.msra.mxu0 0.0
    %1190 = vmatprep.subr.mxu0 0.0
    %1191 = vmatpush1.xpose.msra.mxu0 0.0
    %1192 = vmatprep.subr.mxu0 0.0
    %1193 = vmatpush1.xpose.msra.mxu0 0.0
    %1194 = vmatprep.subr.mxu0 0.0
    %1195 = vmatpush1.xpose.msra.mxu0 0.0
    %1196 = vmatprep.subr.mxu0 0.0
    %1197 = vmatpush1.xpose.msra.mxu0 0.0
    %1198 = vmatprep.subr.mxu0 0.0
    %1199 = vmatpush1.xpose.msra.mxu0 0.0
    %1200 = vmatprep.subr.mxu0 0.0
    %1201 = vmatpush1.xpose.msra.mxu0 0.0
    %1202 = vmatprep.subr.mxu0 0.0
    %1203 = vmatpush1.xpose.msra.mxu0 0.0
    %1204 = vmatprep.subr.mxu0 0.0
    %1205 = vmatpush1.xpose.msra.mxu0 0.0
    %1206 = vmatprep.subr.mxu0 0.0
    %1207 = vmatpush1.xpose.msra.mxu0 0.0
    %1208 = vmatprep.subr.mxu0 0.0
    %1209 = vmatpush1.xpose.msra.mxu0 0.0
    %1210 = vmatprep.subr.mxu0 0.0
    %1211 = vmatpush1.xpose.msra.mxu0 0.0
    %1212 = vmatprep.subr.mxu0 0.0
    %1213 = vmatpush1.xpose.msra.mxu0 0.0
    %1214 = vmatprep.subr.mxu0 0.0
    %1215 = vmatpush1.xpose.msra.mxu0 0.0
    %1216 = vmatprep.subr.mxu0 0.0
    %1217 = vmatpush1.xpose.msra.mxu0 0.0
    %1218 = vmatprep.subr.mxu0 0.0
    %1219 = vmatpush1.xpose.msra.mxu0 0.0
    %1220 = vmatprep.subr.mxu0 0.0
    %1221 = vmatpush1.xpose.msra.mxu0 0.0
    %1222 = vmatprep.subr.mxu0 0.0
    %1223 = vmatpush1.xpose.msra.mxu0 0.0
    %1224 = vmatprep.subr.mxu0 0.0
    %1225 = vmatpush1.xpose.msra.mxu0 0.0
    %1226 = vmatprep.mubr.f32.mxu0 0.0
    %1227 = vmatmul.mubr.f32.gmra.mrb[0].mxu0 %v1158
    %v1228 = vpop.f32.mrb[0].mxu0
    %v1229 = vadd.f32 0.0, %v1228
    %v1230 = vpop.f32.mrb[0].mxu0
    %1231 = vdwg.mxu0
    %v1232 = vmul.f32 %v1229, 0.17677669
    %v1233 = vadd.f32 %v1232, %v731
    %v1234 = vsel %vm734, %v1233, -inf
    %1235 = vmax.xlane.f32.xlu0 %v1234
    %v1236 = vpop.xlane.xlu0 %1235
    %v1237 = vsub.f32 %v1233, %v1236
    %v1238 = vmul.f32 %v1237, 1.442695
    %v1239 = vpow.pop %v1238
    %v1240 = vsel %vm734, %v1239, 0.0
    %1241 = vadd.xlane.f32.xlu0 %v1240
    %v1242 = vpop.xlane.xlu0 %1241
    %v1243 = vrcp.pop %v1242
    %v1244 = vmul.f32 %v1239, %v1243
    %1245 = vrot.lane.b32.xlu0 %v640, 32
    %v1246 = vpop.permute.xlu0 %1245
    %v1249 = vsel %vm734, %v1244, 0
    %1251 = vmatprep.subr.mxu0 0.0
    %1252 = vmatpush1.msra.mxu0 %v1246
    %1253 = vmatprep.subr.mxu0 0.0
    %1254 = vmatpush1.msra.mxu0 0.0
    %1255 = vmatprep.subr.mxu0 0.0
    %1256 = vmatpush1.msra.mxu0 0.0
    %1257 = vmatprep.subr.mxu0 0.0
    %1258 = vmatpush1.msra.mxu0 0.0
    %1259 = vmatprep.subr.mxu0 0.0
    %1260 = vmatpush1.msra.mxu0 0.0
    %1261 = vmatprep.subr.mxu0 0.0
    %1262 = vmatpush1.msra.mxu0 0.0
    %1263 = vmatprep.subr.mxu0 0.0
    %1264 = vmatpush1.msra.mxu0 0.0
    %1265 = vmatprep.subr.mxu0 0.0
    %1266 = vmatpush1.msra.mxu0 0.0
    %1267 = vmatprep.subr.mxu0 0.0
    %1268 = vmatpush1.msra.mxu0 0.0
    %1269 = vmatprep.subr.mxu0 0.0
    %1270 = vmatpush1.msra.mxu0 0.0
    %1271 = vmatprep.subr.mxu0 0.0
    %1272 = vmatpush1.msra.mxu0 0.0
    %1273 = vmatprep.subr.mxu0 0.0
    %1274 = vmatpush1.msra.mxu0 0.0
    %1275 = vmatprep.subr.mxu0 0.0
    %1276 = vmatpush1.msra.mxu0 0.0
    %1277 = vmatprep.subr.mxu0 0.0
    %1278 = vmatpush1.msra.mxu0 0.0
    %1279 = vmatprep.subr.mxu0 0.0
    %1280 = vmatpush1.msra.mxu0 0.0
    %1281 = vmatprep.subr.mxu0 0.0
    %1282 = vmatpush1.msra.mxu0 0.0
    %1283 = vmatprep.subr.mxu0 0.0
    %1284 = vmatpush1.msra.mxu0 0.0
    %1285 = vmatprep.subr.mxu0 0.0
    %1286 = vmatpush1.msra.mxu0 0.0
    %1287 = vmatprep.subr.mxu0 0.0
    %1288 = vmatpush1.msra.mxu0 0.0
    %1289 = vmatprep.subr.mxu0 0.0
    %1290 = vmatpush1.msra.mxu0 0.0
    %1291 = vmatprep.subr.mxu0 0.0
    %1292 = vmatpush1.msra.mxu0 0.0
    %1293 = vmatprep.subr.mxu0 0.0
    %1294 = vmatpush1.msra.mxu0 0.0
    %1295 = vmatprep.subr.mxu0 0.0
    %1296 = vmatpush1.msra.mxu0 0.0
    %1297 = vmatprep.subr.mxu0 0.0
    %1298 = vmatpush1.msra.mxu0 0.0
    %1299 = vmatprep.subr.mxu0 0.0
    %1300 = vmatpush1.msra.mxu0 0.0
    %1301 = vmatprep.subr.mxu0 0.0
    %1302 = vmatpush1.msra.mxu0 0.0
    %1303 = vmatprep.subr.mxu0 0.0
    %1304 = vmatpush1.msra.mxu0 0.0
    %1305 = vmatprep.subr.mxu0 0.0
    %1306 = vmatpush1.msra.mxu0 0.0
    %1307 = vmatprep.subr.mxu0 0.0
    %1308 = vmatpush1.msra.mxu0 0.0
    %1309 = vmatprep.subr.mxu0 0.0
    %1310 = vmatpush1.msra.mxu0 0.0
    %1311 = vmatprep.subr.mxu0 0.0
    %1312 = vmatpush1.msra.mxu0 0.0
    %1313 = vmatprep.subr.mxu0 0.0
    %1314 = vmatpush1.msra.mxu0 0.0
    %1315 = vmatprep.mubr.f32.mxu0 0.0
    %1316 = vmatmul.mubr.f32.gmra.mrb[0].mxu0 %v1249
    %v1317 = vpop.f32.mrb[0].mxu0
    %v1318 = vadd.f32 0.0, %v1317
    %v1319 = vpop.f32.mrb[0].mxu0
    %1320 = vdwg.mxu0
    %1322 = vrot.lane.b32.xlu0 %v984, 32
    %v1323 = vpop.permute.xlu0 %1322
    %1326 = vrot.lane.b32.xlu0 %v1151, 64
    %v1327 = vpop.permute.xlu0 %1326
    %1330 = vrot.lane.b32.xlu0 %v1318, 96
    %v1331 = vpop.permute.xlu0 %1330
    %v1333 = vsel %vm649, %v816, %v1323
    %vm1334 = vcmask 523264
    %v1335 = vsel %vm1334, %v1333, %v1327
    %vm1336 = vcmask 785408
    %v1337 = vsel %vm1336, %v1335, %v1331
    %s1338 = scalar_lea.vmem %s2, 1
    %v1339 = vld [vmem:[%s1338] sm:$0x1]
    %v1340 = vsub.f32 1.0, %v1339
    %v1341 = vmul.f32 %v1340, -1e+09
    %v1343 = vsel %vm649, %v601, 0
    %v1346 = vsel %vm649, %v603, 0
    %1348 = vmatprep.subr.mxu0 0.0
    %1349 = vmatpush1.xpose.msra.mxu0 %v1346
    %1350 = vmatprep.subr.mxu0 0.0
    %1351 = vmatpush1.xpose.msra.mxu0 0.0
    %1352 = vmatprep.subr.mxu0 0.0
    %1353 = vmatpush1.xpose.msra.mxu0 0.0
    %1354 = vmatprep.subr.mxu0 0.0
    %1355 = vmatpush1.xpose.msra.mxu0 0.0
    %1356 = vmatprep.subr.mxu0 0.0
    %1357 = vmatpush1.xpose.msra.mxu0 0.0
    %1358 = vmatprep.subr.mxu0 0.0
    %1359 = vmatpush1.xpose.msra.mxu0 0.0
    %1360 = vmatprep.subr.mxu0 0.0
    %1361 = vmatpush1.xpose.msra.mxu0 0.0
    %1362 = vmatprep.subr.mxu0 0.0
    %1363 = vmatpush1.xpose.msra.mxu0 0.0
    %1364 = vmatprep.subr.mxu0 0.0
    %1365 = vmatpush1.xpose.msra.mxu0 0.0
    %1366 = vmatprep.subr.mxu0 0.0
    %1367 = vmatpush1.xpose.msra.mxu0 0.0
    %1368 = vmatprep.subr.mxu0 0.0
    %1369 = vmatpush1.xpose.msra.mxu0 0.0
    %1370 = vmatprep.subr.mxu0 0.0
    %1371 = vmatpush1.xpose.msra.mxu0 0.0
    %1372 = vmatprep.subr.mxu0 0.0
    %1373 = vmatpush1.xpose.msra.mxu0 0.0
    %1374 = vmatprep.subr.mxu0 0.0
    %1375 = vmatpush1.xpose.msra.mxu0 0.0
    %1376 = vmatprep.subr.mxu0 0.0
    %1377 = vmatpush1.xpose.msra.mxu0 0.0
    %1378 = vmatprep.subr.mxu0 0.0
    %1379 = vmatpush1.xpose.msra.mxu0 0.0
    %1380 = vmatprep.subr.mxu0 0.0
    %1381 = vmatpush1.xpose.msra.mxu0 0.0
    %1382 = vmatprep.subr.mxu0 0.0
    %1383 = vmatpush1.xpose.msra.mxu0 0.0
    %1384 = vmatprep.subr.mxu0 0.0
    %1385 = vmatpush1.xpose.msra.mxu0 0.0
    %1386 = vmatprep.subr.mxu0 0.0
    %1387 = vmatpush1.xpose.msra.mxu0 0.0
    %1388 = vmatprep.subr.mxu0 0.0
    %1389 = vmatpush1.xpose.msra.mxu0 0.0
    %1390 = vmatprep.subr.mxu0 0.0
    %1391 = vmatpush1.xpose.msra.mxu0 0.0
    %1392 = vmatprep.subr.mxu0 0.0
    %1393 = vmatpush1.xpose.msra.mxu0 0.0
    %1394 = vmatprep.subr.mxu0 0.0
    %1395 = vmatpush1.xpose.msra.mxu0 0.0
    %1396 = vmatprep.subr.mxu0 0.0
    %1397 = vmatpush1.xpose.msra.mxu0 0.0
    %1398 = vmatprep.subr.mxu0 0.0
    %1399 = vmatpush1.xpose.msra.mxu0 0.0
    %1400 = vmatprep.subr.mxu0 0.0
    %1401 = vmatpush1.xpose.msra.mxu0 0.0
    %1402 = vmatprep.subr.mxu0 0.0
    %1403 = vmatpush1.xpose.msra.mxu0 0.0
    %1404 = vmatprep.subr.mxu0 0.0
    %1405 = vmatpush1.xpose.msra.mxu0 0.0
    %1406 = vmatprep.subr.mxu0 0.0
    %1407 = vmatpush1.xpose.msra.mxu0 0.0
    %1408 = vmatprep.subr.mxu0 0.0
    %1409 = vmatpush1.xpose.msra.mxu0 0.0
    %1410 = vmatprep.subr.mxu0 0.0
    %1411 = vmatpush1.xpose.msra.mxu0 0.0
    %1412 = vmatprep.mubr.f32.mxu0 0.0
    %1413 = vmatmul.mubr.f32.gmra.mrb[0].mxu0 %v1343
    %v1414 = vpop.f32.mrb[0].mxu0
    %v1415 = vadd.f32 0.0, %v1414
    %v1416 = vpop.f32.mrb[0].mxu0
    %1417 = vdwg.mxu0
    %v1418 = vmul.f32 %v1415, 0.17677669
    %v1420 = vlaneseq
    %v1421 = vshrl.u32 %v1420, 7
    %v1422 = vsub.s32 0, %v1421
    %v1423 = vrot.slane %v1341, %v1422
    %v1425 = vadd.f32 %v1418, %v1423
    %v1426 = vsel %vm734, %v1425, -inf
    %1427 = vmax.xlane.f32.xlu0 %v1426
    %v1428 = vpop.xlane.xlu0 %1427
    %v1429 = vsub.f32 %v1425, %v1428
    %v1430 = vmul.f32 %v1429, 1.442695
    %v1431 = vpow.pop %v1430
    %v1432 = vsel %vm734, %v1431, 0.0
    %1433 = vadd.xlane.f32.xlu0 %v1432
    %v1434 = vpop.xlane.xlu0 %1433
    %v1435 = vrcp.pop %v1434
    %v1436 = vmul.f32 %v1431, %v1435
    %v1438 = vsel %vm734, %v1436, 0
    %1440 = vmatprep.subr.mxu0 0.0
    %1441 = vmatpush1.msra.mxu0 %v643
    %1442 = vmatprep.subr.mxu0 0.0
    %1443 = vmatpush1.msra.mxu0 0.0
    %1444 = vmatprep.subr.mxu0 0.0
    %1445 = vmatpush1.msra.mxu0 0.0
    %1446 = vmatprep.subr.mxu0 0.0
    %1447 = vmatpush1.msra.mxu0 0.0
    %1448 = vmatprep.subr.mxu0 0.0
    %1449 = vmatpush1.msra.mxu0 0.0
    %1450 = vmatprep.subr.mxu0 0.0
    %1451 = vmatpush1.msra.mxu0 0.0
    %1452 = vmatprep.subr.mxu0 0.0
    %1453 = vmatpush1.msra.mxu0 0.0
    %1454 = vmatprep.subr.mxu0 0.0
    %1455 = vmatpush1.msra.mxu0 0.0
    %1456 = vmatprep.subr.mxu0 0.0
    %1457 = vmatpush1.msra.mxu0 0.0
    %1458 = vmatprep.subr.mxu0 0.0
    %1459 = vmatpush1.msra.mxu0 0.0
    %1460 = vmatprep.subr.mxu0 0.0
    %1461 = vmatpush1.msra.mxu0 0.0
    %1462 = vmatprep.subr.mxu0 0.0
    %1463 = vmatpush1.msra.mxu0 0.0
    %1464 = vmatprep.subr.mxu0 0.0
    %1465 = vmatpush1.msra.mxu0 0.0
    %1466 = vmatprep.subr.mxu0 0.0
    %1467 = vmatpush1.msra.mxu0 0.0
    %1468 = vmatprep.subr.mxu0 0.0
    %1469 = vmatpush1.msra.mxu0 0.0
    %1470 = vmatprep.subr.mxu0 0.0
    %1471 = vmatpush1.msra.mxu0 0.0
    %1472 = vmatprep.subr.mxu0 0.0
    %1473 = vmatpush1.msra.mxu0 0.0
    %1474 = vmatprep.subr.mxu0 0.0
    %1475 = vmatpush1.msra.mxu0 0.0
    %1476 = vmatprep.subr.mxu0 0.0
    %1477 = vmatpush1.msra.mxu0 0.0
    %1478 = vmatprep.subr.mxu0 0.0
    %1479 = vmatpush1.msra.mxu0 0.0
    %1480 = vmatprep.subr.mxu0 0.0
    %1481 = vmatpush1.msra.mxu0 0.0
    %1482 = vmatprep.subr.mxu0 0.0
    %1483 = vmatpush1.msra.mxu0 0.0
    %1484 = vmatprep.subr.mxu0 0.0
    %1485 = vmatpush1.msra.mxu0 0.0
    %1486 = vmatprep.subr.mxu0 0.0
    %1487 = vmatpush1.msra.mxu0 0.0
    %1488 = vmatprep.subr.mxu0 0.0
    %1489 = vmatpush1.msra.mxu0 0.0
    %1490 = vmatprep.subr.mxu0 0.0
    %1491 = vmatpush1.msra.mxu0 0.0
    %1492 = vmatprep.subr.mxu0 0.0
    %1493 = vmatpush1.msra.mxu0 0.0
    %1494 = vmatprep.subr.mxu0 0.0
    %1495 = vmatpush1.msra.mxu0 0.0
    %1496 = vmatprep.subr.mxu0 0.0
    %1497 = vmatpush1.msra.mxu0 0.0
    %1498 = vmatprep.subr.mxu0 0.0
    %1499 = vmatpush1.msra.mxu0 0.0
    %1500 = vmatprep.subr.mxu0 0.0
    %1501 = vmatpush1.msra.mxu0 0.0
    %1502 = vmatprep.subr.mxu0 0.0
    %1503 = vmatpush1.msra.mxu0 0.0
    %1504 = vmatprep.mubr.f32.mxu0 0.0
    %1505 = vmatmul.mubr.f32.gmra.mrb[0].mxu0 %v1438
    %v1506 = vpop.f32.mrb[0].mxu0
    %v1507 = vadd.f32 0.0, %v1506
    %v1508 = vpop.f32.mrb[0].mxu0
    %1509 = vdwg.mxu0
    %1510 = vrot.lane.b32.xlu0 %v601, 96
    %v1511 = vpop.permute.xlu0 %1510
    %1512 = vrot.lane.b32.xlu0 %v603, 96
    %v1513 = vpop.permute.xlu0 %1512
    %v1514 = vsel %vm649, %v1511, 0
    %v1516 = vsel %vm649, %v1513, 0
    %1518 = vmatprep.subr.mxu0 0.0
    %1519 = vmatpush1.xpose.msra.mxu0 %v1516
    %1520 = vmatprep.subr.mxu0 0.0
    %1521 = vmatpush1.xpose.msra.mxu0 0.0
    %1522 = vmatprep.subr.mxu0 0.0
    %1523 = vmatpush1.xpose.msra.mxu0 0.0
    %1524 = vmatprep.subr.mxu0 0.0
    %1525 = vmatpush1.xpose.msra.mxu0 0.0
    %1526 = vmatprep.subr.mxu0 0.0
    %1527 = vmatpush1.xpose.msra.mxu0 0.0
    %1528 = vmatprep.subr.mxu0 0.0
    %1529 = vmatpush1.xpose.msra.mxu0 0.0
    %1530 = vmatprep.subr.mxu0 0.0
    %1531 = vmatpush1.xpose.msra.mxu0 0.0
    %1532 = vmatprep.subr.mxu0 0.0
    %1533 = vmatpush1.xpose.msra.mxu0 0.0
    %1534 = vmatprep.subr.mxu0 0.0
    %1535 = vmatpush1.xpose.msra.mxu0 0.0
    %1536 = vmatprep.subr.mxu0 0.0
    %1537 = vmatpush1.xpose.msra.mxu0 0.0
    %1538 = vmatprep.subr.mxu0 0.0
    %1539 = vmatpush1.xpose.msra.mxu0 0.0
    %1540 = vmatprep.subr.mxu0 0.0
    %1541 = vmatpush1.xpose.msra.mxu0 0.0
    %1542 = vmatprep.subr.mxu0 0.0
    %1543 = vmatpush1.xpose.msra.mxu0 0.0
    %1544 = vmatprep.subr.mxu0 0.0
    %1545 = vmatpush1.xpose.msra.mxu0 0.0
    %1546 = vmatprep.subr.mxu0 0.0
    %1547 = vmatpush1.xpose.msra.mxu0 0.0
    %1548 = vmatprep.subr.mxu0 0.0
    %1549 = vmatpush1.xpose.msra.mxu0 0.0
    %1550 = vmatprep.subr.mxu0 0.0
    %1551 = vmatpush1.xpose.msra.mxu0 0.0
    %1552 = vmatprep.subr.mxu0 0.0
    %1553 = vmatpush1.xpose.msra.mxu0 0.0
    %1554 = vmatprep.subr.mxu0 0.0
    %1555 = vmatpush1.xpose.msra.mxu0 0.0
    %1556 = vmatprep.subr.mxu0 0.0
    %1557 = vmatpush1.xpose.msra.mxu0 0.0
    %1558 = vmatprep.subr.mxu0 0.0
    %1559 = vmatpush1.xpose.msra.mxu0 0.0
    %1560 = vmatprep.subr.mxu0 0.0
    %1561 = vmatpush1.xpose.msra.mxu0 0.0
    %1562 = vmatprep.subr.mxu0 0.0
    %1563 = vmatpush1.xpose.msra.mxu0 0.0
    %1564 = vmatprep.subr.mxu0 0.0
    %1565 = vmatpush1.xpose.msra.mxu0 0.0
    %1566 = vmatprep.subr.mxu0 0.0
    %1567 = vmatpush1.xpose.msra.mxu0 0.0
    %1568 = vmatprep.subr.mxu0 0.0
    %1569 = vmatpush1.xpose.msra.mxu0 0.0
    %1570 = vmatprep.subr.mxu0 0.0
    %1571 = vmatpush1.xpose.msra.mxu0 0.0
    %1572 = vmatprep.subr.mxu0 0.0
    %1573 = vmatpush1.xpose.msra.mxu0 0.0
    %1574 = vmatprep.subr.mxu0 0.0
    %1575 = vmatpush1.xpose.msra.mxu0 0.0
    %1576 = vmatprep.subr.mxu0 0.0
    %1577 = vmatpush1.xpose.msra.mxu0 0.0
    %1578 = vmatprep.subr.mxu0 0.0
    %1579 = vmatpush1.xpose.msra.mxu0 0.0
    %1580 = vmatprep.subr.mxu0 0.0
    %1581 = vmatpush1.xpose.msra.mxu0 0.0
    %1582 = vmatprep.mubr.f32.mxu0 0.0
    %1583 = vmatmul.mubr.f32.gmra.mrb[0].mxu0 %v1514
    %v1584 = vpop.f32.mrb[0].mxu0
    %v1585 = vadd.f32 0.0, %v1584
    %v1586 = vpop.f32.mrb[0].mxu0
    %1587 = vdwg.mxu0
    %v1588 = vmul.f32 %v1585, 0.17677669
    %v1589 = vadd.f32 %v1588, %v1423
    %v1590 = vsel %vm734, %v1589, -inf
    %1591 = vmax.xlane.f32.xlu0 %v1590
    %v1592 = vpop.xlane.xlu0 %1591
    %v1593 = vsub.f32 %v1589, %v1592
    %v1594 = vmul.f32 %v1593, 1.442695
    %v1595 = vpow.pop %v1594
    %v1596 = vsel %vm734, %v1595, 0.0
    %1597 = vadd.xlane.f32.xlu0 %v1596
    %v1598 = vpop.xlane.xlu0 %1597
    %v1599 = vrcp.pop %v1598
    %v1600 = vmul.f32 %v1595, %v1599
    %1602 = vrot.lane.b32.xlu0 %v643, 96
    %v1603 = vpop.permute.xlu0 %1602
    %v1606 = vsel %vm734, %v1600, 0
    %1608 = vmatprep.subr.mxu0 0.0
    %1609 = vmatpush1.msra.mxu0 %v1603
    %1610 = vmatprep.subr.mxu0 0.0
    %1611 = vmatpush1.msra.mxu0 0.0
    %1612 = vmatprep.subr.mxu0 0.0
    %1613 = vmatpush1.msra.mxu0 0.0
    %1614 = vmatprep.subr.mxu0 0.0
    %1615 = vmatpush1.msra.mxu0 0.0
    %1616 = vmatprep.subr.mxu0 0.0
    %1617 = vmatpush1.msra.mxu0 0.0
    %1618 = vmatprep.subr.mxu0 0.0
    %1619 = vmatpush1.msra.mxu0 0.0
    %1620 = vmatprep.subr.mxu0 0.0
    %1621 = vmatpush1.msra.mxu0 0.0
    %1622 = vmatprep.subr.mxu0 0.0
    %1623 = vmatpush1.msra.mxu0 0.0
    %1624 = vmatprep.subr.mxu0 0.0
    %1625 = vmatpush1.msra.mxu0 0.0
    %1626 = vmatprep.subr.mxu0 0.0
    %1627 = vmatpush1.msra.mxu0 0.0
    %1628 = vmatprep.subr.mxu0 0.0
    %1629 = vmatpush1.msra.mxu0 0.0
    %1630 = vmatprep.subr.mxu0 0.0
    %1631 = vmatpush1.msra.mxu0 0.0
    %1632 = vmatprep.subr.mxu0 0.0
    %1633 = vmatpush1.msra.mxu0 0.0
    %1634 = vmatprep.subr.mxu0 0.0
    %1635 = vmatpush1.msra.mxu0 0.0
    %1636 = vmatprep.subr.mxu0 0.0
    %1637 = vmatpush1.msra.mxu0 0.0
    %1638 = vmatprep.subr.mxu0 0.0
    %1639 = vmatpush1.msra.mxu0 0.0
    %1640 = vmatprep.subr.mxu0 0.0
    %1641 = vmatpush1.msra.mxu0 0.0
    %1642 = vmatprep.subr.mxu0 0.0
    %1643 = vmatpush1.msra.mxu0 0.0
    %1644 = vmatprep.subr.mxu0 0.0
    %1645 = vmatpush1.msra.mxu0 0.0
    %1646 = vmatprep.subr.mxu0 0.0
    %1647 = vmatpush1.msra.mxu0 0.0
    %1648 = vmatprep.subr.mxu0 0.0
    %1649 = vmatpush1.msra.mxu0 0.0
    %1650 = vmatprep.subr.mxu0 0.0
    %1651 = vmatpush1.msra.mxu0 0.0
    %1652 = vmatprep.subr.mxu0 0.0
    %1653 = vmatpush1.msra.mxu0 0.0
    %1654 = vmatprep.subr.mxu0 0.0
    %1655 = vmatpush1.msra.mxu0 0.0
    %1656 = vmatprep.subr.mxu0 0.0
    %1657 = vmatpush1.msra.mxu0 0.0
    %1658 = vmatprep.subr.mxu0 0.0
    %1659 = vmatpush1.msra.mxu0 0.0
    %1660 = vmatprep.subr.mxu0 0.0
    %1661 = vmatpush1.msra.mxu0 0.0
    %1662 = vmatprep.subr.mxu0 0.0
    %1663 = vmatpush1.msra.mxu0 0.0
    %1664 = vmatprep.subr.mxu0 0.0
    %1665 = vmatpush1.msra.mxu0 0.0
    %1666 = vmatprep.subr.mxu0 0.0
    %1667 = vmatpush1.msra.mxu0 0.0
    %1668 = vmatprep.subr.mxu0 0.0
    %1669 = vmatpush1.msra.mxu0 0.0
    %1670 = vmatprep.subr.mxu0 0.0
    %1671 = vmatpush1.msra.mxu0 0.0
    %1672 = vmatprep.mubr.f32.mxu0 0.0
    %1673 = vmatmul.mubr.f32.gmra.mrb[0].mxu0 %v1606
    %v1674 = vpop.f32.mrb[0].mxu0
    %v1675 = vadd.f32 0.0, %v1674
    %v1676 = vpop.f32.mrb[0].mxu0
    %1677 = vdwg.mxu0
    %1678 = vrot.lane.b32.xlu0 %v601, 64
    %v1679 = vpop.permute.xlu0 %1678
    %1680 = vrot.lane.b32.xlu0 %v603, 64
    %v1681 = vpop.permute.xlu0 %1680
    %v1682 = vsel %vm649, %v1679, 0
    %v1684 = vsel %vm649, %v1681, 0
    %1686 = vmatprep.subr.mxu0 0.0
    %1687 = vmatpush1.xpose.msra.mxu0 %v1684
    %1688 = vmatprep.subr.mxu0 0.0
    %1689 = vmatpush1.xpose.msra.mxu0 0.0
    %1690 = vmatprep.subr.mxu0 0.0
    %1691 = vmatpush1.xpose.msra.mxu0 0.0
    %1692 = vmatprep.subr.mxu0 0.0
    %1693 = vmatpush1.xpose.msra.mxu0 0.0
    %1694 = vmatprep.subr.mxu0 0.0
    %1695 = vmatpush1.xpose.msra.mxu0 0.0
    %1696 = vmatprep.subr.mxu0 0.0
    %1697 = vmatpush1.xpose.msra.mxu0 0.0
    %1698 = vmatprep.subr.mxu0 0.0
    %1699 = vmatpush1.xpose.msra.mxu0 0.0
    %1700 = vmatprep.subr.mxu0 0.0
    %1701 = vmatpush1.xpose.msra.mxu0 0.0
    %1702 = vmatprep.subr.mxu0 0.0
    %1703 = vmatpush1.xpose.msra.mxu0 0.0
    %1704 = vmatprep.subr.mxu0 0.0
    %1705 = vmatpush1.xpose.msra.mxu0 0.0
    %1706 = vmatprep.subr.mxu0 0.0
    %1707 = vmatpush1.xpose.msra.mxu0 0.0
    %1708 = vmatprep.subr.mxu0 0.0
    %1709 = vmatpush1.xpose.msra.mxu0 0.0
    %1710 = vmatprep.subr.mxu0 0.0
    %1711 = vmatpush1.xpose.msra.mxu0 0.0
    %1712 = vmatprep.subr.mxu0 0.0
    %1713 = vmatpush1.xpose.msra.mxu0 0.0
    %1714 = vmatprep.subr.mxu0 0.0
    %1715 = vmatpush1.xpose.msra.mxu0 0.0
    %1716 = vmatprep.subr.mxu0 0.0
    %1717 = vmatpush1.xpose.msra.mxu0 0.0
    %1718 = vmatprep.subr.mxu0 0.0
    %1719 = vmatpush1.xpose.msra.mxu0 0.0
    %1720 = vmatprep.subr.mxu0 0.0
    %1721 = vmatpush1.xpose.msra.mxu0 0.0
    %1722 = vmatprep.subr.mxu0 0.0
    %1723 = vmatpush1.xpose.msra.mxu0 0.0
    %1724 = vmatprep.subr.mxu0 0.0
    %1725 = vmatpush1.xpose.msra.mxu0 0.0
    %1726 = vmatprep.subr.mxu0 0.0
    %1727 = vmatpush1.xpose.msra.mxu0 0.0
    %1728 = vmatprep.subr.mxu0 0.0
    %1729 = vmatpush1.xpose.msra.mxu0 0.0
    %1730 = vmatprep.subr.mxu0 0.0
    %1731 = vmatpush1.xpose.msra.mxu0 0.0
    %1732 = vmatprep.subr.mxu0 0.0
    %1733 = vmatpush1.xpose.msra.mxu0 0.0
    %1734 = vmatprep.subr.mxu0 0.0
    %1735 = vmatpush1.xpose.msra.mxu0 0.0
    %1736 = vmatprep.subr.mxu0 0.0
    %1737 = vmatpush1.xpose.msra.mxu0 0.0
    %1738 = vmatprep.subr.mxu0 0.0
    %1739 = vmatpush1.xpose.msra.mxu0 0.0
    %1740 = vmatprep.subr.mxu0 0.0
    %1741 = vmatpush1.xpose.msra.mxu0 0.0
    %1742 = vmatprep.subr.mxu0 0.0
    %1743 = vmatpush1.xpose.msra.mxu0 0.0
    %1744 = vmatprep.subr.mxu0 0.0
    %1745 = vmatpush1.xpose.msra.mxu0 0.0
    %1746 = vmatprep.subr.mxu0 0.0
    %1747 = vmatpush1.xpose.msra.mxu0 0.0
    %1748 = vmatprep.subr.mxu0 0.0
    %1749 = vmatpush1.xpose.msra.mxu0 0.0
    %1750 = vmatprep.mubr.f32.mxu0 0.0
    %1751 = vmatmul.mubr.f32.gmra.mrb[0].mxu0 %v1682
    %v1752 = vpop.f32.mrb[0].mxu0
    %v1753 = vadd.f32 0.0, %v1752
    %v1754 = vpop.f32.mrb[0].mxu0
    %1755 = vdwg.mxu0
    %v1756 = vmul.f32 %v1753, 0.17677669
    %v1757 = vadd.f32 %v1756, %v1423
    %v1758 = vsel %vm734, %v1757, -inf
    %1759 = vmax.xlane.f32.xlu0 %v1758
    %v1760 = vpop.xlane.xlu0 %1759
    %v1761 = vsub.f32 %v1757, %v1760
    %v1762 = vmul.f32 %v1761, 1.442695
    %v1763 = vpow.pop %v1762
    %v1764 = vsel %vm734, %v1763, 0.0
    %1765 = vadd.xlane.f32.xlu0 %v1764
    %v1766 = vpop.xlane.xlu0 %1765
    %v1767 = vrcp.pop %v1766
    %v1768 = vmul.f32 %v1763, %v1767
    %1769 = vrot.lane.b32.xlu0 %v643, 64
    %v1770 = vpop.permute.xlu0 %1769
    %v1773 = vsel %vm734, %v1768, 0
    %1775 = vmatprep.subr.mxu0 0.0
    %1776 = vmatpush1.msra.mxu0 %v1770
    %1777 = vmatprep.subr.mxu0 0.0
    %1778 = vmatpush1.msra.mxu0 0.0
    %1779 = vmatprep.subr.mxu0 0.0
    %1780 = vmatpush1.msra.mxu0 0.0
    %1781 = vmatprep.subr.mxu0 0.0
    %1782 = vmatpush1.msra.mxu0 0.0
    %1783 = vmatprep.subr.mxu0 0.0
    %1784 = vmatpush1.msra.mxu0 0.0
    %1785 = vmatprep.subr.mxu0 0.0
    %1786 = vmatpush1.msra.mxu0 0.0
    %1787 = vmatprep.subr.mxu0 0.0
    %1788 = vmatpush1.msra.mxu0 0.0
    %1789 = vmatprep.subr.mxu0 0.0
    %1790 = vmatpush1.msra.mxu0 0.0
    %1791 = vmatprep.subr.mxu0 0.0
    %1792 = vmatpush1.msra.mxu0 0.0
    %1793 = vmatprep.subr.mxu0 0.0
    %1794 = vmatpush1.msra.mxu0 0.0
    %1795 = vmatprep.subr.mxu0 0.0
    %1796 = vmatpush1.msra.mxu0 0.0
    %1797 = vmatprep.subr.mxu0 0.0
    %1798 = vmatpush1.msra.mxu0 0.0
    %1799 = vmatprep.subr.mxu0 0.0
    %1800 = vmatpush1.msra.mxu0 0.0
    %1801 = vmatprep.subr.mxu0 0.0
    %1802 = vmatpush1.msra.mxu0 0.0
    %1803 = vmatprep.subr.mxu0 0.0
    %1804 = vmatpush1.msra.mxu0 0.0
    %1805 = vmatprep.subr.mxu0 0.0
    %1806 = vmatpush1.msra.mxu0 0.0
    %1807 = vmatprep.subr.mxu0 0.0
    %1808 = vmatpush1.msra.mxu0 0.0
    %1809 = vmatprep.subr.mxu0 0.0
    %1810 = vmatpush1.msra.mxu0 0.0
    %1811 = vmatprep.subr.mxu0 0.0
    %1812 = vmatpush1.msra.mxu0 0.0
    %1813 = vmatprep.subr.mxu0 0.0
    %1814 = vmatpush1.msra.mxu0 0.0
    %1815 = vmatprep.subr.mxu0 0.0
    %1816 = vmatpush1.msra.mxu0 0.0
    %1817 = vmatprep.subr.mxu0 0.0
    %1818 = vmatpush1.msra.mxu0 0.0
    %1819 = vmatprep.subr.mxu0 0.0
    %1820 = vmatpush1.msra.mxu0 0.0
    %1821 = vmatprep.subr.mxu0 0.0
    %1822 = vmatpush1.msra.mxu0 0.0
    %1823 = vmatprep.subr.mxu0 0.0
    %1824 = vmatpush1.msra.mxu0 0.0
    %1825 = vmatprep.subr.mxu0 0.0
    %1826 = vmatpush1.msra.mxu0 0.0
    %1827 = vmatprep.subr.mxu0 0.0
    %1828 = vmatpush1.msra.mxu0 0.0
    %1829 = vmatprep.subr.mxu0 0.0
    %1830 = vmatpush1.msra.mxu0 0.0
    %1831 = vmatprep.subr.mxu0 0.0
    %1832 = vmatpush1.msra.mxu0 0.0
    %1833 = vmatprep.subr.mxu0 0.0
    %1834 = vmatpush1.msra.mxu0 0.0
    %1835 = vmatprep.subr.mxu0 0.0
    %1836 = vmatpush1.msra.mxu0 0.0
    %1837 = vmatprep.subr.mxu0 0.0
    %1838 = vmatpush1.msra.mxu0 0.0
    %1839 = vmatprep.mubr.f32.mxu0 0.0
    %1840 = vmatmul.mubr.f32.gmra.mrb[0].mxu0 %v1773
    %v1841 = vpop.f32.mrb[0].mxu0
    %v1842 = vadd.f32 0.0, %v1841
    %v1843 = vpop.f32.mrb[0].mxu0
    %1844 = vdwg.mxu0
    %1845 = vrot.lane.b32.xlu0 %v601, 32
    %v1846 = vpop.permute.xlu0 %1845
    %1847 = vrot.lane.b32.xlu0 %v603, 32
    %v1848 = vpop.permute.xlu0 %1847
    %v1849 = vsel %vm649, %v1846, 0
    %v1851 = vsel %vm649, %v1848, 0
    %1853 = vmatprep.subr.mxu0 0.0
    %1854 = vmatpush1.xpose.msra.mxu0 %v1851
    %1855 = vmatprep.subr.mxu0 0.0
    %1856 = vmatpush1.xpose.msra.mxu0 0.0
    %1857 = vmatprep.subr.mxu0 0.0
    %1858 = vmatpush1.xpose.msra.mxu0 0.0
    %1859 = vmatprep.subr.mxu0 0.0
    %1860 = vmatpush1.xpose.msra.mxu0 0.0
    %1861 = vmatprep.subr.mxu0 0.0
    %1862 = vmatpush1.xpose.msra.mxu0 0.0
    %1863 = vmatprep.subr.mxu0 0.0
    %1864 = vmatpush1.xpose.msra.mxu0 0.0
    %1865 = vmatprep.subr.mxu0 0.0
    %1866 = vmatpush1.xpose.msra.mxu0 0.0
    %1867 = vmatprep.subr.mxu0 0.0
    %1868 = vmatpush1.xpose.msra.mxu0 0.0
    %1869 = vmatprep.subr.mxu0 0.0
    %1870 = vmatpush1.xpose.msra.mxu0 0.0
    %1871 = vmatprep.subr.mxu0 0.0
    %1872 = vmatpush1.xpose.msra.mxu0 0.0
    %1873 = vmatprep.subr.mxu0 0.0
    %1874 = vmatpush1.xpose.msra.mxu0 0.0
    %1875 = vmatprep.subr.mxu0 0.0
    %1876 = vmatpush1.xpose.msra.mxu0 0.0
    %1877 = vmatprep.subr.mxu0 0.0
    %1878 = vmatpush1.xpose.msra.mxu0 0.0
    %1879 = vmatprep.subr.mxu0 0.0
    %1880 = vmatpush1.xpose.msra.mxu0 0.0
    %1881 = vmatprep.subr.mxu0 0.0
    %1882 = vmatpush1.xpose.msra.mxu0 0.0
    %1883 = vmatprep.subr.mxu0 0.0
    %1884 = vmatpush1.xpose.msra.mxu0 0.0
    %1885 = vmatprep.subr.mxu0 0.0
    %1886 = vmatpush1.xpose.msra.mxu0 0.0
    %1887 = vmatprep.subr.mxu0 0.0
    %1888 = vmatpush1.xpose.msra.mxu0 0.0
    %1889 = vmatprep.subr.mxu0 0.0
    %1890 = vmatpush1.xpose.msra.mxu0 0.0
    %1891 = vmatprep.subr.mxu0 0.0
    %1892 = vmatpush1.xpose.msra.mxu0 0.0
    %1893 = vmatprep.subr.mxu0 0.0
    %1894 = vmatpush1.xpose.msra.mxu0 0.0
    %1895 = vmatprep.subr.mxu0 0.0
    %1896 = vmatpush1.xpose.msra.mxu0 0.0
    %1897 = vmatprep.subr.mxu0 0.0
    %1898 = vmatpush1.xpose.msra.mxu0 0.0
    %1899 = vmatprep.subr.mxu0 0.0
    %1900 = vmatpush1.xpose.msra.mxu0 0.0
    %1901 = vmatprep.subr.mxu0 0.0
    %1902 = vmatpush1.xpose.msra.mxu0 0.0
    %1903 = vmatprep.subr.mxu0 0.0
    %1904 = vmatpush1.xpose.msra.mxu0 0.0
    %1905 = vmatprep.subr.mxu0 0.0
    %1906 = vmatpush1.xpose.msra.mxu0 0.0
    %1907 = vmatprep.subr.mxu0 0.0
    %1908 = vmatpush1.xpose.msra.mxu0 0.0
    %1909 = vmatprep.subr.mxu0 0.0
    %1910 = vmatpush1.xpose.msra.mxu0 0.0
    %1911 = vmatprep.subr.mxu0 0.0
    %1912 = vmatpush1.xpose.msra.mxu0 0.0
    %1913 = vmatprep.subr.mxu0 0.0
    %1914 = vmatpush1.xpose.msra.mxu0 0.0
    %1915 = vmatprep.subr.mxu0 0.0
    %1916 = vmatpush1.xpose.msra.mxu0 0.0
    %1917 = vmatprep.mubr.f32.mxu0 0.0
    %1918 = vmatmul.mubr.f32.gmra.mrb[0].mxu0 %v1849
    %v1919 = vpop.f32.mrb[0].mxu0
    %v1920 = vadd.f32 0.0, %v1919
    %v1921 = vpop.f32.mrb[0].mxu0
    %1922 = vdwg.mxu0
    %v1923 = vmul.f32 %v1920, 0.17677669
    %v1924 = vadd.f32 %v1923, %v1423
    %v1925 = vsel %vm734, %v1924, -inf
    %1926 = vmax.xlane.f32.xlu0 %v1925
    %v1927 = vpop.xlane.xlu0 %1926
    %v1928 = vsub.f32 %v1924, %v1927
    %v1929 = vmul.f32 %v1928, 1.442695
    %v1930 = vpow.pop %v1929
    %v1931 = vsel %vm734, %v1930, 0.0
    %1932 = vadd.xlane.f32.xlu0 %v1931
    %v1933 = vpop.xlane.xlu0 %1932
    %v1934 = vrcp.pop %v1933
    %v1935 = vmul.f32 %v1930, %v1934
    %1936 = vrot.lane.b32.xlu0 %v643, 32
    %v1937 = vpop.permute.xlu0 %1936
    %v1940 = vsel %vm734, %v1935, 0
    %1942 = vmatprep.subr.mxu0 0.0
    %1943 = vmatpush1.msra.mxu0 %v1937
    %1944 = vmatprep.subr.mxu0 0.0
    %1945 = vmatpush1.msra.mxu0 0.0
    %1946 = vmatprep.subr.mxu0 0.0
    %1947 = vmatpush1.msra.mxu0 0.0
    %1948 = vmatprep.subr.mxu0 0.0
    %1949 = vmatpush1.msra.mxu0 0.0
    %1950 = vmatprep.subr.mxu0 0.0
    %1951 = vmatpush1.msra.mxu0 0.0
    %1952 = vmatprep.subr.mxu0 0.0
    %1953 = vmatpush1.msra.mxu0 0.0
    %1954 = vmatprep.subr.mxu0 0.0
    %1955 = vmatpush1.msra.mxu0 0.0
    %1956 = vmatprep.subr.mxu0 0.0
    %1957 = vmatpush1.msra.mxu0 0.0
    %1958 = vmatprep.subr.mxu0 0.0
    %1959 = vmatpush1.msra.mxu0 0.0
    %1960 = vmatprep.subr.mxu0 0.0
    %1961 = vmatpush1.msra.mxu0 0.0
    %1962 = vmatprep.subr.mxu0 0.0
    %1963 = vmatpush1.msra.mxu0 0.0
    %1964 = vmatprep.subr.mxu0 0.0
    %1965 = vmatpush1.msra.mxu0 0.0
    %1966 = vmatprep.subr.mxu0 0.0
    %1967 = vmatpush1.msra.mxu0 0.0
    %1968 = vmatprep.subr.mxu0 0.0
    %1969 = vmatpush1.msra.mxu0 0.0
    %1970 = vmatprep.subr.mxu0 0.0
    %1971 = vmatpush1.msra.mxu0 0.0
    %1972 = vmatprep.subr.mxu0 0.0
    %1973 = vmatpush1.msra.mxu0 0.0
    %1974 = vmatprep.subr.mxu0 0.0
    %1975 = vmatpush1.msra.mxu0 0.0
    %1976 = vmatprep.subr.mxu0 0.0
    %1977 = vmatpush1.msra.mxu0 0.0
    %1978 = vmatprep.subr.mxu0 0.0
    %1979 = vmatpush1.msra.mxu0 0.0
    %1980 = vmatprep.subr.mxu0 0.0
    %1981 = vmatpush1.msra.mxu0 0.0
    %1982 = vmatprep.subr.mxu0 0.0
    %1983 = vmatpush1.msra.mxu0 0.0
    %1984 = vmatprep.subr.mxu0 0.0
    %1985 = vmatpush1.msra.mxu0 0.0
    %1986 = vmatprep.subr.mxu0 0.0
    %1987 = vmatpush1.msra.mxu0 0.0
    %1988 = vmatprep.subr.mxu0 0.0
    %1989 = vmatpush1.msra.mxu0 0.0
    %1990 = vmatprep.subr.mxu0 0.0
    %1991 = vmatpush1.msra.mxu0 0.0
    %1992 = vmatprep.subr.mxu0 0.0
    %1993 = vmatpush1.msra.mxu0 0.0
    %1994 = vmatprep.subr.mxu0 0.0
    %1995 = vmatpush1.msra.mxu0 0.0
    %1996 = vmatprep.subr.mxu0 0.0
    %1997 = vmatpush1.msra.mxu0 0.0
    %1998 = vmatprep.subr.mxu0 0.0
    %1999 = vmatpush1.msra.mxu0 0.0
    %2000 = vmatprep.subr.mxu0 0.0
    %2001 = vmatpush1.msra.mxu0 0.0
    %2002 = vmatprep.subr.mxu0 0.0
    %2003 = vmatpush1.msra.mxu0 0.0
    %2004 = vmatprep.subr.mxu0 0.0
    %2005 = vmatpush1.msra.mxu0 0.0
    %2006 = vmatprep.mubr.f32.mxu0 0.0
    %2007 = vmatmul.mubr.f32.gmra.mrb[0].mxu0 %v1940
    %v2008 = vpop.f32.mrb[0].mxu0
    %v2009 = vadd.f32 0.0, %v2008
    %v2010 = vpop.f32.mrb[0].mxu0
    %2011 = vdwg.mxu0
    %2013 = vrot.lane.b32.xlu0 %v1675, 32
    %v2014 = vpop.permute.xlu0 %2013
    %2017 = vrot.lane.b32.xlu0 %v1842, 64
    %v2018 = vpop.permute.xlu0 %2017
    %2021 = vrot.lane.b32.xlu0 %v2009, 96
    %v2022 = vpop.permute.xlu0 %2021
    %v2024 = vsel %vm649, %v1507, %v2014
    %v2025 = vsel %vm1334, %v2024, %v2018
    %v2026 = vsel %vm1336, %v2025, %v2022
    %v2027 = vld [vmem:[#allocation10] sm:$0xf]
    %v2028 = vld [vmem:[#allocation10 + $0x4] sm:$0xf]
    %v2029 = vld [vmem:[#allocation10 + $0x8] sm:$0xf]
    %v2030 = vld [vmem:[#allocation10 + $0xc] sm:$0xf]
    %v2031 = vld [vmem:[#allocation10 + $0x10] sm:$0xf]
    %v2032 = vld [vmem:[#allocation10 + $0x14] sm:$0xf]
    %v2033 = vld [vmem:[#allocation10 + $0x18] sm:$0xf]
    %v2034 = vld [vmem:[#allocation10 + $0x1c] sm:$0xf]
    %v2035 = vld [vmem:[#allocation10 + $0x20] sm:$0xf]
    %v2036 = vld [vmem:[#allocation10 + $0x24] sm:$0xf]
    %v2037 = vld [vmem:[#allocation10 + $0x28] sm:$0xf]
    %v2038 = vld [vmem:[#allocation10 + $0x2c] sm:$0xf]
    %v2039 = vld [vmem:[#allocation10 + $0x30] sm:$0xf]
    %v2040 = vld [vmem:[#allocation10 + $0x34] sm:$0xf]
    %v2041 = vld [vmem:[#allocation10 + $0x38] sm:$0xf]
    %v2042 = vld [vmem:[#allocation10 + $0x3c] sm:$0xf]
    %v2043 = vld [vmem:[%s10] sm:$0x1]
    %v2044 = vpack.c.bf16 %v2026, %v1337
    %v2046 = vlaneseq
    %v2047 = vshrl.u32 %v2046, 7
    %v2048 = vsub.s32 0, %v2047
    %v2049 = vrot.slane %v2043, %v2048
    %v2067 = vunpack.c.l.b16 %v2027
    %v2068 = vunpack.c.l.b16 %v2028
    %v2069 = vunpack.c.l.b16 %v2029
    %v2070 = vunpack.c.l.b16 %v2030
    %v2071 = vunpack.c.l.b16 %v2031
    %v2072 = vunpack.c.l.b16 %v2032
    %v2073 = vunpack.c.l.b16 %v2033
    %v2074 = vunpack.c.l.b16 %v2034
    %v2075 = vunpack.c.l.b16 %v2035
    %v2076 = vunpack.c.l.b16 %v2036
    %v2077 = vunpack.c.l.b16 %v2037
    %v2078 = vunpack.c.l.b16 %v2038
    %v2079 = vunpack.c.l.b16 %v2039
    %v2080 = vunpack.c.l.b16 %v2040
    %v2081 = vunpack.c.l.b16 %v2041
    %v2082 = vunpack.c.l.b16 %v2042
    %v2083 = vpack.c.b16 %v2068, %v2067
    %v2084 = vpack.c.b16 %v2070, %v2069
    %v2085 = vpack.c.b16 %v2072, %v2071
    %v2086 = vpack.c.b16 %v2074, %v2073
    %v2087 = vpack.c.b16 %v2076, %v2075
    %v2088 = vpack.c.b16 %v2078, %v2077
    %v2089 = vpack.c.b16 %v2080, %v2079
    %v2090 = vpack.c.b16 %v2082, %v2081
    %2099 = vmatprep.subr.bf16.mxu0 0
    %2100 = vmatpush1.bf16.msra.mxu0 %v2083
    %2101 = vmatprep.subr.bf16.mxu0 0
    %2102 = vmatpush1.bf16.msra.mxu0 %v2084
    %2103 = vmatprep.subr.bf16.mxu0 0
    %2104 = vmatpush1.bf16.msra.mxu0 %v2085
    %2105 = vmatprep.subr.bf16.mxu0 0
    %2106 = vmatpush1.bf16.msra.mxu0 %v2086
    %2107 = vmatprep.subr.bf16.mxu0 0
    %2108 = vmatpush1.bf16.msra.mxu0 %v2087
    %2109 = vmatprep.subr.bf16.mxu0 0
    %2110 = vmatpush1.bf16.msra.mxu0 %v2088
    %2111 = vmatprep.subr.bf16.mxu0 0
    %2112 = vmatpush1.bf16.msra.mxu0 %v2089
    %2113 = vmatprep.subr.bf16.mxu0 0
    %2114 = vmatpush1.bf16.msra.mxu0 %v2090
    %2115 = vmatprep.subr.bf16.mxu0 0
    %2116 = vmatpush1.bf16.msra.mxu0 0
    %2117 = vmatprep.subr.bf16.mxu0 0
    %2118 = vmatpush1.bf16.msra.mxu0 0
    %2119 = vmatprep.subr.bf16.mxu0 0
    %2120 = vmatpush1.bf16.msra.mxu0 0
    %2121 = vmatprep.subr.bf16.mxu0 0
    %2122 = vmatpush1.bf16.msra.mxu0 0
    %2123 = vmatprep.subr.bf16.mxu0 0
    %2124 = vmatpush1.bf16.msra.mxu0 0
    %2125 = vmatprep.subr.bf16.mxu0 0
    %2126 = vmatpush1.bf16.msra.mxu0 0
    %2127 = vmatprep.subr.bf16.mxu0 0
    %2128 = vmatpush1.bf16.msra.mxu0 0
    %2129 = vmatprep.subr.bf16.mxu0 0
    %2130 = vmatpush1.bf16.msra.mxu0 0
    %2131 = vmatprep.mubr.bf16.mxu0 0
    %2132 = vmatmul.mubr.bf16.gmra.mrb[0].mxu0 %v2044
    %v2133 = vpop.f32.mrb[0].mxu0
    %v2134 = vadd.f32 %v2049, %v2133
    %v2135 = vpop.f32.mrb[0].mxu0
    %v2136 = vpop.f32.mrb[0].mxu0
    %v2137 = vadd.f32 %v2049, %v2136
    %v2138 = vpop.f32.mrb[0].mxu0
    %2139 = vdwg.mxu0
    %v2140 = vadd.f32 %v2134, %v382
    %v2141 = vadd.f32 %v2137, %v383
    %v2142 = vld [vmem:[%s11] sm:$0x1]
    %v2143 = vld [vmem:[%s12] sm:$0x1]
    %2144 = vadd.xlane.f32.xlu0 %v2140
    %v2145 = vpop.xlane.xlu0 %2144
    %2146 = vadd.xlane.f32.xlu0 %v2141
    %v2147 = vpop.xlane.xlu0 %2146
    %v2148 = vmul.f32 %v2145, %v349
    %v2149 = vmul.f32 %v2147, %v349
    %v2150 = vsub.f32 %v2140, %v2148
    %v2151 = vsub.f32 %v2141, %v2149
    %v2152 = vmul.f32 %v2150, %v2150
    %v2153 = vmul.f32 %v2151, %v2151
    %2154 = vadd.xlane.f32.xlu0 %v2152
    %v2155 = vpop.xlane.xlu0 %2154
    %2156 = vadd.xlane.f32.xlu0 %v2153
    %v2157 = vpop.xlane.xlu0 %2156
    %v2158 = vmul.f32 %v2155, %v349
    %v2159 = vmul.f32 %v2157, %v349
    %v2160 = vadd.f32 %v2158, 1e-05
    %v2161 = vadd.f32 %v2159, 1e-05
    %v2162 = vrsqrt.pop %v2160
    %v2163 = vrsqrt.pop %v2161
    %v2164 = vmul.f32 %v2150, %v2162
    %v2165 = vmul.f32 %v2151, %v2163
    %v2167 = vlaneseq
    %v2168 = vshrl.u32 %v2167, 7
    %v2169 = vsub.s32 0, %v2168
    %v2170 = vrot.slane %v2142, %v2169
    %v2172 = vmul.f32 %v2164, %v2170
    %v2173 = vmul.f32 %v2165, %v2170
    %v2175 = vlaneseq
    %v2176 = vshrl.u32 %v2175, 7
    %v2177 = vsub.s32 0, %v2176
    %v2178 = vrot.slane %v2143, %v2177
    %v2180 = vadd.f32 %v2172, %v2178
    %v2181 = vadd.f32 %v2173, %v2178
    %v2182 = vld [vmem:[#allocation11] sm:$0xff]
    %v2183 = vld [vmem:[#allocation11 + $0x8] sm:$0xff]
    %v2184 = vld [vmem:[#allocation11 + $0x10] sm:$0xff]
    %v2185 = vld [vmem:[#allocation11 + $0x18] sm:$0xff]
    %v2186 = vld [vmem:[#allocation11 + $0x20] sm:$0xff]
    %v2187 = vld [vmem:[#allocation11 + $0x28] sm:$0xff]
    %v2188 = vld [vmem:[#allocation11 + $0x30] sm:$0xff]
    %v2189 = vld [vmem:[#allocation11 + $0x38] sm:$0xff]
    %v2190 = vld [vmem:[#allocation11 + $0x40] sm:$0xff]
    %v2191 = vld [vmem:[#allocation11 + $0x48] sm:$0xff]
    %v2192 = vld [vmem:[#allocation11 + $0x50] sm:$0xff]
    %v2193 = vld [vmem:[#allocation11 + $0x58] sm:$0xff]
    %v2194 = vld [vmem:[#allocation11 + $0x60] sm:$0xff]
    %v2195 = vld [vmem:[#allocation11 + $0x68] sm:$0xff]
    %v2196 = vld [vmem:[#allocation11 + $0x70] sm:$0xff]
    %v2197 = vld [vmem:[#allocation11 + $0x78] sm:$0xff]
    %v2198 = vld [vmem:[%s14] sm:$0x3]
    %v2199 = vpack.c.bf16 %v2181, %v2180
    %v2201 = vlaneseq
    %v2202 = vshrl.u32 %v2201, 7
    %v2203 = vsub.s32 0, %v2202
    %v2204 = vrot.slane %v2198, %v2203
    %v2205 = vlaneseq
    %v2206 = vshrl.u32 %v2205, 7
    %v2207 = vsub.s32 1, %v2206
    %v2208 = vrot.slane %v2198, %v2207
    %v2227 = vunpack.c.l.b16 %v2182
    %v2228 = vunpack.c.h.b16 %v2182
    %v2229 = vunpack.c.l.b16 %v2183
    %v2230 = vunpack.c.h.b16 %v2183
    %v2231 = vunpack.c.l.b16 %v2184
    %v2232 = vunpack.c.h.b16 %v2184
    %v2233 = vunpack.c.l.b16 %v2185
    %v2234 = vunpack.c.h.b16 %v2185
    %v2235 = vunpack.c.l.b16 %v2186
    %v2236 = vunpack.c.h.b16 %v2186
    %v2237 = vunpack.c.l.b16 %v2187
    %v2238 = vunpack.c.h.b16 %v2187
    %v2239 = vunpack.c.l.b16 %v2188
    %v2240 = vunpack.c.h.b16 %v2188
    %v2241 = vunpack.c.l.b16 %v2189
    %v2242 = vunpack.c.h.b16 %v2189
    %v2243 = vunpack.c.l.b16 %v2190
    %v2244 = vunpack.c.h.b16 %v2190
    %v2245 = vunpack.c.l.b16 %v2191
    %v2246 = vunpack.c.h.b16 %v2191
    %v2247 = vunpack.c.l.b16 %v2192
    %v2248 = vunpack.c.h.b16 %v2192
    %v2249 = vunpack.c.l.b16 %v2193
    %v2250 = vunpack.c.h.b16 %v2193
    %v2251 = vunpack.c.l.b16 %v2194
    %v2252 = vunpack.c.h.b16 %v2194
    %v2253 = vunpack.c.l.b16 %v2195
    %v2254 = vunpack.c.h.b16 %v2195
    %v2255 = vunpack.c.l.b16 %v2196
    %v2256 = vunpack.c.h.b16 %v2196
    %v2257 = vunpack.c.l.b16 %v2197
    %v2258 = vunpack.c.h.b16 %v2197
    %v2259 = vpack.c.b16 %v2229, %v2227
    %v2260 = vpack.c.b16 %v2230, %v2228
    %v2261 = vpack.c.b16 %v2233, %v2231
    %v2262 = vpack.c.b16 %v2234, %v2232
    %v2263 = vpack.c.b16 %v2237, %v2235
    %v2264 = vpack.c.b16 %v2238, %v2236
    %v2265 = vpack.c.b16 %v2241, %v2239
    %v2266 = vpack.c.b16 %v2242, %v2240
    %v2267 = vpack.c.b16 %v2245, %v2243
    %v2268 = vpack.c.b16 %v2246, %v2244
    %v2269 = vpack.c.b16 %v2249, %v2247
    %v2270 = vpack.c.b16 %v2250, %v2248
    %v2271 = vpack.c.b16 %v2253, %v2251
    %v2272 = vpack.c.b16 %v2254, %v2252
    %v2273 = vpack.c.b16 %v2257, %v2255
    %v2274 = vpack.c.b16 %v2258, %v2256
    %2291 = vmatprep.subr.bf16.mxu0 %v2260
    %2292 = vmatpush1.bf16.msra.mxu0 %v2259
    %2293 = vmatprep.subr.bf16.mxu0 %v2262
    %2294 = vmatpush1.bf16.msra.mxu0 %v2261
    %2295 = vmatprep.subr.bf16.mxu0 %v2264
    %2296 = vmatpush1.bf16.msra.mxu0 %v2263
    %2297 = vmatprep.subr.bf16.mxu0 %v2266
    %2298 = vmatpush1.bf16.msra.mxu0 %v2265
    %2299 = vmatprep.subr.bf16.mxu0 %v2268
    %2300 = vmatpush1.bf16.msra.mxu0 %v2267
    %2301 = vmatprep.subr.bf16.mxu0 %v2270
    %2302 = vmatpush1.bf16.msra.mxu0 %v2269
    %2303 = vmatprep.subr.bf16.mxu0 %v2272
    %2304 = vmatpush1.bf16.msra.mxu0 %v2271
    %2305 = vmatprep.subr.bf16.mxu0 %v2274
    %2306 = vmatpush1.bf16.msra.mxu0 %v2273
    %2307 = vmatprep.subr.bf16.mxu0 0
    %2308 = vmatpush1.bf16.msra.mxu0 0
    %2309 = vmatprep.subr.bf16.mxu0 0
    %2310 = vmatpush1.bf16.msra.mxu0 0
    %2311 = vmatprep.subr.bf16.mxu0 0
    %2312 = vmatpush1.bf16.msra.mxu0 0
    %2313 = vmatprep.subr.bf16.mxu0 0
    %2314 = vmatpush1.bf16.msra.mxu0 0
    %2315 = vmatprep.subr.bf16.mxu0 0
    %2316 = vmatpush1.bf16.msra.mxu0 0
    %2317 = vmatprep.subr.bf16.mxu0 0
    %2318 = vmatpush1.bf16.msra.mxu0 0
    %2319 = vmatprep.subr.bf16.mxu0 0
    %2320 = vmatpush1.bf16.msra.mxu0 0
    %2321 = vmatprep.subr.bf16.mxu0 0
    %2322 = vmatpush1.bf16.msra.mxu0 0
    %2323 = vmatprep.mubr.bf16.mxu0 0
    %2324 = vmatmul.mubr.bf16.gmra.mrb[0].mxu0 %v2199
    %v2325 = vpop.f32.mrb[0].mxu0
    %v2326 = vadd.f32 %v2204, %v2325
    %v2327 = vpop.f32.mrb[0].mxu0
    %v2328 = vadd.f32 %v2208, %v2327
    %v2329 = vpop.f32.mrb[0].mxu0
    %v2330 = vadd.f32 %v2204, %v2329
    %v2331 = vpop.f32.mrb[0].mxu0
    %v2332 = vadd.f32 %v2208, %v2331
    %2333 = vdwg.mxu0
    %v2334 = vmul.f32 %v2326, %v2326
    %v2335 = vmul.f32 %v2328, %v2328
    %v2336 = vmul.f32 %v2330, %v2330
    %v2337 = vmul.f32 %v2332, %v2332
    %v2338 = vmul.f32 %v2326, %v2334
    %v2339 = vmul.f32 %v2328, %v2335
    %v2340 = vmul.f32 %v2330, %v2336
    %v2341 = vmul.f32 %v2332, %v2337
    %v2342 = vmul.f32 %v2338, 0.044715
    %v2343 = vmul.f32 %v2339, 0.044715
    %v2344 = vmul.f32 %v2340, 0.044715
    %v2345 = vmul.f32 %v2341, 0.044715
    %v2346 = vadd.f32 %v2326, %v2342
    %v2347 = vadd.f32 %v2328, %v2343
    %v2348 = vadd.f32 %v2330, %v2344
    %v2349 = vadd.f32 %v2332, %v2345
    %v2350 = vmul.f32 %v2346, 0.7978846
    %v2351 = vmul.f32 %v2347, 0.7978846
    %v2352 = vmul.f32 %v2348, 0.7978846
    %v2353 = vmul.f32 %v2349, 0.7978846
    %v2354 = vtanh.pop %v2350
    %v2355 = vtanh.pop %v2351
    %v2356 = vtanh.pop %v2352
    %v2357 = vtanh.pop %v2353
    %v2358 = vadd.f32 %v2354, 1.0
    %v2359 = vadd.f32 %v2355, 1.0
    %v2360 = vadd.f32 %v2356, 1.0
    %v2361 = vadd.f32 %v2357, 1.0
    %v2362 = vmul.f32 %v2358, 0.5
    %v2363 = vmul.f32 %v2359, 0.5
    %v2364 = vmul.f32 %v2360, 0.5
    %v2365 = vmul.f32 %v2361, 0.5
    %v2366 = vmul.f32 %v2326, %v2362
    %v2367 = vmul.f32 %v2328, %v2363
    %v2368 = vmul.f32 %v2330, %v2364
    %v2369 = vmul.f32 %v2332, %v2365
    %v2370 = vld [vmem:[#allocation13] sm:$0xf]
    %v2371 = vld [vmem:[#allocation13 + $0x4] sm:$0xf]
    %v2372 = vld [vmem:[#allocation13 + $0x8] sm:$0xf]
    %v2373 = vld [vmem:[#allocation13 + $0xc] sm:$0xf]
    %v2374 = vld [vmem:[#allocation13 + $0x10] sm:$0xf]
    %v2375 = vld [vmem:[#allocation13 + $0x14] sm:$0xf]
    %v2376 = vld [vmem:[#allocation13 + $0x18] sm:$0xf]
    %v2377 = vld [vmem:[#allocation13 + $0x1c] sm:$0xf]
    %v2378 = vld [vmem:[#allocation13 + $0x20] sm:$0xf]
    %v2379 = vld [vmem:[#allocation13 + $0x24] sm:$0xf]
    %v2380 = vld [vmem:[#allocation13 + $0x28] sm:$0xf]
    %v2381 = vld [vmem:[#allocation13 + $0x2c] sm:$0xf]
    %v2382 = vld [vmem:[#allocation13 + $0x30] sm:$0xf]
    %v2383 = vld [vmem:[#allocation13 + $0x34] sm:$0xf]
    %v2384 = vld [vmem:[#allocation13 + $0x38] sm:$0xf]
    %v2385 = vld [vmem:[#allocation13 + $0x3c] sm:$0xf]
    %v2386 = vld [vmem:[#allocation13 + $0x40] sm:$0xf]
    %v2387 = vld [vmem:[#allocation13 + $0x44] sm:$0xf]
    %v2388 = vld [vmem:[#allocation13 + $0x48] sm:$0xf]
    %v2389 = vld [vmem:[#allocation13 + $0x4c] sm:$0xf]
    %v2390 = vld [vmem:[#allocation13 + $0x50] sm:$0xf]
    %v2391 = vld [vmem:[#allocation13 + $0x54] sm:$0xf]
    %v2392 = vld [vmem:[#allocation13 + $0x58] sm:$0xf]
    %v2393 = vld [vmem:[#allocation13 + $0x5c] sm:$0xf]
    %v2394 = vld [vmem:[#allocation13 + $0x60] sm:$0xf]
    %v2395 = vld [vmem:[#allocation13 + $0x64] sm:$0xf]
    %v2396 = vld [vmem:[#allocation13 + $0x68] sm:$0xf]
    %v2397 = vld [vmem:[#allocation13 + $0x6c] sm:$0xf]
    %v2398 = vld [vmem:[#allocation13 + $0x70] sm:$0xf]
    %v2399 = vld [vmem:[#allocation13 + $0x74] sm:$0xf]
    %v2400 = vld [vmem:[#allocation13 + $0x78] sm:$0xf]
    %v2401 = vld [vmem:[#allocation13 + $0x7c] sm:$0xf]
    %v2402 = vld [vmem:[%s16] sm:$0x1]
    %v2403 = vpack.c.bf16 %v2368, %v2366
    %v2404 = vpack.c.bf16 %v2369, %v2367
    %v2406 = vlaneseq
    %v2407 = vshrl.u32 %v2406, 7
    %v2408 = vsub.s32 0, %v2407
    %v2409 = vrot.slane %v2402, %v2408
    %v2443 = vunpack.c.l.b16 %v2370
    %v2444 = vunpack.c.l.b16 %v2371
    %v2445 = vunpack.c.l.b16 %v2372
    %v2446 = vunpack.c.l.b16 %v2373
    %v2447 = vunpack.c.l.b16 %v2374
    %v2448 = vunpack.c.l.b16 %v2375
    %v2449 = vunpack.c.l.b16 %v2376
    %v2450 = vunpack.c.l.b16 %v2377
    %v2451 = vunpack.c.l.b16 %v2378
    %v2452 = vunpack.c.l.b16 %v2379
    %v2453 = vunpack.c.l.b16 %v2380
    %v2454 = vunpack.c.l.b16 %v2381
    %v2455 = vunpack.c.l.b16 %v2382
    %v2456 = vunpack.c.l.b16 %v2383
    %v2457 = vunpack.c.l.b16 %v2384
    %v2458 = vunpack.c.l.b16 %v2385
    %v2459 = vunpack.c.l.b16 %v2386
    %v2460 = vunpack.c.l.b16 %v2387
    %v2461 = vunpack.c.l.b16 %v2388
    %v2462 = vunpack.c.l.b16 %v2389
    %v2463 = vunpack.c.l.b16 %v2390
    %v2464 = vunpack.c.l.b16 %v2391
    %v2465 = vunpack.c.l.b16 %v2392
    %v2466 = vunpack.c.l.b16 %v2393
    %v2467 = vunpack.c.l.b16 %v2394
    %v2468 = vunpack.c.l.b16 %v2395
    %v2469 = vunpack.c.l.b16 %v2396
    %v2470 = vunpack.c.l.b16 %v2397
    %v2471 = vunpack.c.l.b16 %v2398
    %v2472 = vunpack.c.l.b16 %v2399
    %v2473 = vunpack.c.l.b16 %v2400
    %v2474 = vunpack.c.l.b16 %v2401
    %v2475 = vpack.c.b16 %v2444, %v2443
    %v2476 = vpack.c.b16 %v2446, %v2445
    %v2477 = vpack.c.b16 %v2448, %v2447
    %v2478 = vpack.c.b16 %v2450, %v2449
    %v2479 = vpack.c.b16 %v2452, %v2451
    %v2480 = vpack.c.b16 %v2454, %v2453
    %v2481 = vpack.c.b16 %v2456, %v2455
    %v2482 = vpack.c.b16 %v2458, %v2457
    %v2483 = vpack.c.b16 %v2460, %v2459
    %v2484 = vpack.c.b16 %v2462, %v2461
    %v2485 = vpack.c.b16 %v2464, %v2463
    %v2486 = vpack.c.b16 %v2466, %v2465
    %v2487 = vpack.c.b16 %v2468, %v2467
    %v2488 = vpack.c.b16 %v2470, %v2469
    %v2489 = vpack.c.b16 %v2472, %v2471
    %v2490 = vpack.c.b16 %v2474, %v2473
    %2507 = vmatprep.subr.bf16.mxu0 0
    %2508 = vmatpush1.bf16.msra.mxu0 %v2475
    %2509 = vmatprep.subr.bf16.mxu0 0
    %2510 = vmatpush1.bf16.msra.mxu0 %v2476
    %2511 = vmatprep.subr.bf16.mxu0 0
    %2512 = vmatpush1.bf16.msra.mxu0 %v2477
    %2513 = vmatprep.subr.bf16.mxu0 0
    %2514 = vmatpush1.bf16.msra.mxu0 %v2478
    %2515 = vmatprep.subr.bf16.mxu0 0
    %2516 = vmatpush1.bf16.msra.mxu0 %v2479
    %2517 = vmatprep.subr.bf16.mxu0 0
    %2518 = vmatpush1.bf16.msra.mxu0 %v2480
    %2519 = vmatprep.subr.bf16.mxu0 0
    %2520 = vmatpush1.bf16.msra.mxu0 %v2481
    %2521 = vmatprep.subr.bf16.mxu0 0
    %2522 = vmatpush1.bf16.msra.mxu0 %v2482
    %2523 = vmatprep.subr.bf16.mxu0 0
    %2524 = vmatpush1.bf16.msra.mxu0 %v2483
    %2525 = vmatprep.subr.bf16.mxu0 0
    %2526 = vmatpush1.bf16.msra.mxu0 %v2484
    %2527 = vmatprep.subr.bf16.mxu0 0
    %2528 = vmatpush1.bf16.msra.mxu0 %v2485
    %2529 = vmatprep.subr.bf16.mxu0 0
    %2530 = vmatpush1.bf16.msra.mxu0 %v2486
    %2531 = vmatprep.subr.bf16.mxu0 0
    %2532 = vmatpush1.bf16.msra.mxu0 %v2487
    %2533 = vmatprep.subr.bf16.mxu0 0
    %2534 = vmatpush1.bf16.msra.mxu0 %v2488
    %2535 = vmatprep.subr.bf16.mxu0 0
    %2536 = vmatpush1.bf16.msra.mxu0 %v2489
    %2537 = vmatprep.subr.bf16.mxu0 0
    %2538 = vmatpush1.bf16.msra.mxu0 %v2490
    %2539 = vmatprep.mubr.bf16.mxu0 %v2404
    %2540 = vmatmul.mubr.bf16.gmra.mrb[0].mxu0 %v2403
    %v2541 = vpop.f32.mrb[0].mxu0
    %v2542 = vadd.f32 %v2409, %v2541
    %v2543 = vpop.f32.mrb[0].mxu0
    %v2544 = vpop.f32.mrb[0].mxu0
    %v2545 = vadd.f32 %v2409, %v2544
    %v2546 = vpop.f32.mrb[0].mxu0
    %2547 = vdwg.mxu0
    %v2548 = vadd.f32 %v2542, %v2180
    %v2549 = vadd.f32 %v2545, %v2181
    %v2550 = vld [vmem:[%s17] sm:$0x1]
    %v2551 = vld [vmem:[%s18] sm:$0x1]
    %2552 = vadd.xlane.f32.xlu0 %v2548
    %v2553 = vpop.xlane.xlu0 %2552
    %2554 = vadd.xlane.f32.xlu0 %v2549
    %v2555 = vpop.xlane.xlu0 %2554
    %v2556 = vmul.f32 %v2553, %v349
    %v2557 = vmul.f32 %v2555, %v349
    %v2558 = vsub.f32 %v2548, %v2556
    %v2559 = vsub.f32 %v2549, %v2557
    %v2560 = vmul.f32 %v2558, %v2558
    %v2561 = vmul.f32 %v2559, %v2559
    %2562 = vadd.xlane.f32.xlu0 %v2560
    %v2563 = vpop.xlane.xlu0 %2562
    %2564 = vadd.xlane.f32.xlu0 %v2561
    %v2565 = vpop.xlane.xlu0 %2564
    %v2566 = vmul.f32 %v2563, %v349
    %v2567 = vmul.f32 %v2565, %v349
    %v2568 = vadd.f32 %v2566, 1e-05
    %v2569 = vadd.f32 %v2567, 1e-05
    %v2570 = vrsqrt.pop %v2568
    %v2571 = vrsqrt.pop %v2569
    %v2572 = vmul.f32 %v2558, %v2570
    %v2573 = vmul.f32 %v2559, %v2571
    %v2575 = vlaneseq
    %v2576 = vshrl.u32 %v2575, 7
    %v2577 = vsub.s32 0, %v2576
    %v2578 = vrot.slane %v2550, %v2577
    %v2580 = vmul.f32 %v2572, %v2578
    %v2581 = vmul.f32 %v2573, %v2578
    %v2583 = vlaneseq
    %v2584 = vshrl.u32 %v2583, 7
    %v2585 = vsub.s32 0, %v2584
    %v2586 = vrot.slane %v2551, %v2585
    %v2588 = vadd.f32 %v2580, %v2586
    %v2589 = vadd.f32 %v2581, %v2586
    %s2590 = scalar_lea.vmem [#allocation8], 192
    %v2591 = vld [vmem:[%s2590] sm:$0xff]
    %v2592 = vld [vmem:[%s2590 + $0x8] sm:$0xf]
    %v2593 = vld [vmem:[%s2590 + $0xc] sm:$0xff]
    %v2594 = vld [vmem:[%s2590 + $0x14] sm:$0xf]
    %v2595 = vld [vmem:[%s2590 + $0x18] sm:$0xff]
    %v2596 = vld [vmem:[%s2590 + $0x20] sm:$0xf]
    %v2597 = vld [vmem:[%s2590 + $0x24] sm:$0xff]
    %v2598 = vld [vmem:[%s2590 + $0x2c] sm:$0xf]
    %v2599 = vld [vmem:[%s2590 + $0x30] sm:$0xff]
    %v2600 = vld [vmem:[%s2590 + $0x38] sm:$0xf]
    %v2601 = vld [vmem:[%s2590 + $0x3c] sm:$0xff]
    %v2602 = vld [vmem:[%s2590 + $0x44] sm:$0xf]
    %v2603 = vld [vmem:[%s2590 + $0x48] sm:$0xff]
    %v2604 = vld [vmem:[%s2590 + $0x50] sm:$0xf]
    %v2605 = vld [vmem:[%s2590 + $0x54] sm:$0xff]
    %v2606 = vld [vmem:[%s2590 + $0x5c] sm:$0xf]
    %v2607 = vld [vmem:[%s2590 + $0x60] sm:$0xff]
    %v2608 = vld [vmem:[%s2590 + $0x68] sm:$0xf]
    %v2609 = vld [vmem:[%s2590 + $0x6c] sm:$0xff]
    %v2610 = vld [vmem:[%s2590 + $0x74] sm:$0xf]
    %v2611 = vld [vmem:[%s2590 + $0x78] sm:$0xff]
    %v2612 = vld [vmem:[%s2590 + $0x80] sm:$0xf]
    %v2613 = vld [vmem:[%s2590 + $0x84] sm:$0xff]
    %v2614 = vld [vmem:[%s2590 + $0x8c] sm:$0xf]
    %v2615 = vld [vmem:[%s2590 + $0x90] sm:$0xff]
    %v2616 = vld [vmem:[%s2590 + $0x98] sm:$0xf]
    %v2617 = vld [vmem:[%s2590 + $0x9c] sm:$0xff]
    %v2618 = vld [vmem:[%s2590 + $0xa4] sm:$0xf]
    %v2619 = vld [vmem:[%s2590 + $0xa8] sm:$0xff]
    %v2620 = vld [vmem:[%s2590 + $0xb0] sm:$0xf]
    %v2621 = vld [vmem:[%s2590 + $0xb4] sm:$0xff]
    %v2622 = vld [vmem:[%s2590 + $0xbc] sm:$0xf]
    %s2623 = scalar_lea.vmem %s8, 3
    %v2624 = vld [vmem:[%s2623] sm:$0x7]
    %v2625 = vpack.c.bf16 %v2589, %v2588
    %v2627 = vlaneseq
    %v2628 = vshrl.u32 %v2627, 7
    %v2629 = vsub.s32 0, %v2628
    %v2630 = vrot.slane %v2624, %v2629
    %v2631 = vlaneseq
    %v2632 = vshrl.u32 %v2631, 7
    %v2633 = vsub.s32 1, %v2632
    %v2634 = vrot.slane %v2624, %v2633
    %v2635 = vlaneseq
    %v2636 = vshrl.u32 %v2635, 7
    %v2637 = vsub.s32 2, %v2636
    %v2638 = vrot.slane %v2624, %v2637
    %v2674 = vunpack.c.l.b16 %v2591
    %v2675 = vunpack.c.h.b16 %v2591
    %v2676 = vunpack.c.l.b16 %v2592
    %v2677 = vunpack.c.l.b16 %v2593
    %v2678 = vunpack.c.h.b16 %v2593
    %v2679 = vunpack.c.l.b16 %v2594
    %v2680 = vunpack.c.l.b16 %v2595
    %v2681 = vunpack.c.h.b16 %v2595
    %v2682 = vunpack.c.l.b16 %v2596
    %v2683 = vunpack.c.l.b16 %v2597
    %v2684 = vunpack.c.h.b16 %v2597
    %v2685 = vunpack.c.l.b16 %v2598
    %v2686 = vunpack.c.l.b16 %v2599
    %v2687 = vunpack.c.h.b16 %v2599
    %v2688 = vunpack.c.l.b16 %v2600
    %v2689 = vunpack.c.l.b16 %v2601
    %v2690 = vunpack.c.h.b16 %v2601
    %v2691 = vunpack.c.l.b16 %v2602
    %v2692 = vunpack.c.l.b16 %v2603
    %v2693 = vunpack.c.h.b16 %v2603
    %v2694 = vunpack.c.l.b16 %v2604
    %v2695 = vunpack.c.l.b16 %v2605
    %v2696 = vunpack.c.h.b16 %v2605
    %v2697 = vunpack.c.l.b16 %v2606
    %v2698 = vunpack.c.l.b16 %v2607
    %v2699 = vunpack.c.h.b16 %v2607
    %v2700 = vunpack.c.l.b16 %v2608
    %v2701 = vunpack.c.l.b16 %v2609
    %v2702 = vunpack.c.h.b16 %v2609
    %v2703 = vunpack.c.l.b16 %v2610
    %v2704 = vunpack.c.l.b16 %v2611
    %v2705 = vunpack.c.h.b16 %v2611
    %v2706 = vunpack.c.l.b16 %v2612
    %v2707 = vunpack.c.l.b16 %v2613
    %v2708 = vunpack.c.h.b16 %v2613
    %v2709 = vunpack.c.l.b16 %v2614
    %v2710 = vunpack.c.l.b16 %v2615
    %v2711 = vunpack.c.h.b16 %v2615
    %v2712 = vunpack.c.l.b16 %v2616
    %v2713 = vunpack.c.l.b16 %v2617
    %v2714 = vunpack.c.h.b16 %v2617
    %v2715 = vunpack.c.l.b16 %v2618
    %v2716 = vunpack.c.l.b16 %v2619
    %v2717 = vunpack.c.h.b16 %v2619
    %v2718 = vunpack.c.l.b16 %v2620
    %v2719 = vunpack.c.l.b16 %v2621
    %v2720 = vunpack.c.h.b16 %v2621
    %v2721 = vunpack.c.l.b16 %v2622
    %v2722 = vpack.c.b16 %v2677, %v2674
    %v2723 = vpack.c.b16 %v2678, %v2675
    %v2724 = vpack.c.b16 %v2679, %v2676
    %v2725 = vpack.c.b16 %v2683, %v2680
    %v2726 = vpack.c.b16 %v2684, %v2681
    %v2727 = vpack.c.b16 %v2685, %v2682
    %v2728 = vpack.c.b16 %v2689, %v2686
    %v2729 = vpack.c.b16 %v2690, %v2687
    %v2730 = vpack.c.b16 %v2691, %v2688
    %v2731 = vpack.c.b16 %v2695, %v2692
    %v2732 = vpack.c.b16 %v2696, %v2693
    %v2733 = vpack.c.b16 %v2697, %v2694
    %v2734 = vpack.c.b16 %v2701, %v2698
    %v2735 = vpack.c.b16 %v2702, %v2699
    %v2736 = vpack.c.b16 %v2703, %v2700
    %v2737 = vpack.c.b16 %v2707, %v2704
    %v2738 = vpack.c.b16 %v2708, %v2705
    %v2739 = vpack.c.b16 %v2709, %v2706
    %v2740 = vpack.c.b16 %v2713, %v2710
    %v2741 = vpack.c.b16 %v2714, %v2711
    %v2742 = vpack.c.b16 %v2715, %v2712
    %v2743 = vpack.c.b16 %v2719, %v2716
    %v2744 = vpack.c.b16 %v2720, %v2717
    %v2745 = vpack.c.b16 %v2721, %v2718
    %2770 = vmatprep.subr.bf16.mxu0 %v2723
    %2771 = vmatpush1.bf16.msra.mxu0 %v2722
    %2772 = vmatprep.subr.bf16.mxu0 %v2726
    %2773 = vmatpush1.bf16.msra.mxu0 %v2725
    %2774 = vmatprep.subr.bf16.mxu0 %v2729
    %2775 = vmatpush1.bf16.msra.mxu0 %v2728
    %2776 = vmatprep.subr.bf16.mxu0 %v2732
    %2777 = vmatpush1.bf16.msra.mxu0 %v2731
    %2778 = vmatprep.subr.bf16.mxu0 %v2735
    %2779 = vmatpush1.bf16.msra.mxu0 %v2734
    %2780 = vmatprep.subr.bf16.mxu0 %v2738
    %2781 = vmatpush1.bf16.msra.mxu0 %v2737
    %2782 = vmatprep.subr.bf16.mxu0 %v2741
    %2783 = vmatpush1.bf16.msra.mxu0 %v2740
    %2784 = vmatprep.subr.bf16.mxu0 %v2744
    %2785 = vmatpush1.bf16.msra.mxu0 %v2743
    %2786 = vmatprep.subr.bf16.mxu0 0
    %2787 = vmatpush1.bf16.msra.mxu0 0
    %2788 = vmatprep.subr.bf16.mxu0 0
    %2789 = vmatpush1.bf16.msra.mxu0 0
    %2790 = vmatprep.subr.bf16.mxu0 0
    %2791 = vmatpush1.bf16.msra.mxu0 0
    %2792 = vmatprep.subr.bf16.mxu0 0
    %2793 = vmatpush1.bf16.msra.mxu0 0
    %2794 = vmatprep.subr.bf16.mxu0 0
    %2795 = vmatpush1.bf16.msra.mxu0 0
    %2796 = vmatprep.subr.bf16.mxu0 0
    %2797 = vmatpush1.bf16.msra.mxu0 0
    %2798 = vmatprep.subr.bf16.mxu0 0
    %2799 = vmatpush1.bf16.msra.mxu0 0
    %2800 = vmatprep.subr.bf16.mxu0 0
    %2801 = vmatpush1.bf16.msra.mxu0 0
    %2802 = vmatprep.mubr.bf16.mxu0 0
    %2803 = vmatmul.mubr.bf16.gmra.mrb[0].mxu0 %v2625
    %v2804 = vpop.f32.mrb[0].mxu0
    %v2805 = vadd.f32 %v2630, %v2804
    %v2806 = vpop.f32.mrb[0].mxu0
    %v2807 = vadd.f32 %v2634, %v2806
    %v2808 = vpop.f32.mrb[0].mxu0
    %v2809 = vadd.f32 %v2630, %v2808
    %v2810 = vpop.f32.mrb[0].mxu0
    %v2811 = vadd.f32 %v2634, %v2810
    %2812 = vdwg.mxu0
    %2813 = vmatprep.subr.bf16.mxu0 0
    %2814 = vmatpush1.bf16.msra.mxu0 %v2724
    %2815 = vmatprep.subr.bf16.mxu0 0
    %2816 = vmatpush1.bf16.msra.mxu0 %v2727
    %2817 = vmatprep.subr.bf16.mxu0 0
    %2818 = vmatpush1.bf16.msra.mxu0 %v2730
    %2819 = vmatprep.subr.bf16.mxu0 0
    %2820 = vmatpush1.bf16.msra.mxu0 %v2733
    %2821 = vmatprep.subr.bf16.mxu0 0
    %2822 = vmatpush1.bf16.msra.mxu0 %v2736
    %2823 = vmatprep.subr.bf16.mxu0 0
    %2824 = vmatpush1.bf16.msra.mxu0 %v2739
    %2825 = vmatprep.subr.bf16.mxu0 0
    %2826 = vmatpush1.bf16.msra.mxu0 %v2742
    %2827 = vmatprep.subr.bf16.mxu0 0
    %2828 = vmatpush1.bf16.msra.mxu0 %v2745
    %2829 = vmatprep.subr.bf16.mxu0 0
    %2830 = vmatpush1.bf16.msra.mxu0 0
    %2831 = vmatprep.subr.bf16.mxu0 0
    %2832 = vmatpush1.bf16.msra.mxu0 0
    %2833 = vmatprep.subr.bf16.mxu0 0
    %2834 = vmatpush1.bf16.msra.mxu0 0
    %2835 = vmatprep.subr.bf16.mxu0 0
    %2836 = vmatpush1.bf16.msra.mxu0 0
    %2837 = vmatprep.subr.bf16.mxu0 0
    %2838 = vmatpush1.bf16.msra.mxu0 0
    %2839 = vmatprep.subr.bf16.mxu0 0
    %2840 = vmatpush1.bf16.msra.mxu0 0
    %2841 = vmatprep.subr.bf16.mxu0 0
    %2842 = vmatpush1.bf16.msra.mxu0 0
    %2843 = vmatprep.subr.bf16.mxu0 0
    %2844 = vmatpush1.bf16.msra.mxu0 0
    %2845 = vmatprep.mubr.bf16.mxu0 0
    %2846 = vmatmul.mubr.bf16.gmra.mrb[0].mxu0 %v2625
    %v2847 = vpop.f32.mrb[0].mxu0
    %v2848 = vadd.f32 %v2638, %v2847
    %v2849 = vpop.f32.mrb[0].mxu0
    %v2850 = vpop.f32.mrb[0].mxu0
    %v2851 = vadd.f32 %v2638, %v2850
    %v2852 = vpop.f32.mrb[0].mxu0
    %2853 = vdwg.mxu0
    %v2855 = vsel %vm649, %v2805, 0
    %v2858 = vsel %vm649, %v2807, 0
    %2860 = vmatprep.subr.mxu0 0.0
    %2861 = vmatpush1.xpose.msra.mxu0 %v2858
    %2862 = vmatprep.subr.mxu0 0.0
    %2863 = vmatpush1.xpose.msra.mxu0 0.0
    %2864 = vmatprep.subr.mxu0 0.0
    %2865 = vmatpush1.xpose.msra.mxu0 0.0
    %2866 = vmatprep.subr.mxu0 0.0
    %2867 = vmatpush1.xpose.msra.mxu0 0.0
    %2868 = vmatprep.subr.mxu0 0.0
    %2869 = vmatpush1.xpose.msra.mxu0 0.0
    %2870 = vmatprep.subr.mxu0 0.0
    %2871 = vmatpush1.xpose.msra.mxu0 0.0
    %2872 = vmatprep.subr.mxu0 0.0
    %2873 = vmatpush1.xpose.msra.mxu0 0.0
    %2874 = vmatprep.subr.mxu0 0.0
    %2875 = vmatpush1.xpose.msra.mxu0 0.0
    %2876 = vmatprep.subr.mxu0 0.0
    %2877 = vmatpush1.xpose.msra.mxu0 0.0
    %2878 = vmatprep.subr.mxu0 0.0
    %2879 = vmatpush1.xpose.msra.mxu0 0.0
    %2880 = vmatprep.subr.mxu0 0.0
    %2881 = vmatpush1.xpose.msra.mxu0 0.0
    %2882 = vmatprep.subr.mxu0 0.0
    %2883 = vmatpush1.xpose.msra.mxu0 0.0
    %2884 = vmatprep.subr.mxu0 0.0
    %2885 = vmatpush1.xpose.msra.mxu0 0.0
    %2886 = vmatprep.subr.mxu0 0.0
    %2887 = vmatpush1.xpose.msra.mxu0 0.0
    %2888 = vmatprep.subr.mxu0 0.0
    %2889 = vmatpush1.xpose.msra.mxu0 0.0
    %2890 = vmatprep.subr.mxu0 0.0
    %2891 = vmatpush1.xpose.msra.mxu0 0.0
    %2892 = vmatprep.subr.mxu0 0.0
    %2893 = vmatpush1.xpose.msra.mxu0 0.0
    %2894 = vmatprep.subr.mxu0 0.0
    %2895 = vmatpush1.xpose.msra.mxu0 0.0
    %2896 = vmatprep.subr.mxu0 0.0
    %2897 = vmatpush1.xpose.msra.mxu0 0.0
    %2898 = vmatprep.subr.mxu0 0.0
    %2899 = vmatpush1.xpose.msra.mxu0 0.0
    %2900 = vmatprep.subr.mxu0 0.0
    %2901 = vmatpush1.xpose.msra.mxu0 0.0
    %2902 = vmatprep.subr.mxu0 0.0
    %2903 = vmatpush1.xpose.msra.mxu0 0.0
    %2904 = vmatprep.subr.mxu0 0.0
    %2905 = vmatpush1.xpose.msra.mxu0 0.0
    %2906 = vmatprep.subr.mxu0 0.0
    %2907 = vmatpush1.xpose.msra.mxu0 0.0
    %2908 = vmatprep.subr.mxu0 0.0
    %2909 = vmatpush1.xpose.msra.mxu0 0.0
    %2910 = vmatprep.subr.mxu0 0.0
    %2911 = vmatpush1.xpose.msra.mxu0 0.0
    %2912 = vmatprep.subr.mxu0 0.0
    %2913 = vmatpush1.xpose.msra.mxu0 0.0
    %2914 = vmatprep.subr.mxu0 0.0
    %2915 = vmatpush1.xpose.msra.mxu0 0.0
    %2916 = vmatprep.subr.mxu0 0.0
    %2917 = vmatpush1.xpose.msra.mxu0 0.0
    %2918 = vmatprep.subr.mxu0 0.0
    %2919 = vmatpush1.xpose.msra.mxu0 0.0
    %2920 = vmatprep.subr.mxu0 0.0
    %2921 = vmatpush1.xpose.msra.mxu0 0.0
    %2922 = vmatprep.subr.mxu0 0.0
    %2923 = vmatpush1.xpose.msra.mxu0 0.0
    %2924 = vmatprep.mubr.f32.mxu0 0.0
    %2925 = vmatmul.mubr.f32.gmra.mrb[0].mxu0 %v2855
    %v2926 = vpop.f32.mrb[0].mxu0
    %v2927 = vadd.f32 0.0, %v2926
    %v2928 = vpop.f32.mrb[0].mxu0
    %2929 = vdwg.mxu0
    %v2930 = vmul.f32 %v2927, 0.17677669
    %v2931 = vadd.f32 %v2930, %v731
    %v2932 = vsel %vm734, %v2931, -inf
    %2933 = vmax.xlane.f32.xlu0 %v2932
    %v2934 = vpop.xlane.xlu0 %2933
    %v2935 = vsub.f32 %v2931, %v2934
    %v2936 = vmul.f32 %v2935, 1.442695
    %v2937 = vpow.pop %v2936
    %v2938 = vsel %vm734, %v2937, 0.0
    %2939 = vadd.xlane.f32.xlu0 %v2938
    %v2940 = vpop.xlane.xlu0 %2939
    %v2941 = vrcp.pop %v2940
    %v2942 = vmul.f32 %v2937, %v2941
    %v2944 = vsel %vm734, %v2942, 0
    %2946 = vmatprep.subr.mxu0 0.0
    %2947 = vmatpush1.msra.mxu0 %v2848
    %2948 = vmatprep.subr.mxu0 0.0
    %2949 = vmatpush1.msra.mxu0 0.0
    %2950 = vmatprep.subr.mxu0 0.0
    %2951 = vmatpush1.msra.mxu0 0.0
    %2952 = vmatprep.subr.mxu0 0.0
    %2953 = vmatpush1.msra.mxu0 0.0
    %2954 = vmatprep.subr.mxu0 0.0
    %2955 = vmatpush1.msra.mxu0 0.0
    %2956 = vmatprep.subr.mxu0 0.0
    %2957 = vmatpush1.msra.mxu0 0.0
    %2958 = vmatprep.subr.mxu0 0.0
    %2959 = vmatpush1.msra.mxu0 0.0
    %2960 = vmatprep.subr.mxu0 0.0
    %2961 = vmatpush1.msra.mxu0 0.0
    %2962 = vmatprep.subr.mxu0 0.0
    %2963 = vmatpush1.msra.mxu0 0.0
    %2964 = vmatprep.subr.mxu0 0.0
    %2965 = vmatpush1.msra.mxu0 0.0
    %2966 = vmatprep.subr.mxu0 0.0
    %2967 = vmatpush1.msra.mxu0 0.0
    %2968 = vmatprep.subr.mxu0 0.0
    %2969 = vmatpush1.msra.mxu0 0.0
    %2970 = vmatprep.subr.mxu0 0.0
    %2971 = vmatpush1.msra.mxu0 0.0
    %2972 = vmatprep.subr.mxu0 0.0
    %2973 = vmatpush1.msra.mxu0 0.0
    %2974 = vmatprep.subr.mxu0 0.0
    %2975 = vmatpush1.msra.mxu0 0.0
    %2976 = vmatprep.subr.mxu0 0.0
    %2977 = vmatpush1.msra.mxu0 0.0
    %2978 = vmatprep.subr.mxu0 0.0
    %2979 = vmatpush1.msra.mxu0 0.0
    %2980 = vmatprep.subr.mxu0 0.0
    %2981 = vmatpush1.msra.mxu0 0.0
    %2982 = vmatprep.subr.mxu0 0.0
    %2983 = vmatpush1.msra.mxu0 0.0
    %2984 = vmatprep.subr.mxu0 0.0
    %2985 = vmatpush1.msra.mxu0 0.0
    %2986 = vmatprep.subr.mxu0 0.0
    %2987 = vmatpush1.msra.mxu0 0.0
    %2988 = vmatprep.subr.mxu0 0.0
    %2989 = vmatpush1.msra.mxu0 0.0
    %2990 = vmatprep.subr.mxu0 0.0
    %2991 = vmatpush1.msra.mxu0 0.0
    %2992 = vmatprep.subr.mxu0 0.0
    %2993 = vmatpush1.msra.mxu0 0.0
    %2994 = vmatprep.subr.mxu0 0.0
    %2995 = vmatpush1.msra.mxu0 0.0
    %2996 = vmatprep.subr.mxu0 0.0
    %2997 = vmatpush1.msra.mxu0 0.0
    %2998 = vmatprep.subr.mxu0 0.0
    %2999 = vmatpush1.msra.mxu0 0.0
    %3000 = vmatprep.subr.mxu0 0.0
    %3001 = vmatpush1.msra.mxu0 0.0
    %3002 = vmatprep.subr.mxu0 0.0
    %3003 = vmatpush1.msra.mxu0 0.0
    %3004 = vmatprep.subr.mxu0 0.0
    %3005 = vmatpush1.msra.mxu0 0.0
    %3006 = vmatprep.subr.mxu0 0.0
    %3007 = vmatpush1.msra.mxu0 0.0
    %3008 = vmatprep.subr.mxu0 0.0
    %3009 = vmatpush1.msra.mxu0 0.0
    %3010 = vmatprep.mubr.f32.mxu0 0.0
    %3011 = vmatmul.mubr.f32.gmra.mrb[0].mxu0 %v2944
    %v3012 = vpop.f32.mrb[0].mxu0
    %v3013 = vadd.f32 0.0, %v3012
    %v3014 = vpop.f32.mrb[0].mxu0
    %3015 = vdwg.mxu0
    %3016 = vrot.lane.b32.xlu0 %v2805, 96
    %v3017 = vpop.permute.xlu0 %3016
    %3018 = vrot.lane.b32.xlu0 %v2807, 96
    %v3019 = vpop.permute.xlu0 %3018
    %v3020 = vsel %vm649, %v3017, 0
    %v3022 = vsel %vm649, %v3019, 0
    %3024 = vmatprep.subr.mxu0 0.0
    %3025 = vmatpush1.xpose.msra.mxu0 %v3022
    %3026 = vmatprep.subr.mxu0 0.0
    %3027 = vmatpush1.xpose.msra.mxu0 0.0
    %3028 = vmatprep.subr.mxu0 0.0
    %3029 = vmatpush1.xpose.msra.mxu0 0.0
    %3030 = vmatprep.subr.mxu0 0.0
    %3031 = vmatpush1.xpose.msra.mxu0 0.0
    %3032 = vmatprep.subr.mxu0 0.0
    %3033 = vmatpush1.xpose.msra.mxu0 0.0
    %3034 = vmatprep.subr.mxu0 0.0
    %3035 = vmatpush1.xpose.msra.mxu0 0.0
    %3036 = vmatprep.subr.mxu0 0.0
    %3037 = vmatpush1.xpose.msra.mxu0 0.0
    %3038 = vmatprep.subr.mxu0 0.0
    %3039 = vmatpush1.xpose.msra.mxu0 0.0
    %3040 = vmatprep.subr.mxu0 0.0
    %3041 = vmatpush1.xpose.msra.mxu0 0.0
    %3042 = vmatprep.subr.mxu0 0.0
    %3043 = vmatpush1.xpose.msra.mxu0 0.0
    %3044 = vmatprep.subr.mxu0 0.0
    %3045 = vmatpush1.xpose.msra.mxu0 0.0
    %3046 = vmatprep.subr.mxu0 0.0
    %3047 = vmatpush1.xpose.msra.mxu0 0.0
    %3048 = vmatprep.subr.mxu0 0.0
    %3049 = vmatpush1.xpose.msra.mxu0 0.0
    %3050 = vmatprep.subr.mxu0 0.0
    %3051 = vmatpush1.xpose.msra.mxu0 0.0
    %3052 = vmatprep.subr.mxu0 0.0
    %3053 = vmatpush1.xpose.msra.mxu0 0.0
    %3054 = vmatprep.subr.mxu0 0.0
    %3055 = vmatpush1.xpose.msra.mxu0 0.0
    %3056 = vmatprep.subr.mxu0 0.0
    %3057 = vmatpush1.xpose.msra.mxu0 0.0
    %3058 = vmatprep.subr.mxu0 0.0
    %3059 = vmatpush1.xpose.msra.mxu0 0.0
    %3060 = vmatprep.subr.mxu0 0.0
    %3061 = vmatpush1.xpose.msra.mxu0 0.0
    %3062 = vmatprep.subr.mxu0 0.0
    %3063 = vmatpush1.xpose.msra.mxu0 0.0
    %3064 = vmatprep.subr.mxu0 0.0
    %3065 = vmatpush1.xpose.msra.mxu0 0.0
    %3066 = vmatprep.subr.mxu0 0.0
    %3067 = vmatpush1.xpose.msra.mxu0 0.0
    %3068 = vmatprep.subr.mxu0 0.0
    %3069 = vmatpush1.xpose.msra.mxu0 0.0
    %3070 = vmatprep.subr.mxu0 0.0
    %3071 = vmatpush1.xpose.msra.mxu0 0.0
    %3072 = vmatprep.subr.mxu0 0.0
    %3073 = vmatpush1.xpose.msra.mxu0 0.0
    %3074 = vmatprep.subr.mxu0 0.0
    %3075 = vmatpush1.xpose.msra.mxu0 0.0
    %3076 = vmatprep.subr.mxu0 0.0
    %3077 = vmatpush1.xpose.msra.mxu0 0.0
    %3078 = vmatprep.subr.mxu0 0.0
    %3079 = vmatpush1.xpose.msra.mxu0 0.0
    %3080 = vmatprep.subr.mxu0 0.0
    %3081 = vmatpush1.xpose.msra.mxu0 0.0
    %3082 = vmatprep.subr.mxu0 0.0
    %3083 = vmatpush1.xpose.msra.mxu0 0.0
    %3084 = vmatprep.subr.mxu0 0.0
    %3085 = vmatpush1.xpose.msra.mxu0 0.0
    %3086 = vmatprep.subr.mxu0 0.0
    %3087 = vmatpush1.xpose.msra.mxu0 0.0
    %3088 = vmatprep.mubr.f32.mxu0 0.0
    %3089 = vmatmul.mubr.f32.gmra.mrb[0].mxu0 %v3020
    %v3090 = vpop.f32.mrb[0].mxu0
    %v3091 = vadd.f32 0.0, %v3090
    %v3092 = vpop.f32.mrb[0].mxu0
    %3093 = vdwg.mxu0
    %v3094 = vmul.f32 %v3091, 0.17677669
    %v3095 = vadd.f32 %v3094, %v731
    %v3096 = vsel %vm734, %v3095, -inf
    %3097 = vmax.xlane.f32.xlu0 %v3096
    %v3098 = vpop.xlane.xlu0 %3097
    %v3099 = vsub.f32 %v3095, %v3098
    %v3100 = vmul.f32 %v3099, 1.442695
    %v3101 = vpow.pop %v3100
    %v3102 = vsel %vm734, %v3101, 0.0
    %3103 = vadd.xlane.f32.xlu0 %v3102
    %v3104 = vpop.xlane.xlu0 %3103
    %v3105 = vrcp.pop %v3104
    %v3106 = vmul.f32 %v3101, %v3105
    %3108 = vrot.lane.b32.xlu0 %v2848, 96
    %v3109 = vpop.permute.xlu0 %3108
    %v3112 = vsel %vm734, %v3106, 0
    %3114 = vmatprep.subr.mxu0 0.0
    %3115 = vmatpush1.msra.mxu0 %v3109
    %3116 = vmatprep.subr.mxu0 0.0
    %3117 = vmatpush1.msra.mxu0 0.0
    %3118 = vmatprep.subr.mxu0 0.0
    %3119 = vmatpush1.msra.mxu0 0.0
    %3120 = vmatprep.subr.mxu0 0.0
    %3121 = vmatpush1.msra.mxu0 0.0
    %3122 = vmatprep.subr.mxu0 0.0
    %3123 = vmatpush1.msra.mxu0 0.0
    %3124 = vmatprep.subr.mxu0 0.0
    %3125 = vmatpush1.msra.mxu0 0.0
    %3126 = vmatprep.subr.mxu0 0.0
    %3127 = vmatpush1.msra.mxu0 0.0
    %3128 = vmatprep.subr.mxu0 0.0
    %3129 = vmatpush1.msra.mxu0 0.0
    %3130 = vmatprep.subr.mxu0 0.0
    %3131 = vmatpush1.msra.mxu0 0.0
    %3132 = vmatprep.subr.mxu0 0.0
    %3133 = vmatpush1.msra.mxu0 0.0
    %3134 = vmatprep.subr.mxu0 0.0
    %3135 = vmatpush1.msra.mxu0 0.0
    %3136 = vmatprep.subr.mxu0 0.0
    %3137 = vmatpush1.msra.mxu0 0.0
    %3138 = vmatprep.subr.mxu0 0.0
    %3139 = vmatpush1.msra.mxu0 0.0
    %3140 = vmatprep.subr.mxu0 0.0
    %3141 = vmatpush1.msra.mxu0 0.0
    %3142 = vmatprep.subr.mxu0 0.0
    %3143 = vmatpush1.msra.mxu0 0.0
    %3144 = vmatprep.subr.mxu0 0.0
    %3145 = vmatpush1.msra.mxu0 0.0
    %3146 = vmatprep.subr.mxu0 0.0
    %3147 = vmatpush1.msra.mxu0 0.0
    %3148 = vmatprep.subr.mxu0 0.0
    %3149 = vmatpush1.msra.mxu0 0.0
    %3150 = vmatprep.subr.mxu0 0.0
    %3151 = vmatpush1.msra.mxu0 0.0
    %3152 = vmatprep.subr.mxu0 0.0
    %3153 = vmatpush1.msra.mxu0 0.0
    %3154 = vmatprep.subr.mxu0 0.0
    %3155 = vmatpush1.msra.mxu0 0.0
    %3156 = vmatprep.subr.mxu0 0.0
    %3157 = vmatpush1.msra.mxu0 0.0
    %3158 = vmatprep.subr.mxu0 0.0
    %3159 = vmatpush1.msra.mxu0 0.0
    %3160 = vmatprep.subr.mxu0 0.0
    %3161 = vmatpush1.msra.mxu0 0.0
    %3162 = vmatprep.subr.mxu0 0.0
    %3163 = vmatpush1.msra.mxu0 0.0
    %3164 = vmatprep.subr.mxu0 0.0
    %3165 = vmatpush1.msra.mxu0 0.0
    %3166 = vmatprep.subr.mxu0 0.0
    %3167 = vmatpush1.msra.mxu0 0.0
    %3168 = vmatprep.subr.mxu0 0.0
    %3169 = vmatpush1.msra.mxu0 0.0
    %3170 = vmatprep.subr.mxu0 0.0
    %3171 = vmatpush1.msra.mxu0 0.0
    %3172 = vmatprep.subr.mxu0 0.0
    %3173 = vmatpush1.msra.mxu0 0.0
    %3174 = vmatprep.subr.mxu0 0.0
    %3175 = vmatpush1.msra.mxu0 0.0
    %3176 = vmatprep.subr.mxu0 0.0
    %3177 = vmatpush1.msra.mxu0 0.0
    %3178 = vmatprep.mubr.f32.mxu0 0.0
    %3179 = vmatmul.mubr.f32.gmra.mrb[0].mxu0 %v3112
    %v3180 = vpop.f32.mrb[0].mxu0
    %v3181 = vadd.f32 0.0, %v3180
    %v3182 = vpop.f32.mrb[0].mxu0
    %3183 = vdwg.mxu0
    %3184 = vrot.lane.b32.xlu0 %v2805, 64
    %v3185 = vpop.permute.xlu0 %3184
    %3186 = vrot.lane.b32.xlu0 %v2807, 64
    %v3187 = vpop.permute.xlu0 %3186
    %v3188 = vsel %vm649, %v3185, 0
    %v3190 = vsel %vm649, %v3187, 0
    %3192 = vmatprep.subr.mxu0 0.0
    %3193 = vmatpush1.xpose.msra.mxu0 %v3190
    %3194 = vmatprep.subr.mxu0 0.0
    %3195 = vmatpush1.xpose.msra.mxu0 0.0
    %3196 = vmatprep.subr.mxu0 0.0
    %3197 = vmatpush1.xpose.msra.mxu0 0.0
    %3198 = vmatprep.subr.mxu0 0.0
    %3199 = vmatpush1.xpose.msra.mxu0 0.0
    %3200 = vmatprep.subr.mxu0 0.0
    %3201 = vmatpush1.xpose.msra.mxu0 0.0
    %3202 = vmatprep.subr.mxu0 0.0
    %3203 = vmatpush1.xpose.msra.mxu0 0.0
    %3204 = vmatprep.subr.mxu0 0.0
    %3205 = vmatpush1.xpose.msra.mxu0 0.0
    %3206 = vmatprep.subr.mxu0 0.0
    %3207 = vmatpush1.xpose.msra.mxu0 0.0
    %3208 = vmatprep.subr.mxu0 0.0
    %3209 = vmatpush1.xpose.msra.mxu0 0.0
    %3210 = vmatprep.subr.mxu0 0.0
    %3211 = vmatpush1.xpose.msra.mxu0 0.0
    %3212 = vmatprep.subr.mxu0 0.0
    %3213 = vmatpush1.xpose.msra.mxu0 0.0
    %3214 = vmatprep.subr.mxu0 0.0
    %3215 = vmatpush1.xpose.msra.mxu0 0.0
    %3216 = vmatprep.subr.mxu0 0.0
    %3217 = vmatpush1.xpose.msra.mxu0 0.0
    %3218 = vmatprep.subr.mxu0 0.0
    %3219 = vmatpush1.xpose.msra.mxu0 0.0
    %3220 = vmatprep.subr.mxu0 0.0
    %3221 = vmatpush1.xpose.msra.mxu0 0.0
    %3222 = vmatprep.subr.mxu0 0.0
    %3223 = vmatpush1.xpose.msra.mxu0 0.0
    %3224 = vmatprep.subr.mxu0 0.0
    %3225 = vmatpush1.xpose.msra.mxu0 0.0
    %3226 = vmatprep.subr.mxu0 0.0
    %3227 = vmatpush1.xpose.msra.mxu0 0.0
    %3228 = vmatprep.subr.mxu0 0.0
    %3229 = vmatpush1.xpose.msra.mxu0 0.0
    %3230 = vmatprep.subr.mxu0 0.0
    %3231 = vmatpush1.xpose.msra.mxu0 0.0
    %3232 = vmatprep.subr.mxu0 0.0
    %3233 = vmatpush1.xpose.msra.mxu0 0.0
    %3234 = vmatprep.subr.mxu0 0.0
    %3235 = vmatpush1.xpose.msra.mxu0 0.0
    %3236 = vmatprep.subr.mxu0 0.0
    %3237 = vmatpush1.xpose.msra.mxu0 0.0
    %3238 = vmatprep.subr.mxu0 0.0
    %3239 = vmatpush1.xpose.msra.mxu0 0.0
    %3240 = vmatprep.subr.mxu0 0.0
    %3241 = vmatpush1.xpose.msra.mxu0 0.0
    %3242 = vmatprep.subr.mxu0 0.0
    %3243 = vmatpush1.xpose.msra.mxu0 0.0
    %3244 = vmatprep.subr.mxu0 0.0
    %3245 = vmatpush1.xpose.msra.mxu0 0.0
    %3246 = vmatprep.subr.mxu0 0.0
    %3247 = vmatpush1.xpose.msra.mxu0 0.0
    %3248 = vmatprep.subr.mxu0 0.0
    %3249 = vmatpush1.xpose.msra.mxu0 0.0
    %3250 = vmatprep.subr.mxu0 0.0
    %3251 = vmatpush1.xpose.msra.mxu0 0.0
    %3252 = vmatprep.subr.mxu0 0.0
    %3253 = vmatpush1.xpose.msra.mxu0 0.0
    %3254 = vmatprep.subr.mxu0 0.0
    %3255 = vmatpush1.xpose.msra.mxu0 0.0
    %3256 = vmatprep.mubr.f32.mxu0 0.0
    %3257 = vmatmul.mubr.f32.gmra.mrb[0].mxu0 %v3188
    %v3258 = vpop.f32.mrb[0].mxu0
    %v3259 = vadd.f32 0.0, %v3258
    %v3260 = vpop.f32.mrb[0].mxu0
    %3261 = vdwg.mxu0
    %v3262 = vmul.f32 %v3259, 0.17677669
    %v3263 = vadd.f32 %v3262, %v731
    %v3264 = vsel %vm734, %v3263, -inf
    %3265 = vmax.xlane.f32.xlu0 %v3264
    %v3266 = vpop.xlane.xlu0 %3265
    %v3267 = vsub.f32 %v3263, %v3266
    %v3268 = vmul.f32 %v3267, 1.442695
    %v3269 = vpow.pop %v3268
    %v3270 = vsel %vm734, %v3269, 0.0
    %3271 = vadd.xlane.f32.xlu0 %v3270
    %v3272 = vpop.xlane.xlu0 %3271
    %v3273 = vrcp.pop %v3272
    %v3274 = vmul.f32 %v3269, %v3273
    %3275 = vrot.lane.b32.xlu0 %v2848, 64
    %v3276 = vpop.permute.xlu0 %3275
    %v3279 = vsel %vm734, %v3274, 0
    %3281 = vmatprep.subr.mxu0 0.0
    %3282 = vmatpush1.msra.mxu0 %v3276
    %3283 = vmatprep.subr.mxu0 0.0
    %3284 = vmatpush1.msra.mxu0 0.0
    %3285 = vmatprep.subr.mxu0 0.0
    %3286 = vmatpush1.msra.mxu0 0.0
    %3287 = vmatprep.subr.mxu0 0.0
    %3288 = vmatpush1.msra.mxu0 0.0
    %3289 = vmatprep.subr.mxu0 0.0
    %3290 = vmatpush1.msra.mxu0 0.0
    %3291 = vmatprep.subr.mxu0 0.0
    %3292 = vmatpush1.msra.mxu0 0.0
    %3293 = vmatprep.subr.mxu0 0.0
    %3294 = vmatpush1.msra.mxu0 0.0
    %3295 = vmatprep.subr.mxu0 0.0
    %3296 = vmatpush1.msra.mxu0 0.0
    %3297 = vmatprep.subr.mxu0 0.0
    %3298 = vmatpush1.msra.mxu0 0.0
    %3299 = vmatprep.subr.mxu0 0.0
    %3300 = vmatpush1.msra.mxu0 0.0
    %3301 = vmatprep.subr.mxu0 0.0
    %3302 = vmatpush1.msra.mxu0 0.0
    %3303 = vmatprep.subr.mxu0 0.0
    %3304 = vmatpush1.msra.mxu0 0.0
    %3305 = vmatprep.subr.mxu0 0.0
    %3306 = vmatpush1.msra.mxu0 0.0
    %3307 = vmatprep.subr.mxu0 0.0
    %3308 = vmatpush1.msra.mxu0 0.0
    %3309 = vmatprep.subr.mxu0 0.0
    %3310 = vmatpush1.msra.mxu0 0.0
    %3311 = vmatprep.subr.mxu0 0.0
    %3312 = vmatpush1.msra.mxu0 0.0
    %3313 = vmatprep.subr.mxu0 0.0
    %3314 = vmatpush1.msra.mxu0 0.0
    %3315 = vmatprep.subr.mxu0 0.0
    %3316 = vmatpush1.msra.mxu0 0.0
    %3317 = vmatprep.subr.mxu0 0.0
    %3318 = vmatpush1.msra.mxu0 0.0
    %3319 = vmatprep.subr.mxu0 0.0
    %3320 = vmatpush1.msra.mxu0 0.0
    %3321 = vmatprep.subr.mxu0 0.0
    %3322 = vmatpush1.msra.mxu0 0.0
    %3323 = vmatprep.subr.mxu0 0.0
    %3324 = vmatpush1.msra.mxu0 0.0
    %3325 = vmatprep.subr.mxu0 0.0
    %3326 = vmatpush1.msra.mxu0 0.0
    %3327 = vmatprep.subr.mxu0 0.0
    %3328 = vmatpush1.msra.mxu0 0.0
    %3329 = vmatprep.subr.mxu0 0.0
    %3330 = vmatpush1.msra.mxu0 0.0
    %3331 = vmatprep.subr.mxu0 0.0
    %3332 = vmatpush1.msra.mxu0 0.0
    %3333 = vmatprep.subr.mxu0 0.0
    %3334 = vmatpush1.msra.mxu0 0.0
    %3335 = vmatprep.subr.mxu0 0.0
    %3336 = vmatpush1.msra.mxu0 0.0
    %3337 = vmatprep.subr.mxu0 0.0
    %3338 = vmatpush1.msra.mxu0 0.0
    %3339 = vmatprep.subr.mxu0 0.0
    %3340 = vmatpush1.msra.mxu0 0.0
    %3341 = vmatprep.subr.mxu0 0.0
    %3342 = vmatpush1.msra.mxu0 0.0
    %3343 = vmatprep.subr.mxu0 0.0
    %3344 = vmatpush1.msra.mxu0 0.0
    %3345 = vmatprep.mubr.f32.mxu0 0.0
    %3346 = vmatmul.mubr.f32.gmra.mrb[0].mxu0 %v3279
    %v3347 = vpop.f32.mrb[0].mxu0
    %v3348 = vadd.f32 0.0, %v3347
    %v3349 = vpop.f32.mrb[0].mxu0
    %3350 = vdwg.mxu0
    %3351 = vrot.lane.b32.xlu0 %v2805, 32
    %v3352 = vpop.permute.xlu0 %3351
    %3353 = vrot.lane.b32.xlu0 %v2807, 32
    %v3354 = vpop.permute.xlu0 %3353
    %v3355 = vsel %vm649, %v3352, 0
    %v3357 = vsel %vm649, %v3354, 0
    %3359 = vmatprep.subr.mxu0 0.0
    %3360 = vmatpush1.xpose.msra.mxu0 %v3357
    %3361 = vmatprep.subr.mxu0 0.0
    %3362 = vmatpush1.xpose.msra.mxu0 0.0
    %3363 = vmatprep.subr.mxu0 0.0
    %3364 = vmatpush1.xpose.msra.mxu0 0.0
    %3365 = vmatprep.subr.mxu0 0.0
    %3366 = vmatpush1.xpose.msra.mxu0 0.0
    %3367 = vmatprep.subr.mxu0 0.0
    %3368 = vmatpush1.xpose.msra.mxu0 0.0
    %3369 = vmatprep.subr.mxu0 0.0
    %3370 = vmatpush1.xpose.msra.mxu0 0.0
    %3371 = vmatprep.subr.mxu0 0.0
    %3372 = vmatpush1.xpose.msra.mxu0 0.0
    %3373 = vmatprep.subr.mxu0 0.0
    %3374 = vmatpush1.xpose.msra.mxu0 0.0
    %3375 = vmatprep.subr.mxu0 0.0
    %3376 = vmatpush1.xpose.msra.mxu0 0.0
    %3377 = vmatprep.subr.mxu0 0.0
    %3378 = vmatpush1.xpose.msra.mxu0 0.0
    %3379 = vmatprep.subr.mxu0 0.0
    %3380 = vmatpush1.xpose.msra.mxu0 0.0
    %3381 = vmatprep.subr.mxu0 0.0
    %3382 = vmatpush1.xpose.msra.mxu0 0.0
    %3383 = vmatprep.subr.mxu0 0.0
    %3384 = vmatpush1.xpose.msra.mxu0 0.0
    %3385 = vmatprep.subr.mxu0 0.0
    %3386 = vmatpush1.xpose.msra.mxu0 0.0
    %3387 = vmatprep.subr.mxu0 0.0
    %3388 = vmatpush1.xpose.msra.mxu0 0.0
    %3389 = vmatprep.subr.mxu0 0.0
    %3390 = vmatpush1.xpose.msra.mxu0 0.0
    %3391 = vmatprep.subr.mxu0 0.0
    %3392 = vmatpush1.xpose.msra.mxu0 0.0
    %3393 = vmatprep.subr.mxu0 0.0
    %3394 = vmatpush1.xpose.msra.mxu0 0.0
    %3395 = vmatprep.subr.mxu0 0.0
    %3396 = vmatpush1.xpose.msra.mxu0 0.0
    %3397 = vmatprep.subr.mxu0 0.0
    %3398 = vmatpush1.xpose.msra.mxu0 0.0
    %3399 = vmatprep.subr.mxu0 0.0
    %3400 = vmatpush1.xpose.msra.mxu0 0.0
    %3401 = vmatprep.subr.mxu0 0.0
    %3402 = vmatpush1.xpose.msra.mxu0 0.0
    %3403 = vmatprep.subr.mxu0 0.0
    %3404 = vmatpush1.xpose.msra.mxu0 0.0
    %3405 = vmatprep.subr.mxu0 0.0
    %3406 = vmatpush1.xpose.msra.mxu0 0.0
    %3407 = vmatprep.subr.mxu0 0.0
    %3408 = vmatpush1.xpose.msra.mxu0 0.0
    %3409 = vmatprep.subr.mxu0 0.0
    %3410 = vmatpush1.xpose.msra.mxu0 0.0
    %3411 = vmatprep.subr.mxu0 0.0
    %3412 = vmatpush1.xpose.msra.mxu0 0.0
    %3413 = vmatprep.subr.mxu0 0.0
    %3414 = vmatpush1.xpose.msra.mxu0 0.0
    %3415 = vmatprep.subr.mxu0 0.0
    %3416 = vmatpush1.xpose.msra.mxu0 0.0
    %3417 = vmatprep.subr.mxu0 0.0
    %3418 = vmatpush1.xpose.msra.mxu0 0.0
    %3419 = vmatprep.subr.mxu0 0.0
    %3420 = vmatpush1.xpose.msra.mxu0 0.0
    %3421 = vmatprep.subr.mxu0 0.0
    %3422 = vmatpush1.xpose.msra.mxu0 0.0
    %3423 = vmatprep.mubr.f32.mxu0 0.0
    %3424 = vmatmul.mubr.f32.gmra.mrb[0].mxu0 %v3355
    %v3425 = vpop.f32.mrb[0].mxu0
    %v3426 = vadd.f32 0.0, %v3425
    %v3427 = vpop.f32.mrb[0].mxu0
    %3428 = vdwg.mxu0
    %v3429 = vmul.f32 %v3426, 0.17677669
    %v3430 = vadd.f32 %v3429, %v731
    %v3431 = vsel %vm734, %v3430, -inf
    %3432 = vmax.xlane.f32.xlu0 %v3431
    %v3433 = vpop.xlane.xlu0 %3432
    %v3434 = vsub.f32 %v3430, %v3433
    %v3435 = vmul.f32 %v3434, 1.442695
    %v3436 = vpow.pop %v3435
    %v3437 = vsel %vm734, %v3436, 0.0
    %3438 = vadd.xlane.f32.xlu0 %v3437
    %v3439 = vpop.xlane.xlu0 %3438
    %v3440 = vrcp.pop %v3439
    %v3441 = vmul.f32 %v3436, %v3440
    %3442 = vrot.lane.b32.xlu0 %v2848, 32
    %v3443 = vpop.permute.xlu0 %3442
    %v3446 = vsel %vm734, %v3441, 0
    %3448 = vmatprep.subr.mxu0 0.0
    %3449 = vmatpush1.msra.mxu0 %v3443
    %3450 = vmatprep.subr.mxu0 0.0
    %3451 = vmatpush1.msra.mxu0 0.0
    %3452 = vmatprep.subr.mxu0 0.0
    %3453 = vmatpush1.msra.mxu0 0.0
    %3454 = vmatprep.subr.mxu0 0.0
    %3455 = vmatpush1.msra.mxu0 0.0
    %3456 = vmatprep.subr.mxu0 0.0
    %3457 = vmatpush1.msra.mxu0 0.0
    %3458 = vmatprep.subr.mxu0 0.0
    %3459 = vmatpush1.msra.mxu0 0.0
    %3460 = vmatprep.subr.mxu0 0.0
    %3461 = vmatpush1.msra.mxu0 0.0
    %3462 = vmatprep.subr.mxu0 0.0
    %3463 = vmatpush1.msra.mxu0 0.0
    %3464 = vmatprep.subr.mxu0 0.0
    %3465 = vmatpush1.msra.mxu0 0.0
    %3466 = vmatprep.subr.mxu0 0.0
    %3467 = vmatpush1.msra.mxu0 0.0
    %3468 = vmatprep.subr.mxu0 0.0
    %3469 = vmatpush1.msra.mxu0 0.0
    %3470 = vmatprep.subr.mxu0 0.0
    %3471 = vmatpush1.msra.mxu0 0.0
    %3472 = vmatprep.subr.mxu0 0.0
    %3473 = vmatpush1.msra.mxu0 0.0
    %3474 = vmatprep.subr.mxu0 0.0
    %3475 = vmatpush1.msra.mxu0 0.0
    %3476 = vmatprep.subr.mxu0 0.0
    %3477 = vmatpush1.msra.mxu0 0.0
    %3478 = vmatprep.subr.mxu0 0.0
    %3479 = vmatpush1.msra.mxu0 0.0
    %3480 = vmatprep.subr.mxu0 0.0
    %3481 = vmatpush1.msra.mxu0 0.0
    %3482 = vmatprep.subr.mxu0 0.0
    %3483 = vmatpush1.msra.mxu0 0.0
    %3484 = vmatprep.subr.mxu0 0.0
    %3485 = vmatpush1.msra.mxu0 0.0
    %3486 = vmatprep.subr.mxu0 0.0
    %3487 = vmatpush1.msra.mxu0 0.0
    %3488 = vmatprep.subr.mxu0 0.0
    %3489 = vmatpush1.msra.mxu0 0.0
    %3490 = vmatprep.subr.mxu0 0.0
    %3491 = vmatpush1.msra.mxu0 0.0
    %3492 = vmatprep.subr.mxu0 0.0
    %3493 = vmatpush1.msra.mxu0 0.0
    %3494 = vmatprep.subr.mxu0 0.0
    %3495 = vmatpush1.msra.mxu0 0.0
    %3496 = vmatprep.subr.mxu0 0.0
    %3497 = vmatpush1.msra.mxu0 0.0
    %3498 = vmatprep.subr.mxu0 0.0
    %3499 = vmatpush1.msra.mxu0 0.0
    %3500 = vmatprep.subr.mxu0 0.0
    %3501 = vmatpush1.msra.mxu0 0.0
    %3502 = vmatprep.subr.mxu0 0.0
    %3503 = vmatpush1.msra.mxu0 0.0
    %3504 = vmatprep.subr.mxu0 0.0
    %3505 = vmatpush1.msra.mxu0 0.0
    %3506 = vmatprep.subr.mxu0 0.0
    %3507 = vmatpush1.msra.mxu0 0.0
    %3508 = vmatprep.subr.mxu0 0.0
    %3509 = vmatpush1.msra.mxu0 0.0
    %3510 = vmatprep.subr.mxu0 0.0
    %3511 = vmatpush1.msra.mxu0 0.0
    %3512 = vmatprep.mubr.f32.mxu0 0.0
    %3513 = vmatmul.mubr.f32.gmra.mrb[0].mxu0 %v3446
    %v3514 = vpop.f32.mrb[0].mxu0
    %v3515 = vadd.f32 0.0, %v3514
    %v3516 = vpop.f32.mrb[0].mxu0
    %3517 = vdwg.mxu0
    %3519 = vrot.lane.b32.xlu0 %v3181, 32
    %v3520 = vpop.permute.xlu0 %3519
    %3523 = vrot.lane.b32.xlu0 %v3348, 64
    %v3524 = vpop.permute.xlu0 %3523
    %3527 = vrot.lane.b32.xlu0 %v3515, 96
    %v3528 = vpop.permute.xlu0 %3527
    %v3530 = vsel %vm649, %v3013, %v3520
    %v3531 = vsel %vm1334, %v3530, %v3524
    %v3532 = vsel %vm1336, %v3531, %v3528
    %v3534 = vsel %vm649, %v2809, 0
    %v3537 = vsel %vm649, %v2811, 0
    %3539 = vmatprep.subr.mxu0 0.0
    %3540 = vmatpush1.xpose.msra.mxu0 %v3537
    %3541 = vmatprep.subr.mxu0 0.0
    %3542 = vmatpush1.xpose.msra.mxu0 0.0
    %3543 = vmatprep.subr.mxu0 0.0
    %3544 = vmatpush1.xpose.msra.mxu0 0.0
    %3545 = vmatprep.subr.mxu0 0.0
    %3546 = vmatpush1.xpose.msra.mxu0 0.0
    %3547 = vmatprep.subr.mxu0 0.0
    %3548 = vmatpush1.xpose.msra.mxu0 0.0
    %3549 = vmatprep.subr.mxu0 0.0
    %3550 = vmatpush1.xpose.msra.mxu0 0.0
    %3551 = vmatprep.subr.mxu0 0.0
    %3552 = vmatpush1.xpose.msra.mxu0 0.0
    %3553 = vmatprep.subr.mxu0 0.0
    %3554 = vmatpush1.xpose.msra.mxu0 0.0
    %3555 = vmatprep.subr.mxu0 0.0
    %3556 = vmatpush1.xpose.msra.mxu0 0.0
    %3557 = vmatprep.subr.mxu0 0.0
    %3558 = vmatpush1.xpose.msra.mxu0 0.0
    %3559 = vmatprep.subr.mxu0 0.0
    %3560 = vmatpush1.xpose.msra.mxu0 0.0
    %3561 = vmatprep.subr.mxu0 0.0
    %3562 = vmatpush1.xpose.msra.mxu0 0.0
    %3563 = vmatprep.subr.mxu0 0.0
    %3564 = vmatpush1.xpose.msra.mxu0 0.0
    %3565 = vmatprep.subr.mxu0 0.0
    %3566 = vmatpush1.xpose.msra.mxu0 0.0
    %3567 = vmatprep.subr.mxu0 0.0
    %3568 = vmatpush1.xpose.msra.mxu0 0.0
    %3569 = vmatprep.subr.mxu0 0.0
    %3570 = vmatpush1.xpose.msra.mxu0 0.0
    %3571 = vmatprep.subr.mxu0 0.0
    %3572 = vmatpush1.xpose.msra.mxu0 0.0
    %3573 = vmatprep.subr.mxu0 0.0
    %3574 = vmatpush1.xpose.msra.mxu0 0.0
    %3575 = vmatprep.subr.mxu0 0.0
    %3576 = vmatpush1.xpose.msra.mxu0 0.0
    %3577 = vmatprep.subr.mxu0 0.0
    %3578 = vmatpush1.xpose.msra.mxu0 0.0
    %3579 = vmatprep.subr.mxu0 0.0
    %3580 = vmatpush1.xpose.msra.mxu0 0.0
    %3581 = vmatprep.subr.mxu0 0.0
    %3582 = vmatpush1.xpose.msra.mxu0 0.0
    %3583 = vmatprep.subr.mxu0 0.0
    %3584 = vmatpush1.xpose.msra.mxu0 0.0
    %3585 = vmatprep.subr.mxu0 0.0
    %3586 = vmatpush1.xpose.msra.mxu0 0.0
    %3587 = vmatprep.subr.mxu0 0.0
    %3588 = vmatpush1.xpose.msra.mxu0 0.0
    %3589 = vmatprep.subr.mxu0 0.0
    %3590 = vmatpush1.xpose.msra.mxu0 0.0
    %3591 = vmatprep.subr.mxu0 0.0
    %3592 = vmatpush1.xpose.msra.mxu0 0.0
    %3593 = vmatprep.subr.mxu0 0.0
    %3594 = vmatpush1.xpose.msra.mxu0 0.0
    %3595 = vmatprep.subr.mxu0 0.0
    %3596 = vmatpush1.xpose.msra.mxu0 0.0
    %3597 = vmatprep.subr.mxu0 0.0
    %3598 = vmatpush1.xpose.msra.mxu0 0.0
    %3599 = vmatprep.subr.mxu0 0.0
    %3600 = vmatpush1.xpose.msra.mxu0 0.0
    %3601 = vmatprep.subr.mxu0 0.0
    %3602 = vmatpush1.xpose.msra.mxu0 0.0
    %3603 = vmatprep.mubr.f32.mxu0 0.0
    %3604 = vmatmul.mubr.f32.gmra.mrb[0].mxu0 %v3534
    %v3605 = vpop.f32.mrb[0].mxu0
    %v3606 = vadd.f32 0.0, %v3605
    %v3607 = vpop.f32.mrb[0].mxu0
    %3608 = vdwg.mxu0
    %v3609 = vmul.f32 %v3606, 0.17677669
    %v3610 = vadd.f32 %v3609, %v1423
    %v3611 = vsel %vm734, %v3610, -inf
    %3612 = vmax.xlane.f32.xlu0 %v3611
    %v3613 = vpop.xlane.xlu0 %3612
    %v3614 = vsub.f32 %v3610, %v3613
    %v3615 = vmul.f32 %v3614, 1.442695
    %v3616 = vpow.pop %v3615
    %v3617 = vsel %vm734, %v3616, 0.0
    %3618 = vadd.xlane.f32.xlu0 %v3617
    %v3619 = vpop.xlane.xlu0 %3618
    %v3620 = vrcp.pop %v3619
    %v3621 = vmul.f32 %v3616, %v3620
    %v3623 = vsel %vm734, %v3621, 0
    %3625 = vmatprep.subr.mxu0 0.0
    %3626 = vmatpush1.msra.mxu0 %v2851
    %3627 = vmatprep.subr.mxu0 0.0
    %3628 = vmatpush1.msra.mxu0 0.0
    %3629 = vmatprep.subr.mxu0 0.0
    %3630 = vmatpush1.msra.mxu0 0.0
    %3631 = vmatprep.subr.mxu0 0.0
    %3632 = vmatpush1.msra.mxu0 0.0
    %3633 = vmatprep.subr.mxu0 0.0
    %3634 = vmatpush1.msra.mxu0 0.0
    %3635 = vmatprep.subr.mxu0 0.0
    %3636 = vmatpush1.msra.mxu0 0.0
    %3637 = vmatprep.subr.mxu0 0.0
    %3638 = vmatpush1.msra.mxu0 0.0
    %3639 = vmatprep.subr.mxu0 0.0
    %3640 = vmatpush1.msra.mxu0 0.0
    %3641 = vmatprep.subr.mxu0 0.0
    %3642 = vmatpush1.msra.mxu0 0.0
    %3643 = vmatprep.subr.mxu0 0.0
    %3644 = vmatpush1.msra.mxu0 0.0
    %3645 = vmatprep.subr.mxu0 0.0
    %3646 = vmatpush1.msra.mxu0 0.0
    %3647 = vmatprep.subr.mxu0 0.0
    %3648 = vmatpush1.msra.mxu0 0.0
    %3649 = vmatprep.subr.mxu0 0.0
    %3650 = vmatpush1.msra.mxu0 0.0
    %3651 = vmatprep.subr.mxu0 0.0
    %3652 = vmatpush1.msra.mxu0 0.0
    %3653 = vmatprep.subr.mxu0 0.0
    %3654 = vmatpush1.msra.mxu0 0.0
    %3655 = vmatprep.subr.mxu0 0.0
    %3656 = vmatpush1.msra.mxu0 0.0
    %3657 = vmatprep.subr.mxu0 0.0
    %3658 = vmatpush1.msra.mxu0 0.0
    %3659 = vmatprep.subr.mxu0 0.0
    %3660 = vmatpush1.msra.mxu0 0.0
    %3661 = vmatprep.subr.mxu0 0.0
    %3662 = vmatpush1.msra.mxu0 0.0
    %3663 = vmatprep.subr.mxu0 0.0
    %3664 = vmatpush1.msra.mxu0 0.0
    %3665 = vmatprep.subr.mxu0 0.0
    %3666 = vmatpush1.msra.mxu0 0.0
    %3667 = vmatprep.subr.mxu0 0.0
    %3668 = vmatpush1.msra.mxu0 0.0
    %3669 = vmatprep.subr.mxu0 0.0
    %3670 = vmatpush1.msra.mxu0 0.0
    %3671 = vmatprep.subr.mxu0 0.0
    %3672 = vmatpush1.msra.mxu0 0.0
    %3673 = vmatprep.subr.mxu0 0.0
    %3674 = vmatpush1.msra.mxu0 0.0
    %3675 = vmatprep.subr.mxu0 0.0
    %3676 = vmatpush1.msra.mxu0 0.0
    %3677 = vmatprep.subr.mxu0 0.0
    %3678 = vmatpush1.msra.mxu0 0.0
    %3679 = vmatprep.subr.mxu0 0.0
    %3680 = vmatpush1.msra.mxu0 0.0
    %3681 = vmatprep.subr.mxu0 0.0
    %3682 = vmatpush1.msra.mxu0 0.0
    %3683 = vmatprep.subr.mxu0 0.0
    %3684 = vmatpush1.msra.mxu0 0.0
    %3685 = vmatprep.subr.mxu0 0.0
    %3686 = vmatpush1.msra.mxu0 0.0
    %3687 = vmatprep.subr.mxu0 0.0
    %3688 = vmatpush1.msra.mxu0 0.0
    %3689 = vmatprep.mubr.f32.mxu0 0.0
    %3690 = vmatmul.mubr.f32.gmra.mrb[0].mxu0 %v3623
    %v3691 = vpop.f32.mrb[0].mxu0
    %v3692 = vadd.f32 0.0, %v3691
    %v3693 = vpop.f32.mrb[0].mxu0
    %3694 = vdwg.mxu0
    %3695 = vrot.lane.b32.xlu0 %v2809, 96
    %v3696 = vpop.permute.xlu0 %3695
    %3697 = vrot.lane.b32.xlu0 %v2811, 96
    %v3698 = vpop.permute.xlu0 %3697
    %v3699 = vsel %vm649, %v3696, 0
    %v3701 = vsel %vm649, %v3698, 0
    %3703 = vmatprep.subr.mxu0 0.0
    %3704 = vmatpush1.xpose.msra.mxu0 %v3701
    %3705 = vmatprep.subr.mxu0 0.0
    %3706 = vmatpush1.xpose.msra.mxu0 0.0
    %3707 = vmatprep.subr.mxu0 0.0
    %3708 = vmatpush1.xpose.msra.mxu0 0.0
    %3709 = vmatprep.subr.mxu0 0.0
    %3710 = vmatpush1.xpose.msra.mxu0 0.0
    %3711 = vmatprep.subr.mxu0 0.0
    %3712 = vmatpush1.xpose.msra.mxu0 0.0
    %3713 = vmatprep.subr.mxu0 0.0
    %3714 = vmatpush1.xpose.msra.mxu0 0.0
    %3715 = vmatprep.subr.mxu0 0.0
    %3716 = vmatpush1.xpose.msra.mxu0 0.0
    %3717 = vmatprep.subr.mxu0 0.0
    %3718 = vmatpush1.xpose.msra.mxu0 0.0
    %3719 = vmatprep.subr.mxu0 0.0
    %3720 = vmatpush1.xpose.msra.mxu0 0.0
    %3721 = vmatprep.subr.mxu0 0.0
    %3722 = vmatpush1.xpose.msra.mxu0 0.0
    %3723 = vmatprep.subr.mxu0 0.0
    %3724 = vmatpush1.xpose.msra.mxu0 0.0
    %3725 = vmatprep.subr.mxu0 0.0
    %3726 = vmatpush1.xpose.msra.mxu0 0.0
    %3727 = vmatprep.subr.mxu0 0.0
    %3728 = vmatpush1.xpose.msra.mxu0 0.0
    %3729 = vmatprep.subr.mxu0 0.0
    %3730 = vmatpush1.xpose.msra.mxu0 0.0
    %3731 = vmatprep.subr.mxu0 0.0
    %3732 = vmatpush1.xpose.msra.mxu0 0.0
    %3733 = vmatprep.subr.mxu0 0.0
    %3734 = vmatpush1.xpose.msra.mxu0 0.0
    %3735 = vmatprep.subr.mxu0 0.0
    %3736 = vmatpush1.xpose.msra.mxu0 0.0
    %3737 = vmatprep.subr.mxu0 0.0
    %3738 = vmatpush1.xpose.msra.mxu0 0.0
    %3739 = vmatprep.subr.mxu0 0.0
    %3740 = vmatpush1.xpose.msra.mxu0 0.0
    %3741 = vmatprep.subr.mxu0 0.0
    %3742 = vmatpush1.xpose.msra.mxu0 0.0
    %3743 = vmatprep.subr.mxu0 0.0
    %3744 = vmatpush1.xpose.msra.mxu0 0.0
    %3745 = vmatprep.subr.mxu0 0.0
    %3746 = vmatpush1.xpose.msra.mxu0 0.0
    %3747 = vmatprep.subr.mxu0 0.0
    %3748 = vmatpush1.xpose.msra.mxu0 0.0
    %3749 = vmatprep.subr.mxu0 0.0
    %3750 = vmatpush1.xpose.msra.mxu0 0.0
    %3751 = vmatprep.subr.mxu0 0.0
    %3752 = vmatpush1.xpose.msra.mxu0 0.0
    %3753 = vmatprep.subr.mxu0 0.0
    %3754 = vmatpush1.xpose.msra.mxu0 0.0
    %3755 = vmatprep.subr.mxu0 0.0
    %3756 = vmatpush1.xpose.msra.mxu0 0.0
    %3757 = vmatprep.subr.mxu0 0.0
    %3758 = vmatpush1.xpose.msra.mxu0 0.0
    %3759 = vmatprep.subr.mxu0 0.0
    %3760 = vmatpush1.xpose.msra.mxu0 0.0
    %3761 = vmatprep.subr.mxu0 0.0
    %3762 = vmatpush1.xpose.msra.mxu0 0.0
    %3763 = vmatprep.subr.mxu0 0.0
    %3764 = vmatpush1.xpose.msra.mxu0 0.0
    %3765 = vmatprep.subr.mxu0 0.0
    %3766 = vmatpush1.xpose.msra.mxu0 0.0
    %3767 = vmatprep.mubr.f32.mxu0 0.0
    %3768 = vmatmul.mubr.f32.gmra.mrb[0].mxu0 %v3699
    %v3769 = vpop.f32.mrb[0].mxu0
    %v3770 = vadd.f32 0.0, %v3769
    %v3771 = vpop.f32.mrb[0].mxu0
    %3772 = vdwg.mxu0
    %v3773 = vmul.f32 %v3770, 0.17677669
    %v3774 = vadd.f32 %v3773, %v1423
    %v3775 = vsel %vm734, %v3774, -inf
    %3776 = vmax.xlane.f32.xlu0 %v3775
    %v3777 = vpop.xlane.xlu0 %3776
    %v3778 = vsub.f32 %v3774, %v3777
    %v3779 = vmul.f32 %v3778, 1.442695
    %v3780 = vpow.pop %v3779
    %v3781 = vsel %vm734, %v3780, 0.0
    %3782 = vadd.xlane.f32.xlu0 %v3781
    %v3783 = vpop.xlane.xlu0 %3782
    %v3784 = vrcp.pop %v3783
    %v3785 = vmul.f32 %v3780, %v3784
    %3787 = vrot.lane.b32.xlu0 %v2851, 96
    %v3788 = vpop.permute.xlu0 %3787
    %v3791 = vsel %vm734, %v3785, 0
    %3793 = vmatprep.subr.mxu0 0.0
    %3794 = vmatpush1.msra.mxu0 %v3788
    %3795 = vmatprep.subr.mxu0 0.0
    %3796 = vmatpush1.msra.mxu0 0.0
    %3797 = vmatprep.subr.mxu0 0.0
    %3798 = vmatpush1.msra.mxu0 0.0
    %3799 = vmatprep.subr.mxu0 0.0
    %3800 = vmatpush1.msra.mxu0 0.0
    %3801 = vmatprep.subr.mxu0 0.0
    %3802 = vmatpush1.msra.mxu0 0.0
    %3803 = vmatprep.subr.mxu0 0.0
    %3804 = vmatpush1.msra.mxu0 0.0
    %3805 = vmatprep.subr.mxu0 0.0
    %3806 = vmatpush1.msra.mxu0 0.0
    %3807 = vmatprep.subr.mxu0 0.0
    %3808 = vmatpush1.msra.mxu0 0.0
    %3809 = vmatprep.subr.mxu0 0.0
    %3810 = vmatpush1.msra.mxu0 0.0
    %3811 = vmatprep.subr.mxu0 0.0
    %3812 = vmatpush1.msra.mxu0 0.0
    %3813 = vmatprep.subr.mxu0 0.0
    %3814 = vmatpush1.msra.mxu0 0.0
    %3815 = vmatprep.subr.mxu0 0.0
    %3816 = vmatpush1.msra.mxu0 0.0
    %3817 = vmatprep.subr.mxu0 0.0
    %3818 = vmatpush1.msra.mxu0 0.0
    %3819 = vmatprep.subr.mxu0 0.0
    %3820 = vmatpush1.msra.mxu0 0.0
    %3821 = vmatprep.subr.mxu0 0.0
    %3822 = vmatpush1.msra.mxu0 0.0
    %3823 = vmatprep.subr.mxu0 0.0
    %3824 = vmatpush1.msra.mxu0 0.0
    %3825 = vmatprep.subr.mxu0 0.0
    %3826 = vmatpush1.msra.mxu0 0.0
    %3827 = vmatprep.subr.mxu0 0.0
    %3828 = vmatpush1.msra.mxu0 0.0
    %3829 = vmatprep.subr.mxu0 0.0
    %3830 = vmatpush1.msra.mxu0 0.0
    %3831 = vmatprep.subr.mxu0 0.0
    %3832 = vmatpush1.msra.mxu0 0.0
    %3833 = vmatprep.subr.mxu0 0.0
    %3834 = vmatpush1.msra.mxu0 0.0
    %3835 = vmatprep.subr.mxu0 0.0
    %3836 = vmatpush1.msra.mxu0 0.0
    %3837 = vmatprep.subr.mxu0 0.0
    %3838 = vmatpush1.msra.mxu0 0.0
    %3839 = vmatprep.subr.mxu0 0.0
    %3840 = vmatpush1.msra.mxu0 0.0
    %3841 = vmatprep.subr.mxu0 0.0
    %3842 = vmatpush1.msra.mxu0 0.0
    %3843 = vmatprep.subr.mxu0 0.0
    %3844 = vmatpush1.msra.mxu0 0.0
    %3845 = vmatprep.subr.mxu0 0.0
    %3846 = vmatpush1.msra.mxu0 0.0
    %3847 = vmatprep.subr.mxu0 0.0
    %3848 = vmatpush1.msra.mxu0 0.0
    %3849 = vmatprep.subr.mxu0 0.0
    %3850 = vmatpush1.msra.mxu0 0.0
    %3851 = vmatprep.subr.mxu0 0.0
    %3852 = vmatpush1.msra.mxu0 0.0
    %3853 = vmatprep.subr.mxu0 0.0
    %3854 = vmatpush1.msra.mxu0 0.0
    %3855 = vmatprep.subr.mxu0 0.0
    %3856 = vmatpush1.msra.mxu0 0.0
    %3857 = vmatprep.mubr.f32.mxu0 0.0
    %3858 = vmatmul.mubr.f32.gmra.mrb[0].mxu0 %v3791
    %v3859 = vpop.f32.mrb[0].mxu0
    %v3860 = vadd.f32 0.0, %v3859
    %v3861 = vpop.f32.mrb[0].mxu0
    %3862 = vdwg.mxu0
    %3863 = vrot.lane.b32.xlu0 %v2809, 64
    %v3864 = vpop.permute.xlu0 %3863
    %3865 = vrot.lane.b32.xlu0 %v2811, 64
    %v3866 = vpop.permute.xlu0 %3865
    %v3867 = vsel %vm649, %v3864, 0
    %v3869 = vsel %vm649, %v3866, 0
    %3871 = vmatprep.subr.mxu0 0.0
    %3872 = vmatpush1.xpose.msra.mxu0 %v3869
    %3873 = vmatprep.subr.mxu0 0.0
    %3874 = vmatpush1.xpose.msra.mxu0 0.0
    %3875 = vmatprep.subr.mxu0 0.0
    %3876 = vmatpush1.xpose.msra.mxu0 0.0
    %3877 = vmatprep.subr.mxu0 0.0
    %3878 = vmatpush1.xpose.msra.mxu0 0.0
    %3879 = vmatprep.subr.mxu0 0.0
    %3880 = vmatpush1.xpose.msra.mxu0 0.0
    %3881 = vmatprep.subr.mxu0 0.0
    %3882 = vmatpush1.xpose.msra.mxu0 0.0
    %3883 = vmatprep.subr.mxu0 0.0
    %3884 = vmatpush1.xpose.msra.mxu0 0.0
    %3885 = vmatprep.subr.mxu0 0.0
    %3886 = vmatpush1.xpose.msra.mxu0 0.0
    %3887 = vmatprep.subr.mxu0 0.0
    %3888 = vmatpush1.xpose.msra.mxu0 0.0
    %3889 = vmatprep.subr.mxu0 0.0
    %3890 = vmatpush1.xpose.msra.mxu0 0.0
    %3891 = vmatprep.subr.mxu0 0.0
    %3892 = vmatpush1.xpose.msra.mxu0 0.0
    %3893 = vmatprep.subr.mxu0 0.0
    %3894 = vmatpush1.xpose.msra.mxu0 0.0
    %3895 = vmatprep.subr.mxu0 0.0
    %3896 = vmatpush1.xpose.msra.mxu0 0.0
    %3897 = vmatprep.subr.mxu0 0.0
    %3898 = vmatpush1.xpose.msra.mxu0 0.0
    %3899 = vmatprep.subr.mxu0 0.0
    %3900 = vmatpush1.xpose.msra.mxu0 0.0
    %3901 = vmatprep.subr.mxu0 0.0
    %3902 = vmatpush1.xpose.msra.mxu0 0.0
    %3903 = vmatprep.subr.mxu0 0.0
    %3904 = vmatpush1.xpose.msra.mxu0 0.0
    %3905 = vmatprep.subr.mxu0 0.0
    %3906 = vmatpush1.xpose.msra.mxu0 0.0
    %3907 = vmatprep.subr.mxu0 0.0
    %3908 = vmatpush1.xpose.msra.mxu0 0.0
    %3909 = vmatprep.subr.mxu0 0.0
    %3910 = vmatpush1.xpose.msra.mxu0 0.0
    %3911 = vmatprep.subr.mxu0 0.0
    %3912 = vmatpush1.xpose.msra.mxu0 0.0
    %3913 = vmatprep.subr.mxu0 0.0
    %3914 = vmatpush1.xpose.msra.mxu0 0.0
    %3915 = vmatprep.subr.mxu0 0.0
    %3916 = vmatpush1.xpose.msra.mxu0 0.0
    %3917 = vmatprep.subr.mxu0 0.0
    %3918 = vmatpush1.xpose.msra.mxu0 0.0
    %3919 = vmatprep.subr.mxu0 0.0
    %3920 = vmatpush1.xpose.msra.mxu0 0.0
    %3921 = vmatprep.subr.mxu0 0.0
    %3922 = vmatpush1.xpose.msra.mxu0 0.0
    %3923 = vmatprep.subr.mxu0 0.0
    %3924 = vmatpush1.xpose.msra.mxu0 0.0
    %3925 = vmatprep.subr.mxu0 0.0
    %3926 = vmatpush1.xpose.msra.mxu0 0.0
    %3927 = vmatprep.subr.mxu0 0.0
    %3928 = vmatpush1.xpose.msra.mxu0 0.0
    %3929 = vmatprep.subr.mxu0 0.0
    %3930 = vmatpush1.xpose.msra.mxu0 0.0
    %3931 = vmatprep.subr.mxu0 0.0
    %3932 = vmatpush1.xpose.msra.mxu0 0.0
    %3933 = vmatprep.subr.mxu0 0.0
    %3934 = vmatpush1.xpose.msra.mxu0 0.0
    %3935 = vmatprep.mubr.f32.mxu0 0.0
    %3936 = vmatmul.mubr.f32.gmra.mrb[0].mxu0 %v3867
    %v3937 = vpop.f32.mrb[0].mxu0
    %v3938 = vadd.f32 0.0, %v3937
    %v3939 = vpop.f32.mrb[0].mxu0
    %3940 = vdwg.mxu0
    %v3941 = vmul.f32 %v3938, 0.17677669
    %v3942 = vadd.f32 %v3941, %v1423
    %v3943 = vsel %vm734, %v3942, -inf
    %3944 = vmax.xlane.f32.xlu0 %v3943
    %v3945 = vpop.xlane.xlu0 %3944
    %v3946 = vsub.f32 %v3942, %v3945
    %v3947 = vmul.f32 %v3946, 1.442695
    %v3948 = vpow.pop %v3947
    %v3949 = vsel %vm734, %v3948, 0.0
    %3950 = vadd.xlane.f32.xlu0 %v3949
    %v3951 = vpop.xlane.xlu0 %3950
    %v3952 = vrcp.pop %v3951
    %v3953 = vmul.f32 %v3948, %v3952
    %3954 = vrot.lane.b32.xlu0 %v2851, 64
    %v3955 = vpop.permute.xlu0 %3954
    %v3958 = vsel %vm734, %v3953, 0
    %3960 = vmatprep.subr.mxu0 0.0
    %3961 = vmatpush1.msra.mxu0 %v3955
    %3962 = vmatprep.subr.mxu0 0.0
    %3963 = vmatpush1.msra.mxu0 0.0
    %3964 = vmatprep.subr.mxu0 0.0
    %3965 = vmatpush1.msra.mxu0 0.0
    %3966 = vmatprep.subr.mxu0 0.0
    %3967 = vmatpush1.msra.mxu0 0.0
    %3968 = vmatprep.subr.mxu0 0.0
    %3969 = vmatpush1.msra.mxu0 0.0
    %3970 = vmatprep.subr.mxu0 0.0
    %3971 = vmatpush1.msra.mxu0 0.0
    %3972 = vmatprep.subr.mxu0 0.0
    %3973 = vmatpush1.msra.mxu0 0.0
    %3974 = vmatprep.subr.mxu0 0.0
    %3975 = vmatpush1.msra.mxu0 0.0
    %3976 = vmatprep.subr.mxu0 0.0
    %3977 = vmatpush1.msra.mxu0 0.0
    %3978 = vmatprep.subr.mxu0 0.0
    %3979 = vmatpush1.msra.mxu0 0.0
    %3980 = vmatprep.subr.mxu0 0.0
    %3981 = vmatpush1.msra.mxu0 0.0
    %3982 = vmatprep.subr.mxu0 0.0
    %3983 = vmatpush1.msra.mxu0 0.0
    %3984 = vmatprep.subr.mxu0 0.0
    %3985 = vmatpush1.msra.mxu0 0.0
    %3986 = vmatprep.subr.mxu0 0.0
    %3987 = vmatpush1.msra.mxu0 0.0
    %3988 = vmatprep.subr.mxu0 0.0
    %3989 = vmatpush1.msra.mxu0 0.0
    %3990 = vmatprep.subr.mxu0 0.0
    %3991 = vmatpush1.msra.mxu0 0.0
    %3992 = vmatprep.subr.mxu0 0.0
    %3993 = vmatpush1.msra.mxu0 0.0
    %3994 = vmatprep.subr.mxu0 0.0
    %3995 = vmatpush1.msra.mxu0 0.0
    %3996 = vmatprep.subr.mxu0 0.0
    %3997 = vmatpush1.msra.mxu0 0.0
    %3998 = vmatprep.subr.mxu0 0.0
    %3999 = vmatpush1.msra.mxu0 0.0
    %4000 = vmatprep.subr.mxu0 0.0
    %4001 = vmatpush1.msra.mxu0 0.0
    %4002 = vmatprep.subr.mxu0 0.0
    %4003 = vmatpush1.msra.mxu0 0.0
    %4004 = vmatprep.subr.mxu0 0.0
    %4005 = vmatpush1.msra.mxu0 0.0
    %4006 = vmatprep.subr.mxu0 0.0
    %4007 = vmatpush1.msra.mxu0 0.0
    %4008 = vmatprep.subr.mxu0 0.0
    %4009 = vmatpush1.msra.mxu0 0.0
    %4010 = vmatprep.subr.mxu0 0.0
    %4011 = vmatpush1.msra.mxu0 0.0
    %4012 = vmatprep.subr.mxu0 0.0
    %4013 = vmatpush1.msra.mxu0 0.0
    %4014 = vmatprep.subr.mxu0 0.0
    %4015 = vmatpush1.msra.mxu0 0.0
    %4016 = vmatprep.subr.mxu0 0.0
    %4017 = vmatpush1.msra.mxu0 0.0
    %4018 = vmatprep.subr.mxu0 0.0
    %4019 = vmatpush1.msra.mxu0 0.0
    %4020 = vmatprep.subr.mxu0 0.0
    %4021 = vmatpush1.msra.mxu0 0.0
    %4022 = vmatprep.subr.mxu0 0.0
    %4023 = vmatpush1.msra.mxu0 0.0
    %4024 = vmatprep.mubr.f32.mxu0 0.0
    %4025 = vmatmul.mubr.f32.gmra.mrb[0].mxu0 %v3958
    %v4026 = vpop.f32.mrb[0].mxu0
    %v4027 = vadd.f32 0.0, %v4026
    %v4028 = vpop.f32.mrb[0].mxu0
    %4029 = vdwg.mxu0
    %4030 = vrot.lane.b32.xlu0 %v2809, 32
    %v4031 = vpop.permute.xlu0 %4030
    %4032 = vrot.lane.b32.xlu0 %v2811, 32
    %v4033 = vpop.permute.xlu0 %4032
    %v4034 = vsel %vm649, %v4031, 0
    %v4036 = vsel %vm649, %v4033, 0
    %4038 = vmatprep.subr.mxu0 0.0
    %4039 = vmatpush1.xpose.msra.mxu0 %v4036
    %4040 = vmatprep.subr.mxu0 0.0
    %4041 = vmatpush1.xpose.msra.mxu0 0.0
    %4042 = vmatprep.subr.mxu0 0.0
    %4043 = vmatpush1.xpose.msra.mxu0 0.0
    %4044 = vmatprep.subr.mxu0 0.0
    %4045 = vmatpush1.xpose.msra.mxu0 0.0
    %4046 = vmatprep.subr.mxu0 0.0
    %4047 = vmatpush1.xpose.msra.mxu0 0.0
    %4048 = vmatprep.subr.mxu0 0.0
    %4049 = vmatpush1.xpose.msra.mxu0 0.0
    %4050 = vmatprep.subr.mxu0 0.0
    %4051 = vmatpush1.xpose.msra.mxu0 0.0
    %4052 = vmatprep.subr.mxu0 0.0
    %4053 = vmatpush1.xpose.msra.mxu0 0.0
    %4054 = vmatprep.subr.mxu0 0.0
    %4055 = vmatpush1.xpose.msra.mxu0 0.0
    %4056 = vmatprep.subr.mxu0 0.0
    %4057 = vmatpush1.xpose.msra.mxu0 0.0
    %4058 = vmatprep.subr.mxu0 0.0
    %4059 = vmatpush1.xpose.msra.mxu0 0.0
    %4060 = vmatprep.subr.mxu0 0.0
    %4061 = vmatpush1.xpose.msra.mxu0 0.0
    %4062 = vmatprep.subr.mxu0 0.0
    %4063 = vmatpush1.xpose.msra.mxu0 0.0
    %4064 = vmatprep.subr.mxu0 0.0
    %4065 = vmatpush1.xpose.msra.mxu0 0.0
    %4066 = vmatprep.subr.mxu0 0.0
    %4067 = vmatpush1.xpose.msra.mxu0 0.0
    %4068 = vmatprep.subr.mxu0 0.0
    %4069 = vmatpush1.xpose.msra.mxu0 0.0
    %4070 = vmatprep.subr.mxu0 0.0
    %4071 = vmatpush1.xpose.msra.mxu0 0.0
    %4072 = vmatprep.subr.mxu0 0.0
    %4073 = vmatpush1.xpose.msra.mxu0 0.0
    %4074 = vmatprep.subr.mxu0 0.0
    %4075 = vmatpush1.xpose.msra.mxu0 0.0
    %4076 = vmatprep.subr.mxu0 0.0
    %4077 = vmatpush1.xpose.msra.mxu0 0.0
    %4078 = vmatprep.subr.mxu0 0.0
    %4079 = vmatpush1.xpose.msra.mxu0 0.0
    %4080 = vmatprep.subr.mxu0 0.0
    %4081 = vmatpush1.xpose.msra.mxu0 0.0
    %4082 = vmatprep.subr.mxu0 0.0
    %4083 = vmatpush1.xpose.msra.mxu0 0.0
    %4084 = vmatprep.subr.mxu0 0.0
    %4085 = vmatpush1.xpose.msra.mxu0 0.0
    %4086 = vmatprep.subr.mxu0 0.0
    %4087 = vmatpush1.xpose.msra.mxu0 0.0
    %4088 = vmatprep.subr.mxu0 0.0
    %4089 = vmatpush1.xpose.msra.mxu0 0.0
    %4090 = vmatprep.subr.mxu0 0.0
    %4091 = vmatpush1.xpose.msra.mxu0 0.0
    %4092 = vmatprep.subr.mxu0 0.0
    %4093 = vmatpush1.xpose.msra.mxu0 0.0
    %4094 = vmatprep.subr.mxu0 0.0
    %4095 = vmatpush1.xpose.msra.mxu0 0.0
    %4096 = vmatprep.subr.mxu0 0.0
    %4097 = vmatpush1.xpose.msra.mxu0 0.0
    %4098 = vmatprep.subr.mxu0 0.0
    %4099 = vmatpush1.xpose.msra.mxu0 0.0
    %4100 = vmatprep.subr.mxu0 0.0
    %4101 = vmatpush1.xpose.msra.mxu0 0.0
    %4102 = vmatprep.mubr.f32.mxu0 0.0
    %4103 = vmatmul.mubr.f32.gmra.mrb[0].mxu0 %v4034
    %v4104 = vpop.f32.mrb[0].mxu0
    %v4105 = vadd.f32 0.0, %v4104
    %v4106 = vpop.f32.mrb[0].mxu0
    %4107 = vdwg.mxu0
    %v4108 = vmul.f32 %v4105, 0.17677669
    %v4109 = vadd.f32 %v4108, %v1423
    %v4110 = vsel %vm734, %v4109, -inf
    %4111 = vmax.xlane.f32.xlu0 %v4110
    %v4112 = vpop.xlane.xlu0 %4111
    %v4113 = vsub.f32 %v4109, %v4112
    %v4114 = vmul.f32 %v4113, 1.442695
    %v4115 = vpow.pop %v4114
    %v4116 = vsel %vm734, %v4115, 0.0
    %4117 = vadd.xlane.f32.xlu0 %v4116
    %v4118 = vpop.xlane.xlu0 %4117
    %v4119 = vrcp.pop %v4118
    %v4120 = vmul.f32 %v4115, %v4119
    %4121 = vrot.lane.b32.xlu0 %v2851, 32
    %v4122 = vpop.permute.xlu0 %4121
    %v4125 = vsel %vm734, %v4120, 0
    %4127 = vmatprep.subr.mxu0 0.0
    %4128 = vmatpush1.msra.mxu0 %v4122
    %4129 = vmatprep.subr.mxu0 0.0
    %4130 = vmatpush1.msra.mxu0 0.0
    %4131 = vmatprep.subr.mxu0 0.0
    %4132 = vmatpush1.msra.mxu0 0.0
    %4133 = vmatprep.subr.mxu0 0.0
    %4134 = vmatpush1.msra.mxu0 0.0
    %4135 = vmatprep.subr.mxu0 0.0
    %4136 = vmatpush1.msra.mxu0 0.0
    %4137 = vmatprep.subr.mxu0 0.0
    %4138 = vmatpush1.msra.mxu0 0.0
    %4139 = vmatprep.subr.mxu0 0.0
    %4140 = vmatpush1.msra.mxu0 0.0
    %4141 = vmatprep.subr.mxu0 0.0
    %4142 = vmatpush1.msra.mxu0 0.0
    %4143 = vmatprep.subr.mxu0 0.0
    %4144 = vmatpush1.msra.mxu0 0.0
    %4145 = vmatprep.subr.mxu0 0.0
    %4146 = vmatpush1.msra.mxu0 0.0
    %4147 = vmatprep.subr.mxu0 0.0
    %4148 = vmatpush1.msra.mxu0 0.0
    %4149 = vmatprep.subr.mxu0 0.0
    %4150 = vmatpush1.msra.mxu0 0.0
    %4151 = vmatprep.subr.mxu0 0.0
    %4152 = vmatpush1.msra.mxu0 0.0
    %4153 = vmatprep.subr.mxu0 0.0
    %4154 = vmatpush1.msra.mxu0 0.0
    %4155 = vmatprep.subr.mxu0 0.0
    %4156 = vmatpush1.msra.mxu0 0.0
    %4157 = vmatprep.subr.mxu0 0.0
    %4158 = vmatpush1.msra.mxu0 0.0
    %4159 = vmatprep.subr.mxu0 0.0
    %4160 = vmatpush1.msra.mxu0 0.0
    %4161 = vmatprep.subr.mxu0 0.0
    %4162 = vmatpush1.msra.mxu0 0.0
    %4163 = vmatprep.subr.mxu0 0.0
    %4164 = vmatpush1.msra.mxu0 0.0
    %4165 = vmatprep.subr.mxu0 0.0
    %4166 = vmatpush1.msra.mxu0 0.0
    %4167 = vmatprep.subr.mxu0 0.0
    %4168 = vmatpush1.msra.mxu0 0.0
    %4169 = vmatprep.subr.mxu0 0.0
    %4170 = vmatpush1.msra.mxu0 0.0
    %4171 = vmatprep.subr.mxu0 0.0
    %4172 = vmatpush1.msra.mxu0 0.0
    %4173 = vmatprep.subr.mxu0 0.0
    %4174 = vmatpush1.msra.mxu0 0.0
    %4175 = vmatprep.subr.mxu0 0.0
    %4176 = vmatpush1.msra.mxu0 0.0
    %4177 = vmatprep.subr.mxu0 0.0
    %4178 = vmatpush1.msra.mxu0 0.0
    %4179 = vmatprep.subr.mxu0 0.0
    %4180 = vmatpush1.msra.mxu0 0.0
    %4181 = vmatprep.subr.mxu0 0.0
    %4182 = vmatpush1.msra.mxu0 0.0
    %4183 = vmatprep.subr.mxu0 0.0
    %4184 = vmatpush1.msra.mxu0 0.0
    %4185 = vmatprep.subr.mxu0 0.0
    %4186 = vmatpush1.msra.mxu0 0.0
    %4187 = vmatprep.subr.mxu0 0.0
    %4188 = vmatpush1.msra.mxu0 0.0
    %4189 = vmatprep.subr.mxu0 0.0
    %4190 = vmatpush1.msra.mxu0 0.0
    %4191 = vmatprep.mubr.f32.mxu0 0.0
    %4192 = vmatmul.mubr.f32.gmra.mrb[0].mxu0 %v4125
    %v4193 = vpop.f32.mrb[0].mxu0
    %v4194 = vadd.f32 0.0, %v4193
    %v4195 = vpop.f32.mrb[0].mxu0
    %4196 = vdwg.mxu0
    %4198 = vrot.lane.b32.xlu0 %v3860, 32
    %v4199 = vpop.permute.xlu0 %4198
    %4202 = vrot.lane.b32.xlu0 %v4027, 64
    %v4203 = vpop.permute.xlu0 %4202
    %4206 = vrot.lane.b32.xlu0 %v4194, 96
    %v4207 = vpop.permute.xlu0 %4206
    %v4209 = vsel %vm649, %v3692, %v4199
    %v4210 = vsel %vm1334, %v4209, %v4203
    %v4211 = vsel %vm1336, %v4210, %v4207
    %s4212 = scalar_lea.vmem [#allocation10], 64
    %v4213 = vld [vmem:[%s4212] sm:$0xf]
    %v4214 = vld [vmem:[%s4212 + $0x4] sm:$0xf]
    %v4215 = vld [vmem:[%s4212 + $0x8] sm:$0xf]
    %v4216 = vld [vmem:[%s4212 + $0xc] sm:$0xf]
    %v4217 = vld [vmem:[%s4212 + $0x10] sm:$0xf]
    %v4218 = vld [vmem:[%s4212 + $0x14] sm:$0xf]
    %v4219 = vld [vmem:[%s4212 + $0x18] sm:$0xf]
    %v4220 = vld [vmem:[%s4212 + $0x1c] sm:$0xf]
    %v4221 = vld [vmem:[%s4212 + $0x20] sm:$0xf]
    %v4222 = vld [vmem:[%s4212 + $0x24] sm:$0xf]
    %v4223 = vld [vmem:[%s4212 + $0x28] sm:$0xf]
    %v4224 = vld [vmem:[%s4212 + $0x2c] sm:$0xf]
    %v4225 = vld [vmem:[%s4212 + $0x30] sm:$0xf]
    %v4226 = vld [vmem:[%s4212 + $0x34] sm:$0xf]
    %v4227 = vld [vmem:[%s4212 + $0x38] sm:$0xf]
    %v4228 = vld [vmem:[%s4212 + $0x3c] sm:$0xf]
    %s4229 = scalar_lea.vmem %s10, 1
    %v4230 = vld [vmem:[%s4229] sm:$0x1]
    %v4231 = vpack.c.bf16 %v4211, %v3532
    %v4233 = vlaneseq
    %v4234 = vshrl.u32 %v4233, 7
    %v4235 = vsub.s32 0, %v4234
    %v4236 = vrot.slane %v4230, %v4235
    %v4254 = vunpack.c.l.b16 %v4213
    %v4255 = vunpack.c.l.b16 %v4214
    %v4256 = vunpack.c.l.b16 %v4215
    %v4257 = vunpack.c.l.b16 %v4216
    %v4258 = vunpack.c.l.b16 %v4217
    %v4259 = vunpack.c.l.b16 %v4218
    %v4260 = vunpack.c.l.b16 %v4219
    %v4261 = vunpack.c.l.b16 %v4220
    %v4262 = vunpack.c.l.b16 %v4221
    %v4263 = vunpack.c.l.b16 %v4222
    %v4264 = vunpack.c.l.b16 %v4223
    %v4265 = vunpack.c.l.b16 %v4224
    %v4266 = vunpack.c.l.b16 %v4225
    %v4267 = vunpack.c.l.b16 %v4226
    %v4268 = vunpack.c.l.b16 %v4227
    %v4269 = vunpack.c.l.b16 %v4228
    %v4270 = vpack.c.b16 %v4255, %v4254
    %v4271 = vpack.c.b16 %v4257, %v4256
    %v4272 = vpack.c.b16 %v4259, %v4258
    %v4273 = vpack.c.b16 %v4261, %v4260
    %v4274 = vpack.c.b16 %v4263, %v4262
    %v4275 = vpack.c.b16 %v4265, %v4264
    %v4276 = vpack.c.b16 %v4267, %v4266
    %v4277 = vpack.c.b16 %v4269, %v4268
    %4286 = vmatprep.subr.bf16.mxu0 0
    %4287 = vmatpush1.bf16.msra.mxu0 %v4270
    %4288 = vmatprep.subr.bf16.mxu0 0
    %4289 = vmatpush1.bf16.msra.mxu0 %v4271
    %4290 = vmatprep.subr.bf16.mxu0 0
    %4291 = vmatpush1.bf16.msra.mxu0 %v4272
    %4292 = vmatprep.subr.bf16.mxu0 0
    %4293 = vmatpush1.bf16.msra.mxu0 %v4273
    %4294 = vmatprep.subr.bf16.mxu0 0
    %4295 = vmatpush1.bf16.msra.mxu0 %v4274
    %4296 = vmatprep.subr.bf16.mxu0 0
    %4297 = vmatpush1.bf16.msra.mxu0 %v4275
    %4298 = vmatprep.subr.bf16.mxu0 0
    %4299 = vmatpush1.bf16.msra.mxu0 %v4276
    %4300 = vmatprep.subr.bf16.mxu0 0
    %4301 = vmatpush1.bf16.msra.mxu0 %v4277
    %4302 = vmatprep.subr.bf16.mxu0 0
    %4303 = vmatpush1.bf16.msra.mxu0 0
    %4304 = vmatprep.subr.bf16.mxu0 0
    %4305 = vmatpush1.bf16.msra.mxu0 0
    %4306 = vmatprep.subr.bf16.mxu0 0
    %4307 = vmatpush1.bf16.msra.mxu0 0
    %4308 = vmatprep.subr.bf16.mxu0 0
    %4309 = vmatpush1.bf16.msra.mxu0 0
    %4310 = vmatprep.subr.bf16.mxu0 0
    %4311 = vmatpush1.bf16.msra.mxu0 0
    %4312 = vmatprep.subr.bf16.mxu0 0
    %4313 = vmatpush1.bf16.msra.mxu0 0
    %4314 = vmatprep.subr.bf16.mxu0 0
    %4315 = vmatpush1.bf16.msra.mxu0 0
    %4316 = vmatprep.subr.bf16.mxu0 0
    %4317 = vmatpush1.bf16.msra.mxu0 0
    %4318 = vmatprep.mubr.bf16.mxu0 0
    %4319 = vmatmul.mubr.bf16.gmra.mrb[0].mxu0 %v4231
    %v4320 = vpop.f32.mrb[0].mxu0
    %v4321 = vadd.f32 %v4236, %v4320
    %v4322 = vpop.f32.mrb[0].mxu0
    %v4323 = vpop.f32.mrb[0].mxu0
    %v4324 = vadd.f32 %v4236, %v4323
    %v4325 = vpop.f32.mrb[0].mxu0
    %4326 = vdwg.mxu0
    %v4327 = vadd.f32 %v4321, %v2588
    %v4328 = vadd.f32 %v4324, %v2589
    %s4329 = scalar_lea.vmem %s11, 1
    %v4330 = vld [vmem:[%s4329] sm:$0x1]
    %s4331 = scalar_lea.vmem %s12, 1
    %v4332 = vld [vmem:[%s4331] sm:$0x1]
    %4333 = vadd.xlane.f32.xlu0 %v4327
    %v4334 = vpop.xlane.xlu0 %4333
    %4335 = vadd.xlane.f32.xlu0 %v4328
    %v4336 = vpop.xlane.xlu0 %4335
    %v4337 = vmul.f32 %v4334, %v349
    %v4338 = vmul.f32 %v4336, %v349
    %v4339 = vsub.f32 %v4327, %v4337
    %v4340 = vsub.f32 %v4328, %v4338
    %v4341 = vmul.f32 %v4339, %v4339
    %v4342 = vmul.f32 %v4340, %v4340
    %4343 = vadd.xlane.f32.xlu0 %v4341
    %v4344 = vpop.xlane.xlu0 %4343
    %4345 = vadd.xlane.f32.xlu0 %v4342
    %v4346 = vpop.xlane.xlu0 %4345
    %v4347 = vmul.f32 %v4344, %v349
    %v4348 = vmul.f32 %v4346, %v349
    %v4349 = vadd.f32 %v4347, 1e-05
    %v4350 = vadd.f32 %v4348, 1e-05
    %v4351 = vrsqrt.pop %v4349
    %v4352 = vrsqrt.pop %v4350
    %v4353 = vmul.f32 %v4339, %v4351
    %v4354 = vmul.f32 %v4340, %v4352
    %v4356 = vlaneseq
    %v4357 = vshrl.u32 %v4356, 7
    %v4358 = vsub.s32 0, %v4357
    %v4359 = vrot.slane %v4330, %v4358
    %v4361 = vmul.f32 %v4353, %v4359
    %v4362 = vmul.f32 %v4354, %v4359
    %v4364 = vlaneseq
    %v4365 = vshrl.u32 %v4364, 7
    %v4366 = vsub.s32 0, %v4365
    %v4367 = vrot.slane %v4332, %v4366
    %v4369 = vadd.f32 %v4361, %v4367
    %v4370 = vadd.f32 %v4362, %v4367
    %s4371 = scalar_lea.vmem [#allocation11], 128
    %v4372 = vld [vmem:[%s4371] sm:$0xff]
    %v4373 = vld [vmem:[%s4371 + $0x8] sm:$0xff]
    %v4374 = vld [vmem:[%s4371 + $0x10] sm:$0xff]
    %v4375 = vld [vmem:[%s4371 + $0x18] sm:$0xff]
    %v4376 = vld [vmem:[%s4371 + $0x20] sm:$0xff]
    %v4377 = vld [vmem:[%s4371 + $0x28] sm:$0xff]
    %v4378 = vld [vmem:[%s4371 + $0x30] sm:$0xff]
    %v4379 = vld [vmem:[%s4371 + $0x38] sm:$0xff]
    %v4380 = vld [vmem:[%s4371 + $0x40] sm:$0xff]
    %v4381 = vld [vmem:[%s4371 + $0x48] sm:$0xff]
    %v4382 = vld [vmem:[%s4371 + $0x50] sm:$0xff]
    %v4383 = vld [vmem:[%s4371 + $0x58] sm:$0xff]
    %v4384 = vld [vmem:[%s4371 + $0x60] sm:$0xff]
    %v4385 = vld [vmem:[%s4371 + $0x68] sm:$0xff]
    %v4386 = vld [vmem:[%s4371 + $0x70] sm:$0xff]
    %v4387 = vld [vmem:[%s4371 + $0x78] sm:$0xff]
    %s4388 = scalar_lea.vmem %s14, 2
    %v4389 = vld [vmem:[%s4388] sm:$0x3]
    %v4390 = vpack.c.bf16 %v4370, %v4369
    %v4392 = vlaneseq
    %v4393 = vshrl.u32 %v4392, 7
    %v4394 = vsub.s32 0, %v4393
    %v4395 = vrot.slane %v4389, %v4394
    %v4396 = vlaneseq
    %v4397 = vshrl.u32 %v4396, 7
    %v4398 = vsub.s32 1, %v4397
    %v4399 = vrot.slane %v4389, %v4398
    %v4418 = vunpack.c.l.b16 %v4372
    %v4419 = vunpack.c.h.b16 %v4372
    %v4420 = vunpack.c.l.b16 %v4373
    %v4421 = vunpack.c.h.b16 %v4373
    %v4422 = vunpack.c.l.b16 %v4374
    %v4423 = vunpack.c.h.b16 %v4374
    %v4424 = vunpack.c.l.b16 %v4375
    %v4425 = vunpack.c.h.b16 %v4375
    %v4426 = vunpack.c.l.b16 %v4376
    %v4427 = vunpack.c.h.b16 %v4376
    %v4428 = vunpack.c.l.b16 %v4377
    %v4429 = vunpack.c.h.b16 %v4377
    %v4430 = vunpack.c.l.b16 %v4378
    %v4431 = vunpack.c.h.b16 %v4378
    %v4432 = vunpack.c.l.b16 %v4379
    %v4433 = vunpack.c.h.b16 %v4379
    %v4434 = vunpack.c.l.b16 %v4380
    %v4435 = vunpack.c.h.b16 %v4380
    %v4436 = vunpack.c.l.b16 %v4381
    %v4437 = vunpack.c.h.b16 %v4381
    %v4438 = vunpack.c.l.b16 %v4382
    %v4439 = vunpack.c.h.b16 %v4382
    %v4440 = vunpack.c.l.b16 %v4383
    %v4441 = vunpack.c.h.b16 %v4383
    %v4442 = vunpack.c.l.b16 %v4384
    %v4443 = vunpack.c.h.b16 %v4384
    %v4444 = vunpack.c.l.b16 %v4385
    %v4445 = vunpack.c.h.b16 %v4385
    %v4446 = vunpack.c.l.b16 %v4386
    %v4447 = vunpack.c.h.b16 %v4386
    %v4448 = vunpack.c.l.b16 %v4387
    %v4449 = vunpack.c.h.b16 %v4387
    %v4450 = vpack.c.b16 %v4420, %v4418
    %v4451 = vpack.c.b16 %v4421, %v4419
    %v4452 = vpack.c.b16 %v4424, %v4422
    %v4453 = vpack.c.b16 %v4425, %v4423
    %v4454 = vpack.c.b16 %v4428, %v4426
    %v4455 = vpack.c.b16 %v4429, %v4427
    %v4456 = vpack.c.b16 %v4432, %v4430
    %v4457 = vpack.c.b16 %v4433, %v4431
    %v4458 = vpack.c.b16 %v4436, %v4434
    %v4459 = vpack.c.b16 %v4437, %v4435
    %v4460 = vpack.c.b16 %v4440, %v4438
    %v4461 = vpack.c.b16 %v4441, %v4439
    %v4462 = vpack.c.b16 %v4444, %v4442
    %v4463 = vpack.c.b16 %v4445, %v4443
    %v4464 = vpack.c.b16 %v4448, %v4446
    %v4465 = vpack.c.b16 %v4449, %v4447
    %4482 = vmatprep.subr.bf16.mxu0 %v4451
    %4483 = vmatpush1.bf16.msra.mxu0 %v4450
    %4484 = vmatprep.subr.bf16.mxu0 %v4453
    %4485 = vmatpush1.bf16.msra.mxu0 %v4452
    %4486 = vmatprep.subr.bf16.mxu0 %v4455
    %4487 = vmatpush1.bf16.msra.mxu0 %v4454
    %4488 = vmatprep.subr.bf16.mxu0 %v4457
    %4489 = vmatpush1.bf16.msra.mxu0 %v4456
    %4490 = vmatprep.subr.bf16.mxu0 %v4459
    %4491 = vmatpush1.bf16.msra.mxu0 %v4458
    %4492 = vmatprep.subr.bf16.mxu0 %v4461
    %4493 = vmatpush1.bf16.msra.mxu0 %v4460
    %4494 = vmatprep.subr.bf16.mxu0 %v4463
    %4495 = vmatpush1.bf16.msra.mxu0 %v4462
    %4496 = vmatprep.subr.bf16.mxu0 %v4465
    %4497 = vmatpush1.bf16.msra.mxu0 %v4464
    %4498 = vmatprep.subr.bf16.mxu0 0
    %4499 = vmatpush1.bf16.msra.mxu0 0
    %4500 = vmatprep.subr.bf16.mxu0 0
    %4501 = vmatpush1.bf16.msra.mxu0 0
    %4502 = vmatprep.subr.bf16.mxu0 0
    %4503 = vmatpush1.bf16.msra.mxu0 0
    %4504 = vmatprep.subr.bf16.mxu0 0
    %4505 = vmatpush1.bf16.msra.mxu0 0
    %4506 = vmatprep.subr.bf16.mxu0 0
    %4507 = vmatpush1.bf16.msra.mxu0 0
    %4508 = vmatprep.subr.bf16.mxu0 0
    %4509 = vmatpush1.bf16.msra.mxu0 0
    %4510 = vmatprep.subr.bf16.mxu0 0
    %4511 = vmatpush1.bf16.msra.mxu0 0
    %4512 = vmatprep.subr.bf16.mxu0 0
    %4513 = vmatpush1.bf16.msra.mxu0 0
    %4514 = vmatprep.mubr.bf16.mxu0 0
    %4515 = vmatmul.mubr.bf16.gmra.mrb[0].mxu0 %v4390
    %v4516 = vpop.f32.mrb[0].mxu0
    %v4517 = vadd.f32 %v4395, %v4516
    %v4518 = vpop.f32.mrb[0].mxu0
    %v4519 = vadd.f32 %v4399, %v4518
    %v4520 = vpop.f32.mrb[0].mxu0
    %v4521 = vadd.f32 %v4395, %v4520
    %v4522 = vpop.f32.mrb[0].mxu0
    %v4523 = vadd.f32 %v4399, %v4522
    %4524 = vdwg.mxu0
    %v4525 = vmul.f32 %v4517, %v4517
    %v4526 = vmul.f32 %v4519, %v4519
    %v4527 = vmul.f32 %v4521, %v4521
    %v4528 = vmul.f32 %v4523, %v4523
    %v4529 = vmul.f32 %v4517, %v4525
    %v4530 = vmul.f32 %v4519, %v4526
    %v4531 = vmul.f32 %v4521, %v4527
    %v4532 = vmul.f32 %v4523, %v4528
    %v4533 = vmul.f32 %v4529, 0.044715
    %v4534 = vmul.f32 %v4530, 0.044715
    %v4535 = vmul.f32 %v4531, 0.044715
    %v4536 = vmul.f32 %v4532, 0.044715
    %v4537 = vadd.f32 %v4517, %v4533
    %v4538 = vadd.f32 %v4519, %v4534
    %v4539 = vadd.f32 %v4521, %v4535
    %v4540 = vadd.f32 %v4523, %v4536
    %v4541 = vmul.f32 %v4537, 0.7978846
    %v4542 = vmul.f32 %v4538, 0.7978846
    %v4543 = vmul.f32 %v4539, 0.7978846
    %v4544 = vmul.f32 %v4540, 0.7978846
    %v4545 = vtanh.pop %v4541
    %v4546 = vtanh.pop %v4542
    %v4547 = vtanh.pop %v4543
    %v4548 = vtanh.pop %v4544
    %v4549 = vadd.f32 %v4545, 1.0
    %v4550 = vadd.f32 %v4546, 1.0
    %v4551 = vadd.f32 %v4547, 1.0
    %v4552 = vadd.f32 %v4548, 1.0
    %v4553 = vmul.f32 %v4549, 0.5
    %v4554 = vmul.f32 %v4550, 0.5
    %v4555 = vmul.f32 %v4551, 0.5
    %v4556 = vmul.f32 %v4552, 0.5
    %v4557 = vmul.f32 %v4517, %v4553
    %v4558 = vmul.f32 %v4519, %v4554
    %v4559 = vmul.f32 %v4521, %v4555
    %v4560 = vmul.f32 %v4523, %v4556
    %s4561 = scalar_lea.vmem [#allocation13], 128
    %v4562 = vld [vmem:[%s4561] sm:$0xf]
    %v4563 = vld [vmem:[%s4561 + $0x4] sm:$0xf]
    %v4564 = vld [vmem:[%s4561 + $0x8] sm:$0xf]
    %v4565 = vld [vmem:[%s4561 + $0xc] sm:$0xf]
    %v4566 = vld [vmem:[%s4561 + $0x10] sm:$0xf]
    %v4567 = vld [vmem:[%s4561 + $0x14] sm:$0xf]
    %v4568 = vld [vmem:[%s4561 + $0x18] sm:$0xf]
    %v4569 = vld [vmem:[%s4561 + $0x1c] sm:$0xf]
    %v4570 = vld [vmem:[%s4561 + $0x20] sm:$0xf]
    %v4571 = vld [vmem:[%s4561 + $0x24] sm:$0xf]
    %v4572 = vld [vmem:[%s4561 + $0x28] sm:$0xf]
    %v4573 = vld [vmem:[%s4561 + $0x2c] sm:$0xf]
    %v4574 = vld [vmem:[%s4561 + $0x30] sm:$0xf]
    %v4575 = vld [vmem:[%s4561 + $0x34] sm:$0xf]
    %v4576 = vld [vmem:[%s4561 + $0x38] sm:$0xf]
    %v4577 = vld [vmem:[%s4561 + $0x3c] sm:$0xf]
    %v4578 = vld [vmem:[%s4561 + $0x40] sm:$0xf]
    %v4579 = vld [vmem:[%s4561 + $0x44] sm:$0xf]
    %v4580 = vld [vmem:[%s4561 + $0x48] sm:$0xf]
    %v4581 = vld [vmem:[%s4561 + $0x4c] sm:$0xf]
    %v4582 = vld [vmem:[%s4561 + $0x50] sm:$0xf]
    %v4583 = vld [vmem:[%s4561 + $0x54] sm:$0xf]
    %v4584 = vld [vmem:[%s4561 + $0x58] sm:$0xf]
    %v4585 = vld [vmem:[%s4561 + $0x5c] sm:$0xf]
    %v4586 = vld [vmem:[%s4561 + $0x60] sm:$0xf]
    %v4587 = vld [vmem:[%s4561 + $0x64] sm:$0xf]
    %v4588 = vld [vmem:[%s4561 + $0x68] sm:$0xf]
    %v4589 = vld [vmem:[%s4561 + $0x6c] sm:$0xf]
    %v4590 = vld [vmem:[%s4561 + $0x70] sm:$0xf]
    %v4591 = vld [vmem:[%s4561 + $0x74] sm:$0xf]
    %v4592 = vld [vmem:[%s4561 + $0x78] sm:$0xf]
    %v4593 = vld [vmem:[%s4561 + $0x7c] sm:$0xf]
    %s4594 = scalar_lea.vmem %s16, 1
    %v4595 = vld [vmem:[%s4594] sm:$0x1]
    %v4596 = vpack.c.bf16 %v4559, %v4557
    %v4597 = vpack.c.bf16 %v4560, %v4558
    %v4599 = vlaneseq
    %v4600 = vshrl.u32 %v4599, 7
    %v4601 = vsub.s32 0, %v4600
    %v4602 = vrot.slane %v4595, %v4601
    %v4636 = vunpack.c.l.b16 %v4562
    %v4637 = vunpack.c.l.b16 %v4563
    %v4638 = vunpack.c.l.b16 %v4564
    %v4639 = vunpack.c.l.b16 %v4565
    %v4640 = vunpack.c.l.b16 %v4566
    %v4641 = vunpack.c.l.b16 %v4567
    %v4642 = vunpack.c.l.b16 %v4568
    %v4643 = vunpack.c.l.b16 %v4569
    %v4644 = vunpack.c.l.b16 %v4570
    %v4645 = vunpack.c.l.b16 %v4571
    %v4646 = vunpack.c.l.b16 %v4572
    %v4647 = vunpack.c.l.b16 %v4573
    %v4648 = vunpack.c.l.b16 %v4574
    %v4649 = vunpack.c.l.b16 %v4575
    %v4650 = vunpack.c.l.b16 %v4576
    %v4651 = vunpack.c.l.b16 %v4577
    %v4652 = vunpack.c.l.b16 %v4578
    %v4653 = vunpack.c.l.b16 %v4579
    %v4654 = vunpack.c.l.b16 %v4580
    %v4655 = vunpack.c.l.b16 %v4581
    %v4656 = vunpack.c.l.b16 %v4582
    %v4657 = vunpack.c.l.b16 %v4583
    %v4658 = vunpack.c.l.b16 %v4584
    %v4659 = vunpack.c.l.b16 %v4585
    %v4660 = vunpack.c.l.b16 %v4586
    %v4661 = vunpack.c.l.b16 %v4587
    %v4662 = vunpack.c.l.b16 %v4588
    %v4663 = vunpack.c.l.b16 %v4589
    %v4664 = vunpack.c.l.b16 %v4590
    %v4665 = vunpack.c.l.b16 %v4591
    %v4666 = vunpack.c.l.b16 %v4592
    %v4667 = vunpack.c.l.b16 %v4593
    %v4668 = vpack.c.b16 %v4637, %v4636
    %v4669 = vpack.c.b16 %v4639, %v4638
    %v4670 = vpack.c.b16 %v4641, %v4640
    %v4671 = vpack.c.b16 %v4643, %v4642
    %v4672 = vpack.c.b16 %v4645, %v4644
    %v4673 = vpack.c.b16 %v4647, %v4646
    %v4674 = vpack.c.b16 %v4649, %v4648
    %v4675 = vpack.c.b16 %v4651, %v4650
    %v4676 = vpack.c.b16 %v4653, %v4652
    %v4677 = vpack.c.b16 %v4655, %v4654
    %v4678 = vpack.c.b16 %v4657, %v4656
    %v4679 = vpack.c.b16 %v4659, %v4658
    %v4680 = vpack.c.b16 %v4661, %v4660
    %v4681 = vpack.c.b16 %v4663, %v4662
    %v4682 = vpack.c.b16 %v4665, %v4664
    %v4683 = vpack.c.b16 %v4667, %v4666
    %4700 = vmatprep.subr.bf16.mxu0 0
    %4701 = vmatpush1.bf16.msra.mxu0 %v4668
    %4702 = vmatprep.subr.bf16.mxu0 0
    %4703 = vmatpush1.bf16.msra.mxu0 %v4669
    %4704 = vmatprep.subr.bf16.mxu0 0
    %4705 = vmatpush1.bf16.msra.mxu0 %v4670
    %4706 = vmatprep.subr.bf16.mxu0 0
    %4707 = vmatpush1.bf16.msra.mxu0 %v4671
    %4708 = vmatprep.subr.bf16.mxu0 0
    %4709 = vmatpush1.bf16.msra.mxu0 %v4672
    %4710 = vmatprep.subr.bf16.mxu0 0
    %4711 = vmatpush1.bf16.msra.mxu0 %v4673
    %4712 = vmatprep.subr.bf16.mxu0 0
    %4713 = vmatpush1.bf16.msra.mxu0 %v4674
    %4714 = vmatprep.subr.bf16.mxu0 0
    %4715 = vmatpush1.bf16.msra.mxu0 %v4675
    %4716 = vmatprep.subr.bf16.mxu0 0
    %4717 = vmatpush1.bf16.msra.mxu0 %v4676
    %4718 = vmatprep.subr.bf16.mxu0 0
    %4719 = vmatpush1.bf16.msra.mxu0 %v4677
    %4720 = vmatprep.subr.bf16.mxu0 0
    %4721 = vmatpush1.bf16.msra.mxu0 %v4678
    %4722 = vmatprep.subr.bf16.mxu0 0
    %4723 = vmatpush1.bf16.msra.mxu0 %v4679
    %4724 = vmatprep.subr.bf16.mxu0 0
    %4725 = vmatpush1.bf16.msra.mxu0 %v4680
    %4726 = vmatprep.subr.bf16.mxu0 0
    %4727 = vmatpush1.bf16.msra.mxu0 %v4681
    %4728 = vmatprep.subr.bf16.mxu0 0
    %4729 = vmatpush1.bf16.msra.mxu0 %v4682
    %4730 = vmatprep.subr.bf16.mxu0 0
    %4731 = vmatpush1.bf16.msra.mxu0 %v4683
    %4732 = vmatprep.mubr.bf16.mxu0 %v4597
    %4733 = vmatmul.mubr.bf16.gmra.mrb[0].mxu0 %v4596
    %v4734 = vpop.f32.mrb[0].mxu0
    %v4735 = vadd.f32 %v4602, %v4734
    %v4736 = vpop.f32.mrb[0].mxu0
    %v4737 = vpop.f32.mrb[0].mxu0
    %v4738 = vadd.f32 %v4602, %v4737
    %v4739 = vpop.f32.mrb[0].mxu0
    %4740 = vdwg.mxu0
    %v4741 = vadd.f32 %v4735, %v4369
    %v4742 = vadd.f32 %v4738, %v4370
    %s4743 = scalar_lea.vmem %s17, 1
    %v4744 = vld [vmem:[%s4743] sm:$0x1]
    %s4745 = scalar_lea.vmem %s18, 1
    %v4746 = vld [vmem:[%s4745] sm:$0x1]
    %4747 = vadd.xlane.f32.xlu0 %v4741
    %v4748 = vpop.xlane.xlu0 %4747
    %4749 = vadd.xlane.f32.xlu0 %v4742
    %v4750 = vpop.xlane.xlu0 %4749
    %v4751 = vmul.f32 %v4748, %v349
    %v4752 = vmul.f32 %v4750, %v349
    %v4753 = vsub.f32 %v4741, %v4751
    %v4754 = vsub.f32 %v4742, %v4752
    %v4755 = vmul.f32 %v4753, %v4753
    %v4756 = vmul.f32 %v4754, %v4754
    %4757 = vadd.xlane.f32.xlu0 %v4755
    %v4758 = vpop.xlane.xlu0 %4757
    %4759 = vadd.xlane.f32.xlu0 %v4756
    %v4760 = vpop.xlane.xlu0 %4759
    %v4761 = vmul.f32 %v4758, %v349
    %v4762 = vmul.f32 %v4760, %v349
    %v4763 = vadd.f32 %v4761, 1e-05
    %v4764 = vadd.f32 %v4762, 1e-05
    %v4765 = vrsqrt.pop %v4763
    %v4766 = vrsqrt.pop %v4764
    %v4767 = vmul.f32 %v4753, %v4765
    %v4768 = vmul.f32 %v4754, %v4766
    %v4770 = vlaneseq
    %v4771 = vshrl.u32 %v4770, 7
    %v4772 = vsub.s32 0, %v4771
    %v4773 = vrot.slane %v4744, %v4772
    %v4775 = vmul.f32 %v4767, %v4773
    %v4776 = vmul.f32 %v4768, %v4773
    %v4778 = vlaneseq
    %v4779 = vshrl.u32 %v4778, 7
    %v4780 = vsub.s32 0, %v4779
    %v4781 = vrot.slane %v4746, %v4780
    %v4783 = vadd.f32 %v4775, %v4781
    %v4784 = vadd.f32 %v4776, %v4781
    %4785 = vst [vmem:[#allocation14] sm:$0xff] %v4783
    %4786 = vst [vmem:[#allocation14 + $0x8] sm:$0xff] %v4784
    %v4787 = vld [vmem:[%s3] sm:$0xff]
    %v4788 = vld [vmem:[%s3 + $0x8] sm:$0xff]
    %4790 = vset.pattern.permute.xlu0 0
    %4791 = vperm.xlu0 %4790, %v4787
    %v4792 = vpop.permute.xlu0 %4791
    %4795 = vset.pattern.permute.xlu0 0
    %4796 = vperm.xlu0 %4795, %v4788
    %v4797 = vpop.permute.xlu0 %4796
    %v4799 = vmul.f32 %v4783, %v4792
    %v4800 = vmul.f32 %v4784, %v4797
    %v4801 = vrot.slane %v4799, 4
    %v4802 = vadd.f32 %v4799, %v4801
    %v4803 = vrot.slane %v4802, 2
    %v4804 = vadd.f32 %v4802, %v4803
    %v4805 = vrot.slane %v4804, 1
    %v4806 = vadd.f32 %v4804, %v4805
    %vm4807 = vcmask 7168
    %v4808 = vsel %vm4807, %v4787, 0.0
    %v4809 = vrot.slane %v4808, 4
    %v4810 = vadd.f32 %v4808, %v4809
    %v4811 = vrot.slane %v4810, 2
    %v4812 = vadd.f32 %v4810, %v4811
    %v4813 = vrot.slane %v4812, 1
    %v4814 = vadd.f32 %v4812, %v4813
    %v4815 = vmax.f32 %v4814, 1e-09
    %v4816 = vrcp.pop %v4815
    %4818 = vset.pattern.permute.xlu0 0
    %4819 = vperm.xlu0 %4818, %v4816
    %v4820 = vpop.permute.xlu0 %4819
    %v4822 = vmul.f32 %v4806, %v4820
    %v4823 = vrot.slane %v4800, 4
    %v4824 = vadd.f32 %v4800, %v4823
    %v4825 = vrot.slane %v4824, 2
    %v4826 = vadd.f32 %v4824, %v4825
    %v4827 = vrot.slane %v4826, 1
    %v4828 = vadd.f32 %v4826, %v4827
    %v4829 = vsel %vm4807, %v4788, 0.0
    %v4830 = vrot.slane %v4829, 4
    %v4831 = vadd.f32 %v4829, %v4830
    %v4832 = vrot.slane %v4831, 2
    %v4833 = vadd.f32 %v4831, %v4832
    %v4834 = vrot.slane %v4833, 1
    %v4835 = vadd.f32 %v4833, %v4834
    %v4836 = vmax.f32 %v4835, 1e-09
    %v4837 = vrcp.pop %v4836
    %4839 = vset.pattern.permute.xlu0 0
    %4840 = vperm.xlu0 %4839, %v4837
    %v4841 = vpop.permute.xlu0 %4840
    %v4843 = vmul.f32 %v4828, %v4841
    %vm4844 = vcmask 1040384
    %v4845 = vsel %vm4844, %v4822, %v4843
    %4846 = vst [vmem:[#allocation15] sm:$0x3] %v4845
    // Predicated region
    $region106: #{tpu_custom_call.1} parent=1 // pred_check
      _
    $region107: #{tpu_custom_call.1} parent=1 // pred_check_branch
      %4848 = sbr.rel (0) target = $region109
    $region108: #{tpu_custom_call.1} parent=1 // pred_region
      %s4850 = ssub.s32 256, 256
      %4851 = vsyncadd [#allocation4], %s4850
      %s4852 = sshll.u32 [#allocation14], 4
      %s4853 = int_to_ptr.vmem [resolvable:$true] %s4852
      %4858 = dma.vmem_to_hbm [thread:$0]  %s4853, 256, %s19, [#allocation4], 128, 128, 8
    $region109: #{tpu_custom_call.1} parent=1 // pred_fallthru
      _
    // Predicated region
    $region110: #{tpu_custom_call.1} parent=1 // pred_check
      _
    $region111: #{tpu_custom_call.1} parent=1 // pred_check_branch
      %4860 = sbr.rel (0) target = $region113
    $region112: #{tpu_custom_call.1} parent=1 // pred_region
      %s4862 = ssub.s32 32, 32
      %4863 = vsyncadd [#allocation16], %s4862
      %s4865 = sshll.u32 [#allocation15], 4
      %s4866 = int_to_ptr.vmem [resolvable:$true] %s4865
      %4868 = dma.vmem_to_hbm [thread:$0]  %s4866, 32, %s20, [#allocation16]
    $region113: #{tpu_custom_call.1} parent=1 // pred_fallthru
      _
    // Predicated region
    $region114: #{tpu_custom_call.1} parent=1 // pred_check
      _
    $region115: #{tpu_custom_call.1} parent=1 // pred_check_branch
      %4870 = sbr.rel (0) target = $region117
    $region116: #{tpu_custom_call.1} parent=1 // pred_region
      %4871 = dma.done [#allocation4], 256
    $region117: #{tpu_custom_call.1} parent=1 // pred_fallthru
      _
    // Predicated region
    $region118: #{tpu_custom_call.1} parent=1 // pred_check
      _
    $region119: #{tpu_custom_call.1} parent=1 // pred_check_branch
      %4873 = sbr.rel (0) target = $region121
    $region120: #{tpu_custom_call.1} parent=1 // pred_region
      %4874 = dma.done [#allocation16], 32
    $region121: #{tpu_custom_call.1} parent=1 // pred_fallthru
      _
    %4875 = vsyncpa [#allocation3], 1
    %4876 = vsyncpa [#allocation6], 1
    %4877 = vsyncpa [#allocation9], 1
    %4878 = vsyncpa [#allocation12], 1
    %4879 = vsyncpa [#allocation4], 1
    %4880 = vsyncpa [#allocation16], 1

</llo_original>
